<compile_context>
chip_gen: v7x
topology: tpu7x:2x2x1
jax: 0.10.0
libtpu: 0.0.40
codegen_flags: <defaults>
</compile_context>

<pallas_src>
import jax
import jax.numpy as jnp
from jax.experimental import pallas as pl
from jax.experimental.pallas import tpu as pltpu

INPUT_SIZE = 28 * 28   # 784
H1, H2, H3 = 512, 256, 128
NUM_CLASSES = 10
OUT_PAD = 128          # lane-dense padded logits width


def mlp_kernel(x_ref, w1_ref, b1_ref, w2_ref, b2_ref,
               w3_ref, b3_ref, w4_ref, b4_ref, o_ref):
    # fc1 + ReLU  (bf16 matmul, f32 accumulate; dropout1 identity at inference)
    h = jnp.dot(x_ref[...], w1_ref[...], preferred_element_type=jnp.float32)
    h = jnp.maximum(h + b1_ref[...], 0.0)
    # fc2 + ReLU
    h = jnp.dot(h.astype(jnp.bfloat16), w2_ref[...],
                preferred_element_type=jnp.float32)
    h = jnp.maximum(h + b2_ref[...], 0.0)
    # fc3 + ReLU
    h = jnp.dot(h.astype(jnp.bfloat16), w3_ref[...],
                preferred_element_type=jnp.float32)
    h = jnp.maximum(h + b3_ref[...], 0.0)
    # fc4 (logits, padded to 128 lanes, no activation)
    out = jnp.dot(h.astype(jnp.bfloat16), w4_ref[...],
                  preferred_element_type=jnp.float32)
    o_ref[...] = (out + b4_ref[...]).astype(o_ref.dtype)


def ann_forward(x, params, *, tb=128):
    """Run the fused 4-layer MLP. x: (B, 784) float32. Returns (B, 10) float32."""
    (w1, b1), (w2, b2), (w3, b3), (w4, b4) = params
    B, D = x.shape
    assert D == INPUT_SIZE

    # Pad batch up to a multiple of the tile size.
    Bp = ((B + tb - 1) // tb) * tb
    if Bp != B:
        x = jnp.pad(x, ((0, Bp - B), (0, 0)))

    # bf16 inputs/weights for the MXU; accumulation stays f32 in the kernel.
    xb = x.astype(jnp.bfloat16)
    w1b = w1.astype(jnp.bfloat16)
    w2b = w2.astype(jnp.bfloat16)
    w3b = w3.astype(jnp.bfloat16)

    # Final layer padded to a lane-dense 128-wide slab (zero-padded columns).
    w4p = jnp.zeros((H3, OUT_PAD), jnp.bfloat16).at[:, :NUM_CLASSES].set(
        w4.astype(jnp.bfloat16))
    b4p = jnp.zeros((1, OUT_PAD), jnp.float32).at[0, :NUM_CLASSES].set(
        b4.astype(jnp.float32))

    # Biases as (1, h) f32 rows so they broadcast over the batch tile.
    b1r = b1.reshape(1, -1).astype(jnp.float32)
    b2r = b2.reshape(1, -1).astype(jnp.float32)
    b3r = b3.reshape(1, -1).astype(jnp.float32)

    full = lambda shape: pl.BlockSpec(shape, lambda i: (0, 0))

    out_padded = pl.pallas_call(
        mlp_kernel,
        out_shape=jax.ShapeDtypeStruct((Bp, OUT_PAD), jnp.float32),
        grid_spec=pltpu.PrefetchScalarGridSpec(
            num_scalar_prefetch=0,
            grid=(Bp // tb,),
            in_specs=[
                pl.BlockSpec((tb, INPUT_SIZE), lambda i: (i, 0)),  # x tile
                full((INPUT_SIZE, H1)), full((1, H1)),
                full((H1, H2)),         full((1, H2)),
                full((H2, H3)),         full((1, H3)),
                full((H3, OUT_PAD)),    full((1, OUT_PAD)),
            ],
            out_specs=pl.BlockSpec((tb, OUT_PAD), lambda i: (i, 0)),
        ),
        compiler_params=pltpu.CompilerParams(
            dimension_semantics=("parallel",)),
    )(xb, w1b, b1r, w2b, b2r, w3b, b3r, w4p, b4p)

    # Drop batch padding and padded logit lanes.
    return out_padded[:B, :NUM_CLASSES]


def init_params(key):
    """Deterministic init mimicking nn.Linear's U(-1/sqrt(fan_in), 1/sqrt(fan_in))."""
    dims = [(INPUT_SIZE, H1), (H1, H2), (H2, H3), (H3, NUM_CLASSES)]
    params = []
    for fan_in, fan_out in dims:
        key, kw, kb = jax.random.split(key, 3)
        bound = 1.0 / jnp.sqrt(fan_in)
        w = jax.random.uniform(kw, (fan_in, fan_out), jnp.float32, -bound, bound)
        b = jax.random.uniform(kb, (fan_out,), jnp.float32, -bound, bound)
        params.append((w, b))
    return params


def ann_reference_bf16(x, params):
    """Reference that mirrors the kernel's bf16-weight / f32-accumulate math."""
    (w1, b1), (w2, b2), (w3, b3), (w4, b4) = params
    h = x.astype(jnp.bfloat16)
    h = jnp.dot(h, w1.astype(jnp.bfloat16), preferred_element_type=jnp.float32)
    h = jnp.maximum(h + b1, 0.0)
    h = jnp.dot(h.astype(jnp.bfloat16), w2.astype(jnp.bfloat16),
                preferred_element_type=jnp.float32)
    h = jnp.maximum(h + b2, 0.0)
    h = jnp.dot(h.astype(jnp.bfloat16), w3.astype(jnp.bfloat16),
                preferred_element_type=jnp.float32)
    h = jnp.maximum(h + b3, 0.0)
    h = jnp.dot(h.astype(jnp.bfloat16), w4.astype(jnp.bfloat16),
                preferred_element_type=jnp.float32)
    return h + b4


def ann_reference_f32(x, params):
    (w1, b1), (w2, b2), (w3, b3), (w4, b4) = params
    h = jnp.maximum(x @ w1 + b1, 0.0)
    h = jnp.maximum(h @ w2 + b2, 0.0)
    h = jnp.maximum(h @ w3 + b3, 0.0)
    return h @ w4 + b4


if __name__ == "__main__":
    key = jax.random.PRNGKey(0)
    kp, kx = jax.random.split(key)
    params = init_params(kp)

    B = 256  # two 128-row tiles -> grid of 2 "parallel" steps (v7x megacore)
    x = jax.random.normal(kx, (B, INPUT_SIZE), jnp.float32)

    out = jax.block_until_ready(ann_forward(x, params, tb=128))

    ref_bf16 = ann_reference_bf16(x, params)
    ref_f32 = ann_reference_f32(x, params)

    assert out.shape == (B, NUM_CLASSES)
    # Exact-math check against a reference using the same bf16/f32 recipe.
    assert jnp.allclose(out, ref_bf16, atol=2e-3, rtol=2e-3), \
        float(jnp.max(jnp.abs(out - ref_bf16)))
    # Loose sanity check against the full-f32 reference (bf16 quantization noise).
    assert jnp.allclose(out, ref_f32, atol=5e-2, rtol=5e-2), \
        float(jnp.max(jnp.abs(out - ref_f32)))
    print("KERNEL_OK")
</pallas_src>

<mosaic_0001>
module attributes {stable_mosaic.version = 11 : i64} {
  func.func @mlp_kernel(%arg0: i32, %arg1: memref<128x784xbf16, #tpu.memory_space<vmem>>, %arg2: memref<784x512xbf16, #tpu.memory_space<vmem>>, %arg3: memref<1x512xf32, #tpu.memory_space<vmem>>, %arg4: memref<512x256xbf16, #tpu.memory_space<vmem>>, %arg5: memref<1x256xf32, #tpu.memory_space<vmem>>, %arg6: memref<256x128xbf16, #tpu.memory_space<vmem>>, %arg7: memref<1x128xf32, #tpu.memory_space<vmem>>, %arg8: memref<128x128xbf16, #tpu.memory_space<vmem>>, %arg9: memref<1x128xf32, #tpu.memory_space<vmem>>, %arg10: memref<128x128xf32, #tpu.memory_space<vmem>>) attributes {dimension_semantics = [#tpu.dimension_semantics<parallel>], iteration_bounds = array<i64: 2>, scalar_prefetch = 0 : i64, scratch_operands = 0 : i64, tpu.core_type = #tpu.core_type<tc>, window_params = [{transform_indices = @transform_0, window_bounds = array<i64: 128, 784>}, {pipeline_mode = #tpu.pipeline_mode<synchronous>, transform_indices = @transform_1, window_bounds = array<i64: 784, 512>}, {pipeline_mode = #tpu.pipeline_mode<synchronous>, transform_indices = @transform_2, window_bounds = array<i64: 1, 512>}, {pipeline_mode = #tpu.pipeline_mode<synchronous>, transform_indices = @transform_3, window_bounds = array<i64: 512, 256>}, {pipeline_mode = #tpu.pipeline_mode<synchronous>, transform_indices = @transform_4, window_bounds = array<i64: 1, 256>}, {pipeline_mode = #tpu.pipeline_mode<synchronous>, transform_indices = @transform_5, window_bounds = array<i64: 256, 128>}, {pipeline_mode = #tpu.pipeline_mode<synchronous>, transform_indices = @transform_6, window_bounds = array<i64: 1, 128>}, {pipeline_mode = #tpu.pipeline_mode<synchronous>, transform_indices = @transform_7, window_bounds = array<i64: 128, 128>}, {pipeline_mode = #tpu.pipeline_mode<synchronous>, transform_indices = @transform_8, window_bounds = array<i64: 1, 128>}, {transform_indices = @transform_9, window_bounds = array<i64: 128, 128>}]} {
    %c0 = arith.constant 0 : index
    %c0_0 = arith.constant 0 : index
    %0 = vector.load %arg1[%c0, %c0_0] : memref<128x784xbf16, #tpu.memory_space<vmem>>, vector<128x784xbf16>
    %c0_1 = arith.constant 0 : index
    %c0_2 = arith.constant 0 : index
    %1 = vector.load %arg2[%c0_1, %c0_2] : memref<784x512xbf16, #tpu.memory_space<vmem>>, vector<784x512xbf16>
    %cst = arith.constant dense<0.000000e+00> : vector<128x512xf32>
    %2 = tpu.matmul %0, %1, %cst {dimension_numbers = #tpu.dot_dimension_numbers<[1], [0], [0], [1], [0, 0, 1, 1], [], []>} : vector<128x784xbf16>, vector<784x512xbf16>, vector<128x512xf32> -> vector<128x512xf32>
    %c0_3 = arith.constant 0 : index
    %c0_4 = arith.constant 0 : index
    %3 = vector.load %arg3[%c0_3, %c0_4] : memref<1x512xf32, #tpu.memory_space<vmem>>, vector<1x512xf32>
    %4 = vector.broadcast %3 : vector<1x512xf32> to vector<128x512xf32>
    %5 = arith.addf %2, %4 : vector<128x512xf32>
    %cst_5 = arith.constant 0.000000e+00 : f32
    %6 = vector.broadcast %cst_5 : f32 to vector<128x512xf32>
    %7 = arith.maximumf %5, %6 : vector<128x512xf32>
    %8 = arith.truncf %7 : vector<128x512xf32> to vector<128x512xbf16>
    %c0_6 = arith.constant 0 : index
    %c0_7 = arith.constant 0 : index
    %9 = vector.load %arg4[%c0_6, %c0_7] : memref<512x256xbf16, #tpu.memory_space<vmem>>, vector<512x256xbf16>
    %cst_8 = arith.constant dense<0.000000e+00> : vector<128x256xf32>
    %10 = tpu.matmul %8, %9, %cst_8 {dimension_numbers = #tpu.dot_dimension_numbers<[1], [0], [0], [1], [0, 0, 1, 1], [], []>} : vector<128x512xbf16>, vector<512x256xbf16>, vector<128x256xf32> -> vector<128x256xf32>
    %c0_9 = arith.constant 0 : index
    %c0_10 = arith.constant 0 : index
    %11 = vector.load %arg5[%c0_9, %c0_10] : memref<1x256xf32, #tpu.memory_space<vmem>>, vector<1x256xf32>
    %12 = vector.broadcast %11 : vector<1x256xf32> to vector<128x256xf32>
    %13 = arith.addf %10, %12 : vector<128x256xf32>
    %cst_11 = arith.constant 0.000000e+00 : f32
    %14 = vector.broadcast %cst_11 : f32 to vector<128x256xf32>
    %15 = arith.maximumf %13, %14 : vector<128x256xf32>
    %16 = arith.truncf %15 : vector<128x256xf32> to vector<128x256xbf16>
    %c0_12 = arith.constant 0 : index
    %c0_13 = arith.constant 0 : index
    %17 = vector.load %arg6[%c0_12, %c0_13] : memref<256x128xbf16, #tpu.memory_space<vmem>>, vector<256x128xbf16>
    %cst_14 = arith.constant dense<0.000000e+00> : vector<128x128xf32>
    %18 = tpu.matmul %16, %17, %cst_14 {dimension_numbers = #tpu.dot_dimension_numbers<[1], [0], [0], [1], [0, 0, 1, 1], [], []>} : vector<128x256xbf16>, vector<256x128xbf16>, vector<128x128xf32> -> vector<128x128xf32>
    %c0_15 = arith.constant 0 : index
    %c0_16 = arith.constant 0 : index
    %19 = vector.load %arg7[%c0_15, %c0_16] : memref<1x128xf32, #tpu.memory_space<vmem>>, vector<1x128xf32>
    %20 = vector.broadcast %19 : vector<1x128xf32> to vector<128x128xf32>
    %21 = arith.addf %18, %20 : vector<128x128xf32>
    %cst_17 = arith.constant 0.000000e+00 : f32
    %22 = vector.broadcast %cst_17 : f32 to vector<128x128xf32>
    %23 = arith.maximumf %21, %22 : vector<128x128xf32>
    %24 = arith.truncf %23 : vector<128x128xf32> to vector<128x128xbf16>
    %c0_18 = arith.constant 0 : index
    %c0_19 = arith.constant 0 : index
    %25 = vector.load %arg8[%c0_18, %c0_19] : memref<128x128xbf16, #tpu.memory_space<vmem>>, vector<128x128xbf16>
    %cst_20 = arith.constant dense<0.000000e+00> : vector<128x128xf32>
    %26 = tpu.matmul %24, %25, %cst_20 {dimension_numbers = #tpu.dot_dimension_numbers<[1], [0], [0], [1], [0, 0, 1, 1], [], []>} : vector<128x128xbf16>, vector<128x128xbf16>, vector<128x128xf32> -> vector<128x128xf32>
    %c0_21 = arith.constant 0 : index
    %c0_22 = arith.constant 0 : index
    %27 = vector.load %arg9[%c0_21, %c0_22] : memref<1x128xf32, #tpu.memory_space<vmem>>, vector<1x128xf32>
    %28 = vector.broadcast %27 : vector<1x128xf32> to vector<128x128xf32>
    %29 = arith.addf %26, %28 : vector<128x128xf32>
    %c0_23 = arith.constant 0 : index
    %c0_24 = arith.constant 0 : index
    %30 = vector.load %arg10[%c0_23, %c0_24] : memref<128x128xf32, #tpu.memory_space<vmem>>, vector<128x128xf32>
    tpu.vector_store %arg10[%c0_23, %c0_24], %29 {strides = array<i32>} : memref<128x128xf32, #tpu.memory_space<vmem>>, vector<128x128xf32>,
    return
  }
  func.func @transform_0(%arg0: i32) -> (i32, i32) {
    %c0_i32 = arith.constant 0 : i32
    %c0_i32_0 = arith.constant 0 : i32
    return %arg0, %c0_i32 : i32, i32
  }
  func.func @transform_1(%arg0: i32) -> (i32, i32) {
    %c0_i32 = arith.constant 0 : i32
    %c0_i32_0 = arith.constant 0 : i32
    %c0_i32_1 = arith.constant 0 : i32
    return %c0_i32, %c0_i32_0 : i32, i32
  }
  func.func @transform_2(%arg0: i32) -> (i32, i32) {
    %c0_i32 = arith.constant 0 : i32
    %c0_i32_0 = arith.constant 0 : i32
    %c0_i32_1 = arith.constant 0 : i32
    return %c0_i32, %c0_i32_0 : i32, i32
  }
  func.func @transform_3(%arg0: i32) -> (i32, i32) {
    %c0_i32 = arith.constant 0 : i32
    %c0_i32_0 = arith.constant 0 : i32
    %c0_i32_1 = arith.constant 0 : i32
    return %c0_i32, %c0_i32_0 : i32, i32
  }
  func.func @transform_4(%arg0: i32) -> (i32, i32) {
    %c0_i32 = arith.constant 0 : i32
    %c0_i32_0 = arith.constant 0 : i32
    %c0_i32_1 = arith.constant 0 : i32
    return %c0_i32, %c0_i32_0 : i32, i32
  }
  func.func @transform_5(%arg0: i32) -> (i32, i32) {
    %c0_i32 = arith.constant 0 : i32
    %c0_i32_0 = arith.constant 0 : i32
    %c0_i32_1 = arith.constant 0 : i32
    return %c0_i32, %c0_i32_0 : i32, i32
  }
  func.func @transform_6(%arg0: i32) -> (i32, i32) {
    %c0_i32 = arith.constant 0 : i32
    %c0_i32_0 = arith.constant 0 : i32
    %c0_i32_1 = arith.constant 0 : i32
    return %c0_i32, %c0_i32_0 : i32, i32
  }
  func.func @transform_7(%arg0: i32) -> (i32, i32) {
    %c0_i32 = arith.constant 0 : i32
    %c0_i32_0 = arith.constant 0 : i32
    %c0_i32_1 = arith.constant 0 : i32
    return %c0_i32, %c0_i32_0 : i32, i32
  }
  func.func @transform_8(%arg0: i32) -> (i32, i32) {
    %c0_i32 = arith.constant 0 : i32
    %c0_i32_0 = arith.constant 0 : i32
    %c0_i32_1 = arith.constant 0 : i32
    return %c0_i32, %c0_i32_0 : i32, i32
  }
  func.func @transform_9(%arg0: i32) -> (i32, i32) {
    %c0_i32 = arith.constant 0 : i32
    %c0_i32_0 = arith.constant 0 : i32
    return %arg0, %c0_i32 : i32, i32
  }
}

</mosaic_0001>

<llo_original>
// kernel: tpu_custom_call.1
$region0: #{tpu_custom_call.1}
  #allocation0 [shape = 'u32[]', space=smem, size = 0x4, offset = 0x4, fixed_abs, tag = 'smem constant byte address 0x4 - core index']
  #allocation1 [shape = 'u32[144,128]{1,0:T(1,128)}', space=vmem, size = 0x12000, scoped, tag = 'internal scratch']
  %s0 = inlined_call_operand.vmem [shape: bf16[256,784], index: 0, kind: input, shape index: {}]
  %s1 = inlined_call_operand.vmem [shape: bf16[784,512], index: 1, kind: input, shape index: {}]
  %s2 = inlined_call_operand.hbm [shape: f32[1,512], index: 2, kind: input, shape index: {}]
  %s3 = inlined_call_operand.hbm [shape: bf16[512,256], index: 3, kind: input, shape index: {}]
  %s4 = inlined_call_operand.vmem [shape: f32[1,256], index: 4, kind: input, shape index: {}]
  %s5 = inlined_call_operand.vmem [shape: bf16[256,128], index: 5, kind: input, shape index: {}]
  %s6 = inlined_call_operand.hbm [shape: f32[1,128], index: 6, kind: input, shape index: {}]
  %s7 = inlined_call_operand.hbm [shape: bf16[128,128], index: 7, kind: input, shape index: {}]
  %s8 = inlined_call_operand.hbm [shape: f32[1,128], index: 8, kind: input, shape index: {}]
  %s9 = inlined_call_operand.hbm [shape: f32[256,128], index: 9, kind: output, shape index: {}]
  %s10 = sld [smem:[#allocation0]]
  $region89: #{tpu_custom_call.1} parent=0
    _
  %s12 = ssub.s32 1, %s10
  %s13 = scalar_select 0, %s12, %s10
  $region1: #{tpu_custom_call.1} parent=0
    #allocation2 [shape = 'u8[2048]{0}', space=vmem, size = 0x800, scoped, tag = 'input window, operand 2, single buffered']
    #allocation3 [shape = 's32[2]{0}', space=sflag, size = 0x8, scoped, tag = 'scoped memory for tpu_custom_call.1']
    #allocation4 [shape = 's32[2]{0}', space=sflag, size = 0x8, scoped, tag = 'scoped memory for tpu_custom_call.1']
    #allocation5 [shape = 'u8[262144]{0}', space=vmem, size = 0x40000, scoped, tag = 'input window, operand 3, single buffered']
    #allocation6 [shape = 's32[1]{0}', space=sflag, size = 0x4, scoped, tag = 'scoped memory for tpu_custom_call.1']
    #allocation7 [shape = 'u8[512]{0}', space=vmem, size = 0x400, scoped, tag = 'input window, operand 6, single buffered']
    #allocation8 [shape = 'u8[32768]{0}', space=vmem, size = 0x8000, scoped, tag = 'input window, operand 7, single buffered']
    #allocation9 [shape = 's32[1]{0}', space=sflag, size = 0x4, scoped, tag = 'scoped memory for tpu_custom_call.1']
    #allocation10 [shape = 'u8[512]{0}', space=vmem, size = 0x400, scoped, tag = 'input window, operand 8, single buffered']
    #allocation11 [shape = 'u8[131072]{0}', space=vmem, size = 0x20000, scoped, tag = 'output window, operand 0']
    %14 = vsyncpa [#allocation3], 0
    %15 = vsyncpa [#allocation6], 0
    %16 = vsyncpa [#allocation9], 0
    %17 = vsyncpa [#allocation4], 0
    %s18 = scalar_lea.sflag [#allocation4], 1
    %19 = vsyncpa %s18, 0
    loop: start=0, step=1, limit=4
    $region2: #{tpu_custom_call.1} parent=1 // loop_pre_header
      _
    $region3: #{tpu_custom_call.1} parent=1 // loop_header
      %s21 = sphi 0, %s25
      %p22 = scmp.ge.s32.totalorder %s21, 4
      %s31 = sphi 0, %s33
      %s34 = sphi 0, %s31
      %s35 = sphi 0, %s34
      %s51 = sphi 0, %s35
      %s55 = sphi 0, %s55
      %s57 = sphi 0, %s55
      %s58 = sphi 0, %s57
      %s72 = sphi 0, %s58
      %s76 = sphi 0, %s76
      %s78 = sphi 0, %s76
      %s79 = sphi 0, %s78
      %s93 = sphi 0, %s79
      %s97 = sphi 0, %s97
      %s99 = sphi 0, %s97
      %s100 = sphi 0, %s99
      %s114 = sphi 0, %s100
      %s118 = sphi 0, %s118
      %s120 = sphi 0, %s118
      %s121 = sphi 0, %s120
      %s135 = sphi 0, %s121
      %s139 = sphi 0, %s139
      %s141 = sphi 0, %s139
      %s142 = sphi 0, %s141
      %s156 = sphi 0, %s142
      %s160 = sphi 0, %s160
      %s162 = sphi 0, %s160
      %s163 = sphi 0, %s162
      %s177 = sphi 0, %s163
      %s181 = sphi 0, %s181
      %s183 = sphi 0, %s181
      %s184 = sphi 0, %s183
      %s198 = sphi 0, %s184
      %s202 = sphi 0, %s202
      %s204 = sphi 0, %s202
      %s205 = sphi 0, %s204
      %s219 = sphi 0, %s205
      %s225 = sphi 0, %s227
      %s228 = sphi 0, %s225
      %s229 = sphi 0, %s228
      %s245 = sphi 0, %s229
    $region4: #{tpu_custom_call.1} parent=1 // loop_header_branch
      %24 = sbr.rel (%p22) target = $region8
    $region5: #{tpu_custom_call.1} parent=1 // loop_body
      %s26 = ssub.s32 %s21, 1
      %s27 = ssub.s32 %s21, 2
      %s28 = sadd.s32 %s21, 1
      %s29 = ssub.s32 %s21, %s28
      %p30 = scmp.eq.s32.totalorder %s29, 0
      %s32 = sadd.s32 %s31, 1
      %s33 = scalar_select %p30, %s31, %s32
      %p36 = pneg %p30
      %p37 = scmp.eq.s32.totalorder %s21, 1
      %p38 = por %p36, %p37
      %p39 = scmp.ne.s32.totalorder %s31, %s34
      %p40 = scmp.eq.s32.totalorder %s21, 0
      %p41 = por %p39, %p40
      %p42 = scmp.ne.s32.totalorder %s31, %s34
      %p43 = scmp.eq.s32.totalorder %s26, 1
      %p44 = por %p42, %p43
      %p45 = scmp.ne.s32.totalorder %s34, %s35
      %p46 = scmp.eq.s32.totalorder %s26, 0
      %p47 = por %p45, %p46
      %p48 = scmp.ne.s32.totalorder %s34, %s35
      %p49 = scmp.eq.s32.totalorder %s27, 1
      %p50 = por %p48, %p49
      %p52 = scmp.ne.s32.totalorder %s35, %s51
      %p53 = scmp.eq.s32.totalorder %s27, 0
      %p54 = por %p52, %p53
      %s56 = sadd.s32 %s55, 1
      %p59 = scmp.eq.s32.totalorder %s21, 1
      %p60 = scmp.ne.s32.totalorder %s55, %s57
      %p61 = scmp.eq.s32.totalorder %s21, 0
      %p62 = por %p60, %p61
      %p63 = scmp.ne.s32.totalorder %s55, %s57
      %p64 = scmp.eq.s32.totalorder %s26, 1
      %p65 = por %p63, %p64
      %p66 = scmp.ne.s32.totalorder %s57, %s58
      %p67 = scmp.eq.s32.totalorder %s26, 0
      %p68 = por %p66, %p67
      %p69 = scmp.ne.s32.totalorder %s57, %s58
      %p70 = scmp.eq.s32.totalorder %s27, 1
      %p71 = por %p69, %p70
      %p73 = scmp.ne.s32.totalorder %s58, %s72
      %p74 = scmp.eq.s32.totalorder %s27, 0
      %p75 = por %p73, %p74
      %s77 = sadd.s32 %s76, 1
      %p80 = scmp.eq.s32.totalorder %s21, 1
      %p81 = scmp.ne.s32.totalorder %s76, %s78
      %p82 = scmp.eq.s32.totalorder %s21, 0
      %p83 = por %p81, %p82
      %p84 = scmp.ne.s32.totalorder %s76, %s78
      %p85 = scmp.eq.s32.totalorder %s26, 1
      %p86 = por %p84, %p85
      %p87 = scmp.ne.s32.totalorder %s78, %s79
      %p88 = scmp.eq.s32.totalorder %s26, 0
      %p89 = por %p87, %p88
      %p90 = scmp.ne.s32.totalorder %s78, %s79
      %p91 = scmp.eq.s32.totalorder %s27, 1
      %p92 = por %p90, %p91
      %p94 = scmp.ne.s32.totalorder %s79, %s93
      %p95 = scmp.eq.s32.totalorder %s27, 0
      %p96 = por %p94, %p95
      %s98 = sadd.s32 %s97, 1
      %p101 = scmp.eq.s32.totalorder %s21, 1
      %p102 = scmp.ne.s32.totalorder %s97, %s99
      %p103 = scmp.eq.s32.totalorder %s21, 0
      %p104 = por %p102, %p103
      %p105 = scmp.ne.s32.totalorder %s97, %s99
      %p106 = scmp.eq.s32.totalorder %s26, 1
      %p107 = por %p105, %p106
      %p108 = scmp.ne.s32.totalorder %s99, %s100
      %p109 = scmp.eq.s32.totalorder %s26, 0
      %p110 = por %p108, %p109
      %p111 = scmp.ne.s32.totalorder %s99, %s100
      %p112 = scmp.eq.s32.totalorder %s27, 1
      %p113 = por %p111, %p112
      %p115 = scmp.ne.s32.totalorder %s100, %s114
      %p116 = scmp.eq.s32.totalorder %s27, 0
      %p117 = por %p115, %p116
      %s119 = sadd.s32 %s118, 1
      %p122 = scmp.eq.s32.totalorder %s21, 1
      %p123 = scmp.ne.s32.totalorder %s118, %s120
      %p124 = scmp.eq.s32.totalorder %s21, 0
      %p125 = por %p123, %p124
      %p126 = scmp.ne.s32.totalorder %s118, %s120
      %p127 = scmp.eq.s32.totalorder %s26, 1
      %p128 = por %p126, %p127
      %p129 = scmp.ne.s32.totalorder %s120, %s121
      %p130 = scmp.eq.s32.totalorder %s26, 0
      %p131 = por %p129, %p130
      %p132 = scmp.ne.s32.totalorder %s120, %s121
      %p133 = scmp.eq.s32.totalorder %s27, 1
      %p134 = por %p132, %p133
      %p136 = scmp.ne.s32.totalorder %s121, %s135
      %p137 = scmp.eq.s32.totalorder %s27, 0
      %p138 = por %p136, %p137
      %s140 = sadd.s32 %s139, 1
      %p143 = scmp.eq.s32.totalorder %s21, 1
      %p144 = scmp.ne.s32.totalorder %s139, %s141
      %p145 = scmp.eq.s32.totalorder %s21, 0
      %p146 = por %p144, %p145
      %p147 = scmp.ne.s32.totalorder %s139, %s141
      %p148 = scmp.eq.s32.totalorder %s26, 1
      %p149 = por %p147, %p148
      %p150 = scmp.ne.s32.totalorder %s141, %s142
      %p151 = scmp.eq.s32.totalorder %s26, 0
      %p152 = por %p150, %p151
      %p153 = scmp.ne.s32.totalorder %s141, %s142
      %p154 = scmp.eq.s32.totalorder %s27, 1
      %p155 = por %p153, %p154
      %p157 = scmp.ne.s32.totalorder %s142, %s156
      %p158 = scmp.eq.s32.totalorder %s27, 0
      %p159 = por %p157, %p158
      %s161 = sadd.s32 %s160, 1
      %p164 = scmp.eq.s32.totalorder %s21, 1
      %p165 = scmp.ne.s32.totalorder %s160, %s162
      %p166 = scmp.eq.s32.totalorder %s21, 0
      %p167 = por %p165, %p166
      %p168 = scmp.ne.s32.totalorder %s160, %s162
      %p169 = scmp.eq.s32.totalorder %s26, 1
      %p170 = por %p168, %p169
      %p171 = scmp.ne.s32.totalorder %s162, %s163
      %p172 = scmp.eq.s32.totalorder %s26, 0
      %p173 = por %p171, %p172
      %p174 = scmp.ne.s32.totalorder %s162, %s163
      %p175 = scmp.eq.s32.totalorder %s27, 1
      %p176 = por %p174, %p175
      %p178 = scmp.ne.s32.totalorder %s163, %s177
      %p179 = scmp.eq.s32.totalorder %s27, 0
      %p180 = por %p178, %p179
      %s182 = sadd.s32 %s181, 1
      %p185 = scmp.eq.s32.totalorder %s21, 1
      %p186 = scmp.ne.s32.totalorder %s181, %s183
      %p187 = scmp.eq.s32.totalorder %s21, 0
      %p188 = por %p186, %p187
      %p189 = scmp.ne.s32.totalorder %s181, %s183
      %p190 = scmp.eq.s32.totalorder %s26, 1
      %p191 = por %p189, %p190
      %p192 = scmp.ne.s32.totalorder %s183, %s184
      %p193 = scmp.eq.s32.totalorder %s26, 0
      %p194 = por %p192, %p193
      %p195 = scmp.ne.s32.totalorder %s183, %s184
      %p196 = scmp.eq.s32.totalorder %s27, 1
      %p197 = por %p195, %p196
      %p199 = scmp.ne.s32.totalorder %s184, %s198
      %p200 = scmp.eq.s32.totalorder %s27, 0
      %p201 = por %p199, %p200
      %s203 = sadd.s32 %s202, 1
      %p206 = scmp.eq.s32.totalorder %s21, 1
      %p207 = scmp.ne.s32.totalorder %s202, %s204
      %p208 = scmp.eq.s32.totalorder %s21, 0
      %p209 = por %p207, %p208
      %p210 = scmp.ne.s32.totalorder %s202, %s204
      %p211 = scmp.eq.s32.totalorder %s26, 1
      %p212 = por %p210, %p211
      %p213 = scmp.ne.s32.totalorder %s204, %s205
      %p214 = scmp.eq.s32.totalorder %s26, 0
      %p215 = por %p213, %p214
      %p216 = scmp.ne.s32.totalorder %s204, %s205
      %p217 = scmp.eq.s32.totalorder %s27, 1
      %p218 = por %p216, %p217
      %p220 = scmp.ne.s32.totalorder %s205, %s219
      %p221 = scmp.eq.s32.totalorder %s27, 0
      %p222 = por %p220, %p221
      %s223 = ssub.s32 %s21, %s28
      %p224 = scmp.eq.s32.totalorder %s223, 0
      %s226 = sadd.s32 %s225, 1
      %s227 = scalar_select %p224, %s225, %s226
      %p230 = pneg %p224
      %p231 = scmp.eq.s32.totalorder %s21, 1
      %p232 = por %p230, %p231
      %p233 = scmp.ne.s32.totalorder %s225, %s228
      %p234 = scmp.eq.s32.totalorder %s21, 0
      %p235 = por %p233, %p234
      %p236 = scmp.ne.s32.totalorder %s225, %s228
      %p237 = scmp.eq.s32.totalorder %s26, 1
      %p238 = por %p236, %p237
      %p239 = scmp.ne.s32.totalorder %s228, %s229
      %p240 = scmp.eq.s32.totalorder %s26, 0
      %p241 = por %p239, %p240
      %p242 = scmp.ne.s32.totalorder %s228, %s229
      %p243 = scmp.eq.s32.totalorder %s27, 1
      %p244 = por %p242, %p243
      %p246 = scmp.ne.s32.totalorder %s229, %s245
      %p247 = scmp.eq.s32.totalorder %s27, 0
      %p248 = por %p246, %p247
      %p249 = scmp.le.s32.totalorder 1, %s21
      %p250 = scmp.lt.s32.totalorder %s21, 3
      %p251 = pnand %p249, %p250
      %p252 = pneg %p251
      // Predicated region
      $region9: #{tpu_custom_call.1} parent=5 // pred_check
        _
      $region10: #{tpu_custom_call.1} parent=5 // pred_check_branch
        %254 = sbr.rel (%p251) target = $region12
      $region11: #{tpu_custom_call.1} parent=5 // pred_region
        %s255 = ssub.s32 %s21, 1
        // Predicated region
        $region13: #{tpu_custom_call.1} parent=11 // pred_check
          %p256 = pneg %p68
        $region14: #{tpu_custom_call.1} parent=11 // pred_check_branch
          %258 = sbr.rel (%p256) target = $region16
        $region15: #{tpu_custom_call.1} parent=11 // pred_region
          _
        $region16: #{tpu_custom_call.1} parent=11 // pred_fallthru
          _
        // Predicated region
        $region17: #{tpu_custom_call.1} parent=11 // pred_check
          %p259 = pneg %p89
        $region18: #{tpu_custom_call.1} parent=11 // pred_check_branch
          %261 = sbr.rel (%p259) target = $region20
        $region19: #{tpu_custom_call.1} parent=11 // pred_region
          %s263 = ssub.s32 64, 64
          %264 = vsyncadd [#allocation3], %s263
          %s266 = sshll.u32 [#allocation2], 4
          %s267 = int_to_ptr.vmem [resolvable:$true] %s266
          %269 = dma.hbm_to_vmem [thread:$0]  %s2, 64, %s267, [#allocation3]
        $region20: #{tpu_custom_call.1} parent=11 // pred_fallthru
          _
        // Predicated region
        $region21: #{tpu_custom_call.1} parent=11 // pred_check
          %p270 = pneg %p110
        $region22: #{tpu_custom_call.1} parent=11 // pred_check_branch
          %272 = sbr.rel (%p270) target = $region24
        $region23: #{tpu_custom_call.1} parent=11 // pred_region
          %s274 = ssub.s32 8192, 8192
          %275 = vsyncadd [#allocation6], %s274
          %s276 = sshll.u32 [#allocation5], 4
          %s277 = int_to_ptr.vmem [resolvable:$true] %s276
          %282 = dma.hbm_to_vmem [thread:$0]  %s3, 8192, %s277, [#allocation6], 128, 128, 8
        $region24: #{tpu_custom_call.1} parent=11 // pred_fallthru
          _
        // Predicated region
        $region25: #{tpu_custom_call.1} parent=11 // pred_check
          %p283 = pneg %p131
        $region26: #{tpu_custom_call.1} parent=11 // pred_check_branch
          %285 = sbr.rel (%p283) target = $region28
        $region27: #{tpu_custom_call.1} parent=11 // pred_region
          _
        $region28: #{tpu_custom_call.1} parent=11 // pred_fallthru
          _
        // Predicated region
        $region29: #{tpu_custom_call.1} parent=11 // pred_check
          %p286 = pneg %p152
        $region30: #{tpu_custom_call.1} parent=11 // pred_check_branch
          %288 = sbr.rel (%p286) target = $region32
        $region31: #{tpu_custom_call.1} parent=11 // pred_region
          _
        $region32: #{tpu_custom_call.1} parent=11 // pred_fallthru
          _
        // Predicated region
        $region33: #{tpu_custom_call.1} parent=11 // pred_check
          %p289 = pneg %p173
        $region34: #{tpu_custom_call.1} parent=11 // pred_check_branch
          %291 = sbr.rel (%p289) target = $region36
        $region35: #{tpu_custom_call.1} parent=11 // pred_region
          %s293 = ssub.s32 16, 16
          %294 = vsyncadd [#allocation6], %s293
          %s296 = sshll.u32 [#allocation7], 4
          %s297 = int_to_ptr.vmem [resolvable:$true] %s296
          %299 = dma.hbm_to_vmem [thread:$0]  %s6, 16, %s297, [#allocation6]
        $region36: #{tpu_custom_call.1} parent=11 // pred_fallthru
          _
        // Predicated region
        $region37: #{tpu_custom_call.1} parent=11 // pred_check
          %p300 = pneg %p194
        $region38: #{tpu_custom_call.1} parent=11 // pred_check_branch
          %302 = sbr.rel (%p300) target = $region40
        $region39: #{tpu_custom_call.1} parent=11 // pred_region
          %s304 = ssub.s32 1024, 1024
          %305 = vsyncadd [#allocation9], %s304
          %s306 = sshll.u32 [#allocation8], 4
          %s307 = int_to_ptr.vmem [resolvable:$true] %s306
          %312 = dma.hbm_to_vmem [thread:$0]  %s7, 1024, %s307, [#allocation9], 64, 64, 4
        $region40: #{tpu_custom_call.1} parent=11 // pred_fallthru
          _
        // Predicated region
        $region41: #{tpu_custom_call.1} parent=11 // pred_check
          %p313 = pneg %p215
        $region42: #{tpu_custom_call.1} parent=11 // pred_check_branch
          %315 = sbr.rel (%p313) target = $region44
        $region43: #{tpu_custom_call.1} parent=11 // pred_region
          %s317 = ssub.s32 16, 16
          %318 = vsyncadd [#allocation9], %s317
          %s320 = sshll.u32 [#allocation10], 4
          %s321 = int_to_ptr.vmem [resolvable:$true] %s320
          %323 = dma.hbm_to_vmem [thread:$0]  %s8, 16, %s321, [#allocation9]
        $region44: #{tpu_custom_call.1} parent=11 // pred_fallthru
          _
      $region12: #{tpu_custom_call.1} parent=5 // pred_fallthru
        _
      %p324 = scmp.lt.s32.totalorder %s21, 2
      // Predicated region
      $region45: #{tpu_custom_call.1} parent=5 // pred_check
        %p325 = pneg %p324
      $region46: #{tpu_custom_call.1} parent=5 // pred_check_branch
        %327 = sbr.rel (%p325) target = $region48
      $region47: #{tpu_custom_call.1} parent=5 // pred_region
        // Predicated region
        $region49: #{tpu_custom_call.1} parent=47 // pred_check
          %p328 = pneg %p41
        $region50: #{tpu_custom_call.1} parent=47 // pred_check_branch
          %330 = sbr.rel (%p328) target = $region52
        $region51: #{tpu_custom_call.1} parent=47 // pred_region
          %s331 = smul.u32 16, %s21
          %p332 = scmp.lt.s32.totalorder %s331, 31
          %s333 = scalar_select %p332, %s331, 31
          %s334 = smul.addr %s333, 7
          %s335 = smul.addr %s334, 4
          %s336 = scalar_lea.vmem %s0, %s335
          %s337 = smul.u32 16, %s21
        $region52: #{tpu_custom_call.1} parent=47 // pred_fallthru
          _
      $region48: #{tpu_custom_call.1} parent=5 // pred_fallthru
        _
      %p338 = scmp.le.s32.totalorder 1, %s21
      %p339 = scmp.lt.s32.totalorder %s21, 3
      %p340 = pnand %p338, %p339
      %p341 = pneg %p340
      // Predicated region
      $region53: #{tpu_custom_call.1} parent=5 // pred_check
        _
      $region54: #{tpu_custom_call.1} parent=5 // pred_check_branch
        %343 = sbr.rel (%p340) target = $region56
      $region55: #{tpu_custom_call.1} parent=5 // pred_region
        %s344 = ssub.s32 %s21, 1
        // Predicated region
        $region57: #{tpu_custom_call.1} parent=55 // pred_check
          %p345 = pneg %p89
        $region58: #{tpu_custom_call.1} parent=55 // pred_check_branch
          %347 = sbr.rel (%p345) target = $region60
        $region59: #{tpu_custom_call.1} parent=55 // pred_region
          %348 = dma.done [#allocation3], 64
        $region60: #{tpu_custom_call.1} parent=55 // pred_fallthru
          _
        // Predicated region
        $region61: #{tpu_custom_call.1} parent=55 // pred_check
          %p349 = pneg %p110
        $region62: #{tpu_custom_call.1} parent=55 // pred_check_branch
          %351 = sbr.rel (%p349) target = $region64
        $region63: #{tpu_custom_call.1} parent=55 // pred_region
          %352 = dma.done [#allocation6], 8192
        $region64: #{tpu_custom_call.1} parent=55 // pred_fallthru
          _
        // Predicated region
        $region65: #{tpu_custom_call.1} parent=55 // pred_check
          %p353 = pneg %p173
        $region66: #{tpu_custom_call.1} parent=55 // pred_check_branch
          %355 = sbr.rel (%p353) target = $region68
        $region67: #{tpu_custom_call.1} parent=55 // pred_region
          %356 = dma.done [#allocation6], 16
        $region68: #{tpu_custom_call.1} parent=55 // pred_fallthru
          _
        // Predicated region
        $region69: #{tpu_custom_call.1} parent=55 // pred_check
          %p357 = pneg %p194
        $region70: #{tpu_custom_call.1} parent=55 // pred_check_branch
          %359 = sbr.rel (%p357) target = $region72
        $region71: #{tpu_custom_call.1} parent=55 // pred_region
          %360 = dma.done [#allocation9], 1024
        $region72: #{tpu_custom_call.1} parent=55 // pred_fallthru
          _
        // Predicated region
        $region73: #{tpu_custom_call.1} parent=55 // pred_check
          %p361 = pneg %p215
        $region74: #{tpu_custom_call.1} parent=55 // pred_check_branch
          %363 = sbr.rel (%p361) target = $region76
        $region75: #{tpu_custom_call.1} parent=55 // pred_region
          %364 = dma.done [#allocation9], 16
        $region76: #{tpu_custom_call.1} parent=55 // pred_fallthru
          _
        %s365 = smul.u32 16, %s26
        %p366 = scmp.lt.s32.totalorder %s365, 31
        %s367 = scalar_select %p366, %s365, 31
        %s368 = smul.addr %s367, 7
        %s369 = smul.addr %s368, 4
        %s370 = scalar_lea.vmem %s0, %s369
        %p371 = pneg %p47
        %p372 = pneg %p44
        %p373 = pneg %p68
        %p374 = pneg %p65
        %p375 = pneg %p89
        %p376 = pneg %p86
        %p377 = pneg %p110
        %p378 = pneg %p107
        %p379 = pneg %p131
        %p380 = pneg %p128
        %p381 = pneg %p152
        %p382 = pneg %p149
        %p383 = pneg %p173
        %p384 = pneg %p170
        %p385 = pneg %p194
        %p386 = pneg %p191
        %p387 = pneg %p215
        %p388 = pneg %p212
        %p389 = pneg %p241
        %p390 = pneg %p238
        %s391 = sand.u32 %s228, 1
        %s392 = scalar_lea.sflag [#allocation4], %s391
        %s393 = sand.u32 %s228, 1
        %s394 = smul.addr %s393, 128
        %s395 = scalar_lea.vmem [#allocation11], %s394
        %s396 = smul.u32 16, %s26
        %p397 = scmp.lt.s32.totalorder %s396, 31
        %s398 = scalar_select %p397, %s396, 31
        %s399 = smul.addr %s398, 7
        %s400 = smul.addr %s399, 4
        %s401 = scalar_lea.vmem %s0, %s400
        %s402 = smul.u32 16, %s26
        %s403 = smul.u32 16, %s26
        %v405 = vld [vmem:[%s401] sm:$0xff]
        %v406 = vld [vmem:[%s401 + $0x8] sm:$0xff]
        %v407 = vld [vmem:[%s401 + $0x10] sm:$0xff]
        %v408 = vld [vmem:[%s401 + $0x18] sm:$0xf]
        %v409 = vld [vmem:[%s401 + $0x1c] sm:$0xff]
        %v410 = vld [vmem:[%s401 + $0x24] sm:$0xff]
        %v411 = vld [vmem:[%s401 + $0x2c] sm:$0xff]
        %v412 = vld [vmem:[%s401 + $0x34] sm:$0xf]
        %v413 = vld [vmem:[%s401 + $0x38] sm:$0xff]
        %v414 = vld [vmem:[%s401 + $0x40] sm:$0xff]
        %v415 = vld [vmem:[%s401 + $0x48] sm:$0xff]
        %v416 = vld [vmem:[%s401 + $0x50] sm:$0xf]
        %v417 = vld [vmem:[%s401 + $0x54] sm:$0xff]
        %v418 = vld [vmem:[%s401 + $0x5c] sm:$0xff]
        %v419 = vld [vmem:[%s401 + $0x64] sm:$0xff]
        %v420 = vld [vmem:[%s401 + $0x6c] sm:$0xf]
        %v421 = vld [vmem:[%s401 + $0x70] sm:$0xff]
        %v422 = vld [vmem:[%s401 + $0x78] sm:$0xff]
        %v423 = vld [vmem:[%s401 + $0x80] sm:$0xff]
        %v424 = vld [vmem:[%s401 + $0x88] sm:$0xf]
        %v425 = vld [vmem:[%s401 + $0x8c] sm:$0xff]
        %v426 = vld [vmem:[%s401 + $0x94] sm:$0xff]
        %v427 = vld [vmem:[%s401 + $0x9c] sm:$0xff]
        %v428 = vld [vmem:[%s401 + $0xa4] sm:$0xf]
        %v429 = vld [vmem:[%s401 + $0xa8] sm:$0xff]
        %v430 = vld [vmem:[%s401 + $0xb0] sm:$0xff]
        %v431 = vld [vmem:[%s401 + $0xb8] sm:$0xff]
        %v432 = vld [vmem:[%s401 + $0xc0] sm:$0xf]
        %v433 = vld [vmem:[%s401 + $0xc4] sm:$0xff]
        %v434 = vld [vmem:[%s401 + $0xcc] sm:$0xff]
        %v435 = vld [vmem:[%s401 + $0xd4] sm:$0xff]
        %v436 = vld [vmem:[%s401 + $0xdc] sm:$0xf]
        %v437 = vld [vmem:[%s401 + $0xe0] sm:$0xff]
        %v438 = vld [vmem:[%s401 + $0xe8] sm:$0xff]
        %v439 = vld [vmem:[%s401 + $0xf0] sm:$0xff]
        %v440 = vld [vmem:[%s401 + $0xf8] sm:$0xf]
        %v441 = vld [vmem:[%s401 + $0xfc] sm:$0xff]
        %v442 = vld [vmem:[%s401 + $0x104] sm:$0xff]
        %v443 = vld [vmem:[%s401 + $0x10c] sm:$0xff]
        %v444 = vld [vmem:[%s401 + $0x114] sm:$0xf]
        %v445 = vld [vmem:[%s401 + $0x118] sm:$0xff]
        %v446 = vld [vmem:[%s401 + $0x120] sm:$0xff]
        %v447 = vld [vmem:[%s401 + $0x128] sm:$0xff]
        %v448 = vld [vmem:[%s401 + $0x130] sm:$0xf]
        %v449 = vld [vmem:[%s401 + $0x134] sm:$0xff]
        %v450 = vld [vmem:[%s401 + $0x13c] sm:$0xff]
        %v451 = vld [vmem:[%s401 + $0x144] sm:$0xff]
        %v452 = vld [vmem:[%s401 + $0x14c] sm:$0xf]
        %v453 = vld [vmem:[%s401 + $0x150] sm:$0xff]
        %v454 = vld [vmem:[%s401 + $0x158] sm:$0xff]
        %v455 = vld [vmem:[%s401 + $0x160] sm:$0xff]
        %v456 = vld [vmem:[%s401 + $0x168] sm:$0xf]
        %v457 = vld [vmem:[%s401 + $0x16c] sm:$0xff]
        %v458 = vld [vmem:[%s401 + $0x174] sm:$0xff]
        %v459 = vld [vmem:[%s401 + $0x17c] sm:$0xff]
        %v460 = vld [vmem:[%s401 + $0x184] sm:$0xf]
        %v461 = vld [vmem:[%s401 + $0x188] sm:$0xff]
        %v462 = vld [vmem:[%s401 + $0x190] sm:$0xff]
        %v463 = vld [vmem:[%s401 + $0x198] sm:$0xff]
        %v464 = vld [vmem:[%s401 + $0x1a0] sm:$0xf]
        %v465 = vld [vmem:[%s401 + $0x1a4] sm:$0xff]
        %v466 = vld [vmem:[%s401 + $0x1ac] sm:$0xff]
        %v467 = vld [vmem:[%s401 + $0x1b4] sm:$0xff]
        %v468 = vld [vmem:[%s401 + $0x1bc] sm:$0xf]
        %v469 = vld [vmem:[%s1] sm:$0xff]
        %v470 = vld [vmem:[%s1 + $0x8] sm:$0xff]
        %v471 = vld [vmem:[%s1 + $0x10] sm:$0xff]
        %v472 = vld [vmem:[%s1 + $0x18] sm:$0xff]
        %v473 = vld [vmem:[%s1 + $0x20] sm:$0xff]
        %v474 = vld [vmem:[%s1 + $0x28] sm:$0xff]
        %v475 = vld [vmem:[%s1 + $0x30] sm:$0xff]
        %v476 = vld [vmem:[%s1 + $0x38] sm:$0xff]
        %v477 = vld [vmem:[%s1 + $0x40] sm:$0xff]
        %v478 = vld [vmem:[%s1 + $0x48] sm:$0xff]
        %v479 = vld [vmem:[%s1 + $0x50] sm:$0xff]
        %v480 = vld [vmem:[%s1 + $0x58] sm:$0xff]
        %v481 = vld [vmem:[%s1 + $0x60] sm:$0xff]
        %v482 = vld [vmem:[%s1 + $0x68] sm:$0xff]
        %v483 = vld [vmem:[%s1 + $0x70] sm:$0xff]
        %v484 = vld [vmem:[%s1 + $0x78] sm:$0xff]
        %v485 = vld [vmem:[%s1 + $0x80] sm:$0xff]
        %v486 = vld [vmem:[%s1 + $0x88] sm:$0xff]
        %v487 = vld [vmem:[%s1 + $0x90] sm:$0xff]
        %v488 = vld [vmem:[%s1 + $0x98] sm:$0xff]
        %v489 = vld [vmem:[%s1 + $0xa0] sm:$0xff]
        %v490 = vld [vmem:[%s1 + $0xa8] sm:$0xff]
        %v491 = vld [vmem:[%s1 + $0xb0] sm:$0xff]
        %v492 = vld [vmem:[%s1 + $0xb8] sm:$0xff]
        %v493 = vld [vmem:[%s1 + $0xc0] sm:$0xff]
        %v494 = vld [vmem:[%s1 + $0xc8] sm:$0xff]
        %v495 = vld [vmem:[%s1 + $0xd0] sm:$0xff]
        %v496 = vld [vmem:[%s1 + $0xd8] sm:$0xff]
        %v497 = vld [vmem:[%s1 + $0xe0] sm:$0xff]
        %v498 = vld [vmem:[%s1 + $0xe8] sm:$0xff]
        %v499 = vld [vmem:[%s1 + $0xf0] sm:$0xff]
        %v500 = vld [vmem:[%s1 + $0xf8] sm:$0xff]
        %v501 = vld [vmem:[%s1 + $0x100] sm:$0xff]
        %v502 = vld [vmem:[%s1 + $0x108] sm:$0xff]
        %v503 = vld [vmem:[%s1 + $0x110] sm:$0xff]
        %v504 = vld [vmem:[%s1 + $0x118] sm:$0xff]
        %v505 = vld [vmem:[%s1 + $0x120] sm:$0xff]
        %v506 = vld [vmem:[%s1 + $0x128] sm:$0xff]
        %v507 = vld [vmem:[%s1 + $0x130] sm:$0xff]
        %v508 = vld [vmem:[%s1 + $0x138] sm:$0xff]
        %v509 = vld [vmem:[%s1 + $0x140] sm:$0xff]
        %v510 = vld [vmem:[%s1 + $0x148] sm:$0xff]
        %v511 = vld [vmem:[%s1 + $0x150] sm:$0xff]
        %v512 = vld [vmem:[%s1 + $0x158] sm:$0xff]
        %v513 = vld [vmem:[%s1 + $0x160] sm:$0xff]
        %v514 = vld [vmem:[%s1 + $0x168] sm:$0xff]
        %v515 = vld [vmem:[%s1 + $0x170] sm:$0xff]
        %v516 = vld [vmem:[%s1 + $0x178] sm:$0xff]
        %v517 = vld [vmem:[%s1 + $0x180] sm:$0xff]
        %v518 = vld [vmem:[%s1 + $0x188] sm:$0xff]
        %v519 = vld [vmem:[%s1 + $0x190] sm:$0xff]
        %v520 = vld [vmem:[%s1 + $0x198] sm:$0xff]
        %v521 = vld [vmem:[%s1 + $0x1a0] sm:$0xff]
        %v522 = vld [vmem:[%s1 + $0x1a8] sm:$0xff]
        %v523 = vld [vmem:[%s1 + $0x1b0] sm:$0xff]
        %v524 = vld [vmem:[%s1 + $0x1b8] sm:$0xff]
        %v525 = vld [vmem:[%s1 + $0x1c0] sm:$0xff]
        %v526 = vld [vmem:[%s1 + $0x1c8] sm:$0xff]
        %v527 = vld [vmem:[%s1 + $0x1d0] sm:$0xff]
        %v528 = vld [vmem:[%s1 + $0x1d8] sm:$0xff]
        %v529 = vld [vmem:[%s1 + $0x1e0] sm:$0xff]
        %v530 = vld [vmem:[%s1 + $0x1e8] sm:$0xff]
        %v531 = vld [vmem:[%s1 + $0x1f0] sm:$0xff]
        %v532 = vld [vmem:[%s1 + $0x1f8] sm:$0xff]
        %v533 = vld [vmem:[%s1 + $0x200] sm:$0xff]
        %v534 = vld [vmem:[%s1 + $0x208] sm:$0xff]
        %v535 = vld [vmem:[%s1 + $0x210] sm:$0xff]
        %v536 = vld [vmem:[%s1 + $0x218] sm:$0xff]
        %v537 = vld [vmem:[%s1 + $0x220] sm:$0xff]
        %v538 = vld [vmem:[%s1 + $0x228] sm:$0xff]
        %v539 = vld [vmem:[%s1 + $0x230] sm:$0xff]
        %v540 = vld [vmem:[%s1 + $0x238] sm:$0xff]
        %v541 = vld [vmem:[%s1 + $0x240] sm:$0xff]
        %v542 = vld [vmem:[%s1 + $0x248] sm:$0xff]
        %v543 = vld [vmem:[%s1 + $0x250] sm:$0xff]
        %v544 = vld [vmem:[%s1 + $0x258] sm:$0xff]
        %v545 = vld [vmem:[%s1 + $0x260] sm:$0xff]
        %v546 = vld [vmem:[%s1 + $0x268] sm:$0xff]
        %v547 = vld [vmem:[%s1 + $0x270] sm:$0xff]
        %v548 = vld [vmem:[%s1 + $0x278] sm:$0xff]
        %v549 = vld [vmem:[%s1 + $0x280] sm:$0xff]
        %v550 = vld [vmem:[%s1 + $0x288] sm:$0xff]
        %v551 = vld [vmem:[%s1 + $0x290] sm:$0xff]
        %v552 = vld [vmem:[%s1 + $0x298] sm:$0xff]
        %v553 = vld [vmem:[%s1 + $0x2a0] sm:$0xff]
        %v554 = vld [vmem:[%s1 + $0x2a8] sm:$0xff]
        %v555 = vld [vmem:[%s1 + $0x2b0] sm:$0xff]
        %v556 = vld [vmem:[%s1 + $0x2b8] sm:$0xff]
        %v557 = vld [vmem:[%s1 + $0x2c0] sm:$0xff]
        %v558 = vld [vmem:[%s1 + $0x2c8] sm:$0xff]
        %v559 = vld [vmem:[%s1 + $0x2d0] sm:$0xff]
        %v560 = vld [vmem:[%s1 + $0x2d8] sm:$0xff]
        %v561 = vld [vmem:[%s1 + $0x2e0] sm:$0xff]
        %v562 = vld [vmem:[%s1 + $0x2e8] sm:$0xff]
        %v563 = vld [vmem:[%s1 + $0x2f0] sm:$0xff]
        %v564 = vld [vmem:[%s1 + $0x2f8] sm:$0xff]
        %v565 = vld [vmem:[%s1 + $0x300] sm:$0xff]
        %v566 = vld [vmem:[%s1 + $0x308] sm:$0xff]
        %v567 = vld [vmem:[%s1 + $0x310] sm:$0xff]
        %v568 = vld [vmem:[%s1 + $0x318] sm:$0xff]
        %v569 = vld [vmem:[%s1 + $0x320] sm:$0xff]
        %v570 = vld [vmem:[%s1 + $0x328] sm:$0xff]
        %v571 = vld [vmem:[%s1 + $0x330] sm:$0xff]
        %v572 = vld [vmem:[%s1 + $0x338] sm:$0xff]
        %v573 = vld [vmem:[%s1 + $0x340] sm:$0xff]
        %v574 = vld [vmem:[%s1 + $0x348] sm:$0xff]
        %v575 = vld [vmem:[%s1 + $0x350] sm:$0xff]
        %v576 = vld [vmem:[%s1 + $0x358] sm:$0xff]
        %v577 = vld [vmem:[%s1 + $0x360] sm:$0xff]
        %v578 = vld [vmem:[%s1 + $0x368] sm:$0xff]
        %v579 = vld [vmem:[%s1 + $0x370] sm:$0xff]
        %v580 = vld [vmem:[%s1 + $0x378] sm:$0xff]
        %v581 = vld [vmem:[%s1 + $0x380] sm:$0xff]
        %v582 = vld [vmem:[%s1 + $0x388] sm:$0xff]
        %v583 = vld [vmem:[%s1 + $0x390] sm:$0xff]
        %v584 = vld [vmem:[%s1 + $0x398] sm:$0xff]
        %v585 = vld [vmem:[%s1 + $0x3a0] sm:$0xff]
        %v586 = vld [vmem:[%s1 + $0x3a8] sm:$0xff]
        %v587 = vld [vmem:[%s1 + $0x3b0] sm:$0xff]
        %v588 = vld [vmem:[%s1 + $0x3b8] sm:$0xff]
        %v589 = vld [vmem:[%s1 + $0x3c0] sm:$0xff]
        %v590 = vld [vmem:[%s1 + $0x3c8] sm:$0xff]
        %v591 = vld [vmem:[%s1 + $0x3d0] sm:$0xff]
        %v592 = vld [vmem:[%s1 + $0x3d8] sm:$0xff]
        %v593 = vld [vmem:[%s1 + $0x3e0] sm:$0xff]
        %v594 = vld [vmem:[%s1 + $0x3e8] sm:$0xff]
        %v595 = vld [vmem:[%s1 + $0x3f0] sm:$0xff]
        %v596 = vld [vmem:[%s1 + $0x3f8] sm:$0xff]
        %v597 = vld [vmem:[%s1 + $0x400] sm:$0xff]
        %v598 = vld [vmem:[%s1 + $0x408] sm:$0xff]
        %v599 = vld [vmem:[%s1 + $0x410] sm:$0xff]
        %v600 = vld [vmem:[%s1 + $0x418] sm:$0xff]
        %v601 = vld [vmem:[%s1 + $0x420] sm:$0xff]
        %v602 = vld [vmem:[%s1 + $0x428] sm:$0xff]
        %v603 = vld [vmem:[%s1 + $0x430] sm:$0xff]
        %v604 = vld [vmem:[%s1 + $0x438] sm:$0xff]
        %v605 = vld [vmem:[%s1 + $0x440] sm:$0xff]
        %v606 = vld [vmem:[%s1 + $0x448] sm:$0xff]
        %v607 = vld [vmem:[%s1 + $0x450] sm:$0xff]
        %v608 = vld [vmem:[%s1 + $0x458] sm:$0xff]
        %v609 = vld [vmem:[%s1 + $0x460] sm:$0xff]
        %v610 = vld [vmem:[%s1 + $0x468] sm:$0xff]
        %v611 = vld [vmem:[%s1 + $0x470] sm:$0xff]
        %v612 = vld [vmem:[%s1 + $0x478] sm:$0xff]
        %v613 = vld [vmem:[%s1 + $0x480] sm:$0xff]
        %v614 = vld [vmem:[%s1 + $0x488] sm:$0xff]
        %v615 = vld [vmem:[%s1 + $0x490] sm:$0xff]
        %v616 = vld [vmem:[%s1 + $0x498] sm:$0xff]
        %v617 = vld [vmem:[%s1 + $0x4a0] sm:$0xff]
        %v618 = vld [vmem:[%s1 + $0x4a8] sm:$0xff]
        %v619 = vld [vmem:[%s1 + $0x4b0] sm:$0xff]
        %v620 = vld [vmem:[%s1 + $0x4b8] sm:$0xff]
        %v621 = vld [vmem:[%s1 + $0x4c0] sm:$0xff]
        %v622 = vld [vmem:[%s1 + $0x4c8] sm:$0xff]
        %v623 = vld [vmem:[%s1 + $0x4d0] sm:$0xff]
        %v624 = vld [vmem:[%s1 + $0x4d8] sm:$0xff]
        %v625 = vld [vmem:[%s1 + $0x4e0] sm:$0xff]
        %v626 = vld [vmem:[%s1 + $0x4e8] sm:$0xff]
        %v627 = vld [vmem:[%s1 + $0x4f0] sm:$0xff]
        %v628 = vld [vmem:[%s1 + $0x4f8] sm:$0xff]
        %v629 = vld [vmem:[%s1 + $0x500] sm:$0xff]
        %v630 = vld [vmem:[%s1 + $0x508] sm:$0xff]
        %v631 = vld [vmem:[%s1 + $0x510] sm:$0xff]
        %v632 = vld [vmem:[%s1 + $0x518] sm:$0xff]
        %v633 = vld [vmem:[%s1 + $0x520] sm:$0xff]
        %v634 = vld [vmem:[%s1 + $0x528] sm:$0xff]
        %v635 = vld [vmem:[%s1 + $0x530] sm:$0xff]
        %v636 = vld [vmem:[%s1 + $0x538] sm:$0xff]
        %v637 = vld [vmem:[%s1 + $0x540] sm:$0xff]
        %v638 = vld [vmem:[%s1 + $0x548] sm:$0xff]
        %v639 = vld [vmem:[%s1 + $0x550] sm:$0xff]
        %v640 = vld [vmem:[%s1 + $0x558] sm:$0xff]
        %v641 = vld [vmem:[%s1 + $0x560] sm:$0xff]
        %v642 = vld [vmem:[%s1 + $0x568] sm:$0xff]
        %v643 = vld [vmem:[%s1 + $0x570] sm:$0xff]
        %v644 = vld [vmem:[%s1 + $0x578] sm:$0xff]
        %v645 = vld [vmem:[%s1 + $0x580] sm:$0xff]
        %v646 = vld [vmem:[%s1 + $0x588] sm:$0xff]
        %v647 = vld [vmem:[%s1 + $0x590] sm:$0xff]
        %v648 = vld [vmem:[%s1 + $0x598] sm:$0xff]
        %v649 = vld [vmem:[%s1 + $0x5a0] sm:$0xff]
        %v650 = vld [vmem:[%s1 + $0x5a8] sm:$0xff]
        %v651 = vld [vmem:[%s1 + $0x5b0] sm:$0xff]
        %v652 = vld [vmem:[%s1 + $0x5b8] sm:$0xff]
        %v653 = vld [vmem:[%s1 + $0x5c0] sm:$0xff]
        %v654 = vld [vmem:[%s1 + $0x5c8] sm:$0xff]
        %v655 = vld [vmem:[%s1 + $0x5d0] sm:$0xff]
        %v656 = vld [vmem:[%s1 + $0x5d8] sm:$0xff]
        %v657 = vld [vmem:[%s1 + $0x5e0] sm:$0xff]
        %v658 = vld [vmem:[%s1 + $0x5e8] sm:$0xff]
        %v659 = vld [vmem:[%s1 + $0x5f0] sm:$0xff]
        %v660 = vld [vmem:[%s1 + $0x5f8] sm:$0xff]
        %v661 = vld [vmem:[%s1 + $0x600] sm:$0xff]
        %v662 = vld [vmem:[%s1 + $0x608] sm:$0xff]
        %v663 = vld [vmem:[%s1 + $0x610] sm:$0xff]
        %v664 = vld [vmem:[%s1 + $0x618] sm:$0xff]
        %v665 = vld [vmem:[#allocation2] sm:$0xf]
        %v667 = vlaneseq
        %v668 = vshrl.u32 %v667, 7
        %v669 = vsub.s32 0, %v668
        %v670 = vrot.slane %v665, %v669
        %v671 = vlaneseq
        %v672 = vshrl.u32 %v671, 7
        %v673 = vsub.s32 1, %v672
        %v674 = vrot.slane %v665, %v673
        %v675 = vlaneseq
        %v676 = vshrl.u32 %v675, 7
        %v677 = vsub.s32 2, %v676
        %v678 = vrot.slane %v665, %v677
        %v679 = vlaneseq
        %v680 = vshrl.u32 %v679, 7
        %v681 = vsub.s32 3, %v680
        %v682 = vrot.slane %v665, %v681
        %v751 = vunpack.c.l.b16 %v405
        %v752 = vunpack.c.h.b16 %v405
        %v753 = vunpack.c.l.b16 %v406
        %v754 = vunpack.c.h.b16 %v406
        %v755 = vunpack.c.l.b16 %v407
        %v756 = vunpack.c.h.b16 %v407
        %v757 = vunpack.c.l.b16 %v408
        %v758 = vunpack.c.l.b16 %v409
        %v759 = vunpack.c.h.b16 %v409
        %v760 = vunpack.c.l.b16 %v410
        %v761 = vunpack.c.h.b16 %v410
        %v762 = vunpack.c.l.b16 %v411
        %v763 = vunpack.c.h.b16 %v411
        %v764 = vunpack.c.l.b16 %v412
        %v765 = vunpack.c.l.b16 %v413
        %v766 = vunpack.c.h.b16 %v413
        %v767 = vunpack.c.l.b16 %v414
        %v768 = vunpack.c.h.b16 %v414
        %v769 = vunpack.c.l.b16 %v415
        %v770 = vunpack.c.h.b16 %v415
        %v771 = vunpack.c.l.b16 %v416
        %v772 = vunpack.c.l.b16 %v417
        %v773 = vunpack.c.h.b16 %v417
        %v774 = vunpack.c.l.b16 %v418
        %v775 = vunpack.c.h.b16 %v418
        %v776 = vunpack.c.l.b16 %v419
        %v777 = vunpack.c.h.b16 %v419
        %v778 = vunpack.c.l.b16 %v420
        %v779 = vunpack.c.l.b16 %v421
        %v780 = vunpack.c.h.b16 %v421
        %v781 = vunpack.c.l.b16 %v422
        %v782 = vunpack.c.h.b16 %v422
        %v783 = vunpack.c.l.b16 %v423
        %v784 = vunpack.c.h.b16 %v423
        %v785 = vunpack.c.l.b16 %v424
        %v786 = vunpack.c.l.b16 %v425
        %v787 = vunpack.c.h.b16 %v425
        %v788 = vunpack.c.l.b16 %v426
        %v789 = vunpack.c.h.b16 %v426
        %v790 = vunpack.c.l.b16 %v427
        %v791 = vunpack.c.h.b16 %v427
        %v792 = vunpack.c.l.b16 %v428
        %v793 = vunpack.c.l.b16 %v429
        %v794 = vunpack.c.h.b16 %v429
        %v795 = vunpack.c.l.b16 %v430
        %v796 = vunpack.c.h.b16 %v430
        %v797 = vunpack.c.l.b16 %v431
        %v798 = vunpack.c.h.b16 %v431
        %v799 = vunpack.c.l.b16 %v432
        %v800 = vunpack.c.l.b16 %v433
        %v801 = vunpack.c.h.b16 %v433
        %v802 = vunpack.c.l.b16 %v434
        %v803 = vunpack.c.h.b16 %v434
        %v804 = vunpack.c.l.b16 %v435
        %v805 = vunpack.c.h.b16 %v435
        %v806 = vunpack.c.l.b16 %v436
        %v807 = vunpack.c.l.b16 %v437
        %v808 = vunpack.c.h.b16 %v437
        %v809 = vunpack.c.l.b16 %v438
        %v810 = vunpack.c.h.b16 %v438
        %v811 = vunpack.c.l.b16 %v439
        %v812 = vunpack.c.h.b16 %v439
        %v813 = vunpack.c.l.b16 %v440
        %v814 = vunpack.c.l.b16 %v441
        %v815 = vunpack.c.h.b16 %v441
        %v816 = vunpack.c.l.b16 %v442
        %v817 = vunpack.c.h.b16 %v442
        %v818 = vunpack.c.l.b16 %v443
        %v819 = vunpack.c.h.b16 %v443
        %v820 = vunpack.c.l.b16 %v444
        %v821 = vunpack.c.l.b16 %v445
        %v822 = vunpack.c.h.b16 %v445
        %v823 = vunpack.c.l.b16 %v446
        %v824 = vunpack.c.h.b16 %v446
        %v825 = vunpack.c.l.b16 %v447
        %v826 = vunpack.c.h.b16 %v447
        %v827 = vunpack.c.l.b16 %v448
        %v828 = vunpack.c.l.b16 %v449
        %v829 = vunpack.c.h.b16 %v449
        %v830 = vunpack.c.l.b16 %v450
        %v831 = vunpack.c.h.b16 %v450
        %v832 = vunpack.c.l.b16 %v451
        %v833 = vunpack.c.h.b16 %v451
        %v834 = vunpack.c.l.b16 %v452
        %v835 = vunpack.c.l.b16 %v453
        %v836 = vunpack.c.h.b16 %v453
        %v837 = vunpack.c.l.b16 %v454
        %v838 = vunpack.c.h.b16 %v454
        %v839 = vunpack.c.l.b16 %v455
        %v840 = vunpack.c.h.b16 %v455
        %v841 = vunpack.c.l.b16 %v456
        %v842 = vunpack.c.l.b16 %v457
        %v843 = vunpack.c.h.b16 %v457
        %v844 = vunpack.c.l.b16 %v458
        %v845 = vunpack.c.h.b16 %v458
        %v846 = vunpack.c.l.b16 %v459
        %v847 = vunpack.c.h.b16 %v459
        %v848 = vunpack.c.l.b16 %v460
        %v849 = vunpack.c.l.b16 %v461
        %v850 = vunpack.c.h.b16 %v461
        %v851 = vunpack.c.l.b16 %v462
        %v852 = vunpack.c.h.b16 %v462
        %v853 = vunpack.c.l.b16 %v463
        %v854 = vunpack.c.h.b16 %v463
        %v855 = vunpack.c.l.b16 %v464
        %v856 = vunpack.c.l.b16 %v465
        %v857 = vunpack.c.h.b16 %v465
        %v858 = vunpack.c.l.b16 %v466
        %v859 = vunpack.c.h.b16 %v466
        %v860 = vunpack.c.l.b16 %v467
        %v861 = vunpack.c.h.b16 %v467
        %v862 = vunpack.c.l.b16 %v468
        %v863 = vpack.c.b16 %v758, %v751
        %v864 = vpack.c.b16 %v759, %v752
        %v865 = vpack.c.b16 %v760, %v753
        %v866 = vpack.c.b16 %v761, %v754
        %v867 = vpack.c.b16 %v762, %v755
        %v868 = vpack.c.b16 %v763, %v756
        %v869 = vpack.c.b16 %v764, %v757
        %v870 = vpack.c.b16 %v772, %v765
        %v871 = vpack.c.b16 %v773, %v766
        %v872 = vpack.c.b16 %v774, %v767
        %v873 = vpack.c.b16 %v775, %v768
        %v874 = vpack.c.b16 %v776, %v769
        %v875 = vpack.c.b16 %v777, %v770
        %v876 = vpack.c.b16 %v778, %v771
        %v877 = vpack.c.b16 %v786, %v779
        %v878 = vpack.c.b16 %v787, %v780
        %v879 = vpack.c.b16 %v788, %v781
        %v880 = vpack.c.b16 %v789, %v782
        %v881 = vpack.c.b16 %v790, %v783
        %v882 = vpack.c.b16 %v791, %v784
        %v883 = vpack.c.b16 %v792, %v785
        %v884 = vpack.c.b16 %v800, %v793
        %v885 = vpack.c.b16 %v801, %v794
        %v886 = vpack.c.b16 %v802, %v795
        %v887 = vpack.c.b16 %v803, %v796
        %v888 = vpack.c.b16 %v804, %v797
        %v889 = vpack.c.b16 %v805, %v798
        %v890 = vpack.c.b16 %v806, %v799
        %v891 = vpack.c.b16 %v814, %v807
        %v892 = vpack.c.b16 %v815, %v808
        %v893 = vpack.c.b16 %v816, %v809
        %v894 = vpack.c.b16 %v817, %v810
        %v895 = vpack.c.b16 %v818, %v811
        %v896 = vpack.c.b16 %v819, %v812
        %v897 = vpack.c.b16 %v820, %v813
        %v898 = vpack.c.b16 %v828, %v821
        %v899 = vpack.c.b16 %v829, %v822
        %v900 = vpack.c.b16 %v830, %v823
        %v901 = vpack.c.b16 %v831, %v824
        %v902 = vpack.c.b16 %v832, %v825
        %v903 = vpack.c.b16 %v833, %v826
        %v904 = vpack.c.b16 %v834, %v827
        %v905 = vpack.c.b16 %v842, %v835
        %v906 = vpack.c.b16 %v843, %v836
        %v907 = vpack.c.b16 %v844, %v837
        %v908 = vpack.c.b16 %v845, %v838
        %v909 = vpack.c.b16 %v846, %v839
        %v910 = vpack.c.b16 %v847, %v840
        %v911 = vpack.c.b16 %v848, %v841
        %v912 = vpack.c.b16 %v856, %v849
        %v913 = vpack.c.b16 %v857, %v850
        %v914 = vpack.c.b16 %v858, %v851
        %v915 = vpack.c.b16 %v859, %v852
        %v916 = vpack.c.b16 %v860, %v853
        %v917 = vpack.c.b16 %v861, %v854
        %v918 = vpack.c.b16 %v862, %v855
        %v1163 = vunpack.c.l.b16 %v469
        %v1164 = vunpack.c.h.b16 %v469
        %v1165 = vunpack.c.l.b16 %v470
        %v1166 = vunpack.c.h.b16 %v470
        %v1167 = vunpack.c.l.b16 %v471
        %v1168 = vunpack.c.h.b16 %v471
        %v1169 = vunpack.c.l.b16 %v472
        %v1170 = vunpack.c.h.b16 %v472
        %v1171 = vunpack.c.l.b16 %v473
        %v1172 = vunpack.c.h.b16 %v473
        %v1173 = vunpack.c.l.b16 %v474
        %v1174 = vunpack.c.h.b16 %v474
        %v1175 = vunpack.c.l.b16 %v475
        %v1176 = vunpack.c.h.b16 %v475
        %v1177 = vunpack.c.l.b16 %v476
        %v1178 = vunpack.c.h.b16 %v476
        %v1179 = vunpack.c.l.b16 %v477
        %v1180 = vunpack.c.h.b16 %v477
        %v1181 = vunpack.c.l.b16 %v478
        %v1182 = vunpack.c.h.b16 %v478
        %v1183 = vunpack.c.l.b16 %v479
        %v1184 = vunpack.c.h.b16 %v479
        %v1185 = vunpack.c.l.b16 %v480
        %v1186 = vunpack.c.h.b16 %v480
        %v1187 = vunpack.c.l.b16 %v481
        %v1188 = vunpack.c.h.b16 %v481
        %v1189 = vunpack.c.l.b16 %v482
        %v1190 = vunpack.c.h.b16 %v482
        %v1191 = vunpack.c.l.b16 %v483
        %v1192 = vunpack.c.h.b16 %v483
        %v1193 = vunpack.c.l.b16 %v484
        %v1194 = vunpack.c.h.b16 %v484
        %v1195 = vunpack.c.l.b16 %v485
        %v1196 = vunpack.c.h.b16 %v485
        %v1197 = vunpack.c.l.b16 %v486
        %v1198 = vunpack.c.h.b16 %v486
        %v1199 = vunpack.c.l.b16 %v487
        %v1200 = vunpack.c.h.b16 %v487
        %v1201 = vunpack.c.l.b16 %v488
        %v1202 = vunpack.c.h.b16 %v488
        %v1203 = vunpack.c.l.b16 %v489
        %v1204 = vunpack.c.h.b16 %v489
        %v1205 = vunpack.c.l.b16 %v490
        %v1206 = vunpack.c.h.b16 %v490
        %v1207 = vunpack.c.l.b16 %v491
        %v1208 = vunpack.c.h.b16 %v491
        %v1209 = vunpack.c.l.b16 %v492
        %v1210 = vunpack.c.h.b16 %v492
        %v1211 = vunpack.c.l.b16 %v493
        %v1212 = vunpack.c.h.b16 %v493
        %v1213 = vunpack.c.l.b16 %v494
        %v1214 = vunpack.c.h.b16 %v494
        %v1215 = vunpack.c.l.b16 %v495
        %v1216 = vunpack.c.h.b16 %v495
        %v1217 = vunpack.c.l.b16 %v496
        %v1218 = vunpack.c.h.b16 %v496
        %v1219 = vunpack.c.l.b16 %v497
        %v1220 = vunpack.c.h.b16 %v497
        %v1221 = vunpack.c.l.b16 %v498
        %v1222 = vunpack.c.h.b16 %v498
        %v1223 = vunpack.c.l.b16 %v499
        %v1224 = vunpack.c.h.b16 %v499
        %v1225 = vunpack.c.l.b16 %v500
        %v1226 = vunpack.c.h.b16 %v500
        %v1227 = vunpack.c.l.b16 %v501
        %v1228 = vunpack.c.h.b16 %v501
        %v1229 = vunpack.c.l.b16 %v502
        %v1230 = vunpack.c.h.b16 %v502
        %v1231 = vunpack.c.l.b16 %v503
        %v1232 = vunpack.c.h.b16 %v503
        %v1233 = vunpack.c.l.b16 %v504
        %v1234 = vunpack.c.h.b16 %v504
        %v1235 = vunpack.c.l.b16 %v505
        %v1236 = vunpack.c.h.b16 %v505
        %v1237 = vunpack.c.l.b16 %v506
        %v1238 = vunpack.c.h.b16 %v506
        %v1239 = vunpack.c.l.b16 %v507
        %v1240 = vunpack.c.h.b16 %v507
        %v1241 = vunpack.c.l.b16 %v508
        %v1242 = vunpack.c.h.b16 %v508
        %v1243 = vunpack.c.l.b16 %v509
        %v1244 = vunpack.c.h.b16 %v509
        %v1245 = vunpack.c.l.b16 %v510
        %v1246 = vunpack.c.h.b16 %v510
        %v1247 = vunpack.c.l.b16 %v511
        %v1248 = vunpack.c.h.b16 %v511
        %v1249 = vunpack.c.l.b16 %v512
        %v1250 = vunpack.c.h.b16 %v512
        %v1251 = vunpack.c.l.b16 %v513
        %v1252 = vunpack.c.h.b16 %v513
        %v1253 = vunpack.c.l.b16 %v514
        %v1254 = vunpack.c.h.b16 %v514
        %v1255 = vunpack.c.l.b16 %v515
        %v1256 = vunpack.c.h.b16 %v515
        %v1257 = vunpack.c.l.b16 %v516
        %v1258 = vunpack.c.h.b16 %v516
        %v1259 = vunpack.c.l.b16 %v517
        %v1260 = vunpack.c.h.b16 %v517
        %v1261 = vunpack.c.l.b16 %v518
        %v1262 = vunpack.c.h.b16 %v518
        %v1263 = vunpack.c.l.b16 %v519
        %v1264 = vunpack.c.h.b16 %v519
        %v1265 = vunpack.c.l.b16 %v520
        %v1266 = vunpack.c.h.b16 %v520
        %v1267 = vunpack.c.l.b16 %v521
        %v1268 = vunpack.c.h.b16 %v521
        %v1269 = vunpack.c.l.b16 %v522
        %v1270 = vunpack.c.h.b16 %v522
        %v1271 = vunpack.c.l.b16 %v523
        %v1272 = vunpack.c.h.b16 %v523
        %v1273 = vunpack.c.l.b16 %v524
        %v1274 = vunpack.c.h.b16 %v524
        %v1275 = vunpack.c.l.b16 %v525
        %v1276 = vunpack.c.h.b16 %v525
        %v1277 = vunpack.c.l.b16 %v526
        %v1278 = vunpack.c.h.b16 %v526
        %v1279 = vunpack.c.l.b16 %v527
        %v1280 = vunpack.c.h.b16 %v527
        %v1281 = vunpack.c.l.b16 %v528
        %v1282 = vunpack.c.h.b16 %v528
        %v1283 = vunpack.c.l.b16 %v529
        %v1284 = vunpack.c.h.b16 %v529
        %v1285 = vunpack.c.l.b16 %v530
        %v1286 = vunpack.c.h.b16 %v530
        %v1287 = vunpack.c.l.b16 %v531
        %v1288 = vunpack.c.h.b16 %v531
        %v1289 = vunpack.c.l.b16 %v532
        %v1290 = vunpack.c.h.b16 %v532
        %v1291 = vunpack.c.l.b16 %v533
        %v1292 = vunpack.c.h.b16 %v533
        %v1293 = vunpack.c.l.b16 %v534
        %v1294 = vunpack.c.h.b16 %v534
        %v1295 = vunpack.c.l.b16 %v535
        %v1296 = vunpack.c.h.b16 %v535
        %v1297 = vunpack.c.l.b16 %v536
        %v1298 = vunpack.c.h.b16 %v536
        %v1299 = vunpack.c.l.b16 %v537
        %v1300 = vunpack.c.h.b16 %v537
        %v1301 = vunpack.c.l.b16 %v538
        %v1302 = vunpack.c.h.b16 %v538
        %v1303 = vunpack.c.l.b16 %v539
        %v1304 = vunpack.c.h.b16 %v539
        %v1305 = vunpack.c.l.b16 %v540
        %v1306 = vunpack.c.h.b16 %v540
        %v1307 = vunpack.c.l.b16 %v541
        %v1308 = vunpack.c.h.b16 %v541
        %v1309 = vunpack.c.l.b16 %v542
        %v1310 = vunpack.c.h.b16 %v542
        %v1311 = vunpack.c.l.b16 %v543
        %v1312 = vunpack.c.h.b16 %v543
        %v1313 = vunpack.c.l.b16 %v544
        %v1314 = vunpack.c.h.b16 %v544
        %v1315 = vunpack.c.l.b16 %v545
        %v1316 = vunpack.c.h.b16 %v545
        %v1317 = vunpack.c.l.b16 %v546
        %v1318 = vunpack.c.h.b16 %v546
        %v1319 = vunpack.c.l.b16 %v547
        %v1320 = vunpack.c.h.b16 %v547
        %v1321 = vunpack.c.l.b16 %v548
        %v1322 = vunpack.c.h.b16 %v548
        %v1323 = vunpack.c.l.b16 %v549
        %v1324 = vunpack.c.h.b16 %v549
        %v1325 = vunpack.c.l.b16 %v550
        %v1326 = vunpack.c.h.b16 %v550
        %v1327 = vunpack.c.l.b16 %v551
        %v1328 = vunpack.c.h.b16 %v551
        %v1329 = vunpack.c.l.b16 %v552
        %v1330 = vunpack.c.h.b16 %v552
        %v1331 = vunpack.c.l.b16 %v553
        %v1332 = vunpack.c.h.b16 %v553
        %v1333 = vunpack.c.l.b16 %v554
        %v1334 = vunpack.c.h.b16 %v554
        %v1335 = vunpack.c.l.b16 %v555
        %v1336 = vunpack.c.h.b16 %v555
        %v1337 = vunpack.c.l.b16 %v556
        %v1338 = vunpack.c.h.b16 %v556
        %v1339 = vunpack.c.l.b16 %v557
        %v1340 = vunpack.c.h.b16 %v557
        %v1341 = vunpack.c.l.b16 %v558
        %v1342 = vunpack.c.h.b16 %v558
        %v1343 = vunpack.c.l.b16 %v559
        %v1344 = vunpack.c.h.b16 %v559
        %v1345 = vunpack.c.l.b16 %v560
        %v1346 = vunpack.c.h.b16 %v560
        %v1347 = vunpack.c.l.b16 %v561
        %v1348 = vunpack.c.h.b16 %v561
        %v1349 = vunpack.c.l.b16 %v562
        %v1350 = vunpack.c.h.b16 %v562
        %v1351 = vunpack.c.l.b16 %v563
        %v1352 = vunpack.c.h.b16 %v563
        %v1353 = vunpack.c.l.b16 %v564
        %v1354 = vunpack.c.h.b16 %v564
        %v1355 = vunpack.c.l.b16 %v565
        %v1356 = vunpack.c.h.b16 %v565
        %v1357 = vunpack.c.l.b16 %v566
        %v1358 = vunpack.c.h.b16 %v566
        %v1359 = vunpack.c.l.b16 %v567
        %v1360 = vunpack.c.h.b16 %v567
        %v1361 = vunpack.c.l.b16 %v568
        %v1362 = vunpack.c.h.b16 %v568
        %v1363 = vunpack.c.l.b16 %v569
        %v1364 = vunpack.c.h.b16 %v569
        %v1365 = vunpack.c.l.b16 %v570
        %v1366 = vunpack.c.h.b16 %v570
        %v1367 = vunpack.c.l.b16 %v571
        %v1368 = vunpack.c.h.b16 %v571
        %v1369 = vunpack.c.l.b16 %v572
        %v1370 = vunpack.c.h.b16 %v572
        %v1371 = vunpack.c.l.b16 %v573
        %v1372 = vunpack.c.h.b16 %v573
        %v1373 = vunpack.c.l.b16 %v574
        %v1374 = vunpack.c.h.b16 %v574
        %v1375 = vunpack.c.l.b16 %v575
        %v1376 = vunpack.c.h.b16 %v575
        %v1377 = vunpack.c.l.b16 %v576
        %v1378 = vunpack.c.h.b16 %v576
        %v1379 = vunpack.c.l.b16 %v577
        %v1380 = vunpack.c.h.b16 %v577
        %v1381 = vunpack.c.l.b16 %v578
        %v1382 = vunpack.c.h.b16 %v578
        %v1383 = vunpack.c.l.b16 %v579
        %v1384 = vunpack.c.h.b16 %v579
        %v1385 = vunpack.c.l.b16 %v580
        %v1386 = vunpack.c.h.b16 %v580
        %v1387 = vunpack.c.l.b16 %v581
        %v1388 = vunpack.c.h.b16 %v581
        %v1389 = vunpack.c.l.b16 %v582
        %v1390 = vunpack.c.h.b16 %v582
        %v1391 = vunpack.c.l.b16 %v583
        %v1392 = vunpack.c.h.b16 %v583
        %v1393 = vunpack.c.l.b16 %v584
        %v1394 = vunpack.c.h.b16 %v584
        %v1395 = vunpack.c.l.b16 %v585
        %v1396 = vunpack.c.h.b16 %v585
        %v1397 = vunpack.c.l.b16 %v586
        %v1398 = vunpack.c.h.b16 %v586
        %v1399 = vunpack.c.l.b16 %v587
        %v1400 = vunpack.c.h.b16 %v587
        %v1401 = vunpack.c.l.b16 %v588
        %v1402 = vunpack.c.h.b16 %v588
        %v1403 = vunpack.c.l.b16 %v589
        %v1404 = vunpack.c.h.b16 %v589
        %v1405 = vunpack.c.l.b16 %v590
        %v1406 = vunpack.c.h.b16 %v590
        %v1407 = vunpack.c.l.b16 %v591
        %v1408 = vunpack.c.h.b16 %v591
        %v1409 = vunpack.c.l.b16 %v592
        %v1410 = vunpack.c.h.b16 %v592
        %v1411 = vunpack.c.l.b16 %v593
        %v1412 = vunpack.c.h.b16 %v593
        %v1413 = vunpack.c.l.b16 %v594
        %v1414 = vunpack.c.h.b16 %v594
        %v1415 = vunpack.c.l.b16 %v595
        %v1416 = vunpack.c.h.b16 %v595
        %v1417 = vunpack.c.l.b16 %v596
        %v1418 = vunpack.c.h.b16 %v596
        %v1419 = vunpack.c.l.b16 %v597
        %v1420 = vunpack.c.h.b16 %v597
        %v1421 = vunpack.c.l.b16 %v598
        %v1422 = vunpack.c.h.b16 %v598
        %v1423 = vunpack.c.l.b16 %v599
        %v1424 = vunpack.c.h.b16 %v599
        %v1425 = vunpack.c.l.b16 %v600
        %v1426 = vunpack.c.h.b16 %v600
        %v1427 = vunpack.c.l.b16 %v601
        %v1428 = vunpack.c.h.b16 %v601
        %v1429 = vunpack.c.l.b16 %v602
        %v1430 = vunpack.c.h.b16 %v602
        %v1431 = vunpack.c.l.b16 %v603
        %v1432 = vunpack.c.h.b16 %v603
        %v1433 = vunpack.c.l.b16 %v604
        %v1434 = vunpack.c.h.b16 %v604
        %v1435 = vunpack.c.l.b16 %v605
        %v1436 = vunpack.c.h.b16 %v605
        %v1437 = vunpack.c.l.b16 %v606
        %v1438 = vunpack.c.h.b16 %v606
        %v1439 = vunpack.c.l.b16 %v607
        %v1440 = vunpack.c.h.b16 %v607
        %v1441 = vunpack.c.l.b16 %v608
        %v1442 = vunpack.c.h.b16 %v608
        %v1443 = vunpack.c.l.b16 %v609
        %v1444 = vunpack.c.h.b16 %v609
        %v1445 = vunpack.c.l.b16 %v610
        %v1446 = vunpack.c.h.b16 %v610
        %v1447 = vunpack.c.l.b16 %v611
        %v1448 = vunpack.c.h.b16 %v611
        %v1449 = vunpack.c.l.b16 %v612
        %v1450 = vunpack.c.h.b16 %v612
        %v1451 = vunpack.c.l.b16 %v613
        %v1452 = vunpack.c.h.b16 %v613
        %v1453 = vunpack.c.l.b16 %v614
        %v1454 = vunpack.c.h.b16 %v614
        %v1455 = vunpack.c.l.b16 %v615
        %v1456 = vunpack.c.h.b16 %v615
        %v1457 = vunpack.c.l.b16 %v616
        %v1458 = vunpack.c.h.b16 %v616
        %v1459 = vunpack.c.l.b16 %v617
        %v1460 = vunpack.c.h.b16 %v617
        %v1461 = vunpack.c.l.b16 %v618
        %v1462 = vunpack.c.h.b16 %v618
        %v1463 = vunpack.c.l.b16 %v619
        %v1464 = vunpack.c.h.b16 %v619
        %v1465 = vunpack.c.l.b16 %v620
        %v1466 = vunpack.c.h.b16 %v620
        %v1467 = vunpack.c.l.b16 %v621
        %v1468 = vunpack.c.h.b16 %v621
        %v1469 = vunpack.c.l.b16 %v622
        %v1470 = vunpack.c.h.b16 %v622
        %v1471 = vunpack.c.l.b16 %v623
        %v1472 = vunpack.c.h.b16 %v623
        %v1473 = vunpack.c.l.b16 %v624
        %v1474 = vunpack.c.h.b16 %v624
        %v1475 = vunpack.c.l.b16 %v625
        %v1476 = vunpack.c.h.b16 %v625
        %v1477 = vunpack.c.l.b16 %v626
        %v1478 = vunpack.c.h.b16 %v626
        %v1479 = vunpack.c.l.b16 %v627
        %v1480 = vunpack.c.h.b16 %v627
        %v1481 = vunpack.c.l.b16 %v628
        %v1482 = vunpack.c.h.b16 %v628
        %v1483 = vunpack.c.l.b16 %v629
        %v1484 = vunpack.c.h.b16 %v629
        %v1485 = vunpack.c.l.b16 %v630
        %v1486 = vunpack.c.h.b16 %v630
        %v1487 = vunpack.c.l.b16 %v631
        %v1488 = vunpack.c.h.b16 %v631
        %v1489 = vunpack.c.l.b16 %v632
        %v1490 = vunpack.c.h.b16 %v632
        %v1491 = vunpack.c.l.b16 %v633
        %v1492 = vunpack.c.h.b16 %v633
        %v1493 = vunpack.c.l.b16 %v634
        %v1494 = vunpack.c.h.b16 %v634
        %v1495 = vunpack.c.l.b16 %v635
        %v1496 = vunpack.c.h.b16 %v635
        %v1497 = vunpack.c.l.b16 %v636
        %v1498 = vunpack.c.h.b16 %v636
        %v1499 = vunpack.c.l.b16 %v637
        %v1500 = vunpack.c.h.b16 %v637
        %v1501 = vunpack.c.l.b16 %v638
        %v1502 = vunpack.c.h.b16 %v638
        %v1503 = vunpack.c.l.b16 %v639
        %v1504 = vunpack.c.h.b16 %v639
        %v1505 = vunpack.c.l.b16 %v640
        %v1506 = vunpack.c.h.b16 %v640
        %v1507 = vunpack.c.l.b16 %v641
        %v1508 = vunpack.c.h.b16 %v641
        %v1509 = vunpack.c.l.b16 %v642
        %v1510 = vunpack.c.h.b16 %v642
        %v1511 = vunpack.c.l.b16 %v643
        %v1512 = vunpack.c.h.b16 %v643
        %v1513 = vunpack.c.l.b16 %v644
        %v1514 = vunpack.c.h.b16 %v644
        %v1515 = vunpack.c.l.b16 %v645
        %v1516 = vunpack.c.h.b16 %v645
        %v1517 = vunpack.c.l.b16 %v646
        %v1518 = vunpack.c.h.b16 %v646
        %v1519 = vunpack.c.l.b16 %v647
        %v1520 = vunpack.c.h.b16 %v647
        %v1521 = vunpack.c.l.b16 %v648
        %v1522 = vunpack.c.h.b16 %v648
        %v1523 = vunpack.c.l.b16 %v649
        %v1524 = vunpack.c.h.b16 %v649
        %v1525 = vunpack.c.l.b16 %v650
        %v1526 = vunpack.c.h.b16 %v650
        %v1527 = vunpack.c.l.b16 %v651
        %v1528 = vunpack.c.h.b16 %v651
        %v1529 = vunpack.c.l.b16 %v652
        %v1530 = vunpack.c.h.b16 %v652
        %v1531 = vunpack.c.l.b16 %v653
        %v1532 = vunpack.c.h.b16 %v653
        %v1533 = vunpack.c.l.b16 %v654
        %v1534 = vunpack.c.h.b16 %v654
        %v1535 = vunpack.c.l.b16 %v655
        %v1536 = vunpack.c.h.b16 %v655
        %v1537 = vunpack.c.l.b16 %v656
        %v1538 = vunpack.c.h.b16 %v656
        %v1539 = vunpack.c.l.b16 %v657
        %v1540 = vunpack.c.h.b16 %v657
        %v1541 = vunpack.c.l.b16 %v658
        %v1542 = vunpack.c.h.b16 %v658
        %v1543 = vunpack.c.l.b16 %v659
        %v1544 = vunpack.c.h.b16 %v659
        %v1545 = vunpack.c.l.b16 %v660
        %v1546 = vunpack.c.h.b16 %v660
        %v1547 = vunpack.c.l.b16 %v661
        %v1548 = vunpack.c.h.b16 %v661
        %v1549 = vunpack.c.l.b16 %v662
        %v1550 = vunpack.c.h.b16 %v662
        %v1551 = vunpack.c.l.b16 %v663
        %v1552 = vunpack.c.h.b16 %v663
        %v1553 = vunpack.c.l.b16 %v664
        %v1554 = vunpack.c.h.b16 %v664
        %v1555 = vpack.c.b16 %v1167, %v1163
        %v1556 = vpack.c.b16 %v1168, %v1164
        %v1557 = vpack.c.b16 %v1169, %v1165
        %v1558 = vpack.c.b16 %v1170, %v1166
        %v1559 = vpack.c.b16 %v1175, %v1171
        %v1560 = vpack.c.b16 %v1176, %v1172
        %v1561 = vpack.c.b16 %v1177, %v1173
        %v1562 = vpack.c.b16 %v1178, %v1174
        %v1563 = vpack.c.b16 %v1183, %v1179
        %v1564 = vpack.c.b16 %v1184, %v1180
        %v1565 = vpack.c.b16 %v1185, %v1181
        %v1566 = vpack.c.b16 %v1186, %v1182
        %v1567 = vpack.c.b16 %v1191, %v1187
        %v1568 = vpack.c.b16 %v1192, %v1188
        %v1569 = vpack.c.b16 %v1193, %v1189
        %v1570 = vpack.c.b16 %v1194, %v1190
        %v1571 = vpack.c.b16 %v1199, %v1195
        %v1572 = vpack.c.b16 %v1200, %v1196
        %v1573 = vpack.c.b16 %v1201, %v1197
        %v1574 = vpack.c.b16 %v1202, %v1198
        %v1575 = vpack.c.b16 %v1207, %v1203
        %v1576 = vpack.c.b16 %v1208, %v1204
        %v1577 = vpack.c.b16 %v1209, %v1205
        %v1578 = vpack.c.b16 %v1210, %v1206
        %v1579 = vpack.c.b16 %v1215, %v1211
        %v1580 = vpack.c.b16 %v1216, %v1212
        %v1581 = vpack.c.b16 %v1217, %v1213
        %v1582 = vpack.c.b16 %v1218, %v1214
        %v1583 = vpack.c.b16 %v1223, %v1219
        %v1584 = vpack.c.b16 %v1224, %v1220
        %v1585 = vpack.c.b16 %v1225, %v1221
        %v1586 = vpack.c.b16 %v1226, %v1222
        %v1587 = vpack.c.b16 %v1231, %v1227
        %v1588 = vpack.c.b16 %v1232, %v1228
        %v1589 = vpack.c.b16 %v1233, %v1229
        %v1590 = vpack.c.b16 %v1234, %v1230
        %v1591 = vpack.c.b16 %v1239, %v1235
        %v1592 = vpack.c.b16 %v1240, %v1236
        %v1593 = vpack.c.b16 %v1241, %v1237
        %v1594 = vpack.c.b16 %v1242, %v1238
        %v1595 = vpack.c.b16 %v1247, %v1243
        %v1596 = vpack.c.b16 %v1248, %v1244
        %v1597 = vpack.c.b16 %v1249, %v1245
        %v1598 = vpack.c.b16 %v1250, %v1246
        %v1599 = vpack.c.b16 %v1255, %v1251
        %v1600 = vpack.c.b16 %v1256, %v1252
        %v1601 = vpack.c.b16 %v1257, %v1253
        %v1602 = vpack.c.b16 %v1258, %v1254
        %v1603 = vpack.c.b16 %v1263, %v1259
        %v1604 = vpack.c.b16 %v1264, %v1260
        %v1605 = vpack.c.b16 %v1265, %v1261
        %v1606 = vpack.c.b16 %v1266, %v1262
        %v1607 = vpack.c.b16 %v1271, %v1267
        %v1608 = vpack.c.b16 %v1272, %v1268
        %v1609 = vpack.c.b16 %v1273, %v1269
        %v1610 = vpack.c.b16 %v1274, %v1270
        %v1611 = vpack.c.b16 %v1279, %v1275
        %v1612 = vpack.c.b16 %v1280, %v1276
        %v1613 = vpack.c.b16 %v1281, %v1277
        %v1614 = vpack.c.b16 %v1282, %v1278
        %v1615 = vpack.c.b16 %v1287, %v1283
        %v1616 = vpack.c.b16 %v1288, %v1284
        %v1617 = vpack.c.b16 %v1289, %v1285
        %v1618 = vpack.c.b16 %v1290, %v1286
        %v1619 = vpack.c.b16 %v1295, %v1291
        %v1620 = vpack.c.b16 %v1296, %v1292
        %v1621 = vpack.c.b16 %v1297, %v1293
        %v1622 = vpack.c.b16 %v1298, %v1294
        %v1623 = vpack.c.b16 %v1303, %v1299
        %v1624 = vpack.c.b16 %v1304, %v1300
        %v1625 = vpack.c.b16 %v1305, %v1301
        %v1626 = vpack.c.b16 %v1306, %v1302
        %v1627 = vpack.c.b16 %v1311, %v1307
        %v1628 = vpack.c.b16 %v1312, %v1308
        %v1629 = vpack.c.b16 %v1313, %v1309
        %v1630 = vpack.c.b16 %v1314, %v1310
        %v1631 = vpack.c.b16 %v1319, %v1315
        %v1632 = vpack.c.b16 %v1320, %v1316
        %v1633 = vpack.c.b16 %v1321, %v1317
        %v1634 = vpack.c.b16 %v1322, %v1318
        %v1635 = vpack.c.b16 %v1327, %v1323
        %v1636 = vpack.c.b16 %v1328, %v1324
        %v1637 = vpack.c.b16 %v1329, %v1325
        %v1638 = vpack.c.b16 %v1330, %v1326
        %v1639 = vpack.c.b16 %v1335, %v1331
        %v1640 = vpack.c.b16 %v1336, %v1332
        %v1641 = vpack.c.b16 %v1337, %v1333
        %v1642 = vpack.c.b16 %v1338, %v1334
        %v1643 = vpack.c.b16 %v1343, %v1339
        %v1644 = vpack.c.b16 %v1344, %v1340
        %v1645 = vpack.c.b16 %v1345, %v1341
        %v1646 = vpack.c.b16 %v1346, %v1342
        %v1647 = vpack.c.b16 %v1351, %v1347
        %v1648 = vpack.c.b16 %v1352, %v1348
        %v1649 = vpack.c.b16 %v1353, %v1349
        %v1650 = vpack.c.b16 %v1354, %v1350
        %v1651 = vpack.c.b16 %v1359, %v1355
        %v1652 = vpack.c.b16 %v1360, %v1356
        %v1653 = vpack.c.b16 %v1361, %v1357
        %v1654 = vpack.c.b16 %v1362, %v1358
        %v1655 = vpack.c.b16 %v1367, %v1363
        %v1656 = vpack.c.b16 %v1368, %v1364
        %v1657 = vpack.c.b16 %v1369, %v1365
        %v1658 = vpack.c.b16 %v1370, %v1366
        %v1659 = vpack.c.b16 %v1375, %v1371
        %v1660 = vpack.c.b16 %v1376, %v1372
        %v1661 = vpack.c.b16 %v1377, %v1373
        %v1662 = vpack.c.b16 %v1378, %v1374
        %v1663 = vpack.c.b16 %v1383, %v1379
        %v1664 = vpack.c.b16 %v1384, %v1380
        %v1665 = vpack.c.b16 %v1385, %v1381
        %v1666 = vpack.c.b16 %v1386, %v1382
        %v1667 = vpack.c.b16 %v1391, %v1387
        %v1668 = vpack.c.b16 %v1392, %v1388
        %v1669 = vpack.c.b16 %v1393, %v1389
        %v1670 = vpack.c.b16 %v1394, %v1390
        %v1671 = vpack.c.b16 %v1399, %v1395
        %v1672 = vpack.c.b16 %v1400, %v1396
        %v1673 = vpack.c.b16 %v1401, %v1397
        %v1674 = vpack.c.b16 %v1402, %v1398
        %v1675 = vpack.c.b16 %v1407, %v1403
        %v1676 = vpack.c.b16 %v1408, %v1404
        %v1677 = vpack.c.b16 %v1409, %v1405
        %v1678 = vpack.c.b16 %v1410, %v1406
        %v1679 = vpack.c.b16 %v1415, %v1411
        %v1680 = vpack.c.b16 %v1416, %v1412
        %v1681 = vpack.c.b16 %v1417, %v1413
        %v1682 = vpack.c.b16 %v1418, %v1414
        %v1683 = vpack.c.b16 %v1423, %v1419
        %v1684 = vpack.c.b16 %v1424, %v1420
        %v1685 = vpack.c.b16 %v1425, %v1421
        %v1686 = vpack.c.b16 %v1426, %v1422
        %v1687 = vpack.c.b16 %v1431, %v1427
        %v1688 = vpack.c.b16 %v1432, %v1428
        %v1689 = vpack.c.b16 %v1433, %v1429
        %v1690 = vpack.c.b16 %v1434, %v1430
        %v1691 = vpack.c.b16 %v1439, %v1435
        %v1692 = vpack.c.b16 %v1440, %v1436
        %v1693 = vpack.c.b16 %v1441, %v1437
        %v1694 = vpack.c.b16 %v1442, %v1438
        %v1695 = vpack.c.b16 %v1447, %v1443
        %v1696 = vpack.c.b16 %v1448, %v1444
        %v1697 = vpack.c.b16 %v1449, %v1445
        %v1698 = vpack.c.b16 %v1450, %v1446
        %v1699 = vpack.c.b16 %v1455, %v1451
        %v1700 = vpack.c.b16 %v1456, %v1452
        %v1701 = vpack.c.b16 %v1457, %v1453
        %v1702 = vpack.c.b16 %v1458, %v1454
        %v1703 = vpack.c.b16 %v1463, %v1459
        %v1704 = vpack.c.b16 %v1464, %v1460
        %v1705 = vpack.c.b16 %v1465, %v1461
        %v1706 = vpack.c.b16 %v1466, %v1462
        %v1707 = vpack.c.b16 %v1471, %v1467
        %v1708 = vpack.c.b16 %v1472, %v1468
        %v1709 = vpack.c.b16 %v1473, %v1469
        %v1710 = vpack.c.b16 %v1474, %v1470
        %v1711 = vpack.c.b16 %v1479, %v1475
        %v1712 = vpack.c.b16 %v1480, %v1476
        %v1713 = vpack.c.b16 %v1481, %v1477
        %v1714 = vpack.c.b16 %v1482, %v1478
        %v1715 = vpack.c.b16 %v1487, %v1483
        %v1716 = vpack.c.b16 %v1488, %v1484
        %v1717 = vpack.c.b16 %v1489, %v1485
        %v1718 = vpack.c.b16 %v1490, %v1486
        %v1719 = vpack.c.b16 %v1495, %v1491
        %v1720 = vpack.c.b16 %v1496, %v1492
        %v1721 = vpack.c.b16 %v1497, %v1493
        %v1722 = vpack.c.b16 %v1498, %v1494
        %v1723 = vpack.c.b16 %v1503, %v1499
        %v1724 = vpack.c.b16 %v1504, %v1500
        %v1725 = vpack.c.b16 %v1505, %v1501
        %v1726 = vpack.c.b16 %v1506, %v1502
        %v1727 = vpack.c.b16 %v1511, %v1507
        %v1728 = vpack.c.b16 %v1512, %v1508
        %v1729 = vpack.c.b16 %v1513, %v1509
        %v1730 = vpack.c.b16 %v1514, %v1510
        %v1731 = vpack.c.b16 %v1519, %v1515
        %v1732 = vpack.c.b16 %v1520, %v1516
        %v1733 = vpack.c.b16 %v1521, %v1517
        %v1734 = vpack.c.b16 %v1522, %v1518
        %v1735 = vpack.c.b16 %v1527, %v1523
        %v1736 = vpack.c.b16 %v1528, %v1524
        %v1737 = vpack.c.b16 %v1529, %v1525
        %v1738 = vpack.c.b16 %v1530, %v1526
        %v1739 = vpack.c.b16 %v1535, %v1531
        %v1740 = vpack.c.b16 %v1536, %v1532
        %v1741 = vpack.c.b16 %v1537, %v1533
        %v1742 = vpack.c.b16 %v1538, %v1534
        %v1743 = vpack.c.b16 %v1543, %v1539
        %v1744 = vpack.c.b16 %v1544, %v1540
        %v1745 = vpack.c.b16 %v1545, %v1541
        %v1746 = vpack.c.b16 %v1546, %v1542
        %v1747 = vpack.c.b16 %v1551, %v1547
        %v1748 = vpack.c.b16 %v1552, %v1548
        %v1749 = vpack.c.b16 %v1553, %v1549
        %v1750 = vpack.c.b16 %v1554, %v1550
        %vm1947 = vcmask 130048
        %v1949 = vsel %vm1947, %v869, 0
        %v1952 = vsel %vm1947, %v876, 0
        %v1955 = vsel %vm1947, %v883, 0
        %v1958 = vsel %vm1947, %v890, 0
        %v1961 = vsel %vm1947, %v897, 0
        %v1964 = vsel %vm1947, %v904, 0
        %v1967 = vsel %vm1947, %v911, 0
        %v1970 = vsel %vm1947, %v918, 0
        %1972 = vmatprep.subr.bf16.mxu0 %v1556
        %1973 = vmatpush1.bf16.msra.mxu0 %v1555
        %1974 = vmatprep.subr.bf16.mxu0 %v1560
        %1975 = vmatpush1.bf16.msra.mxu0 %v1559
        %1976 = vmatprep.subr.bf16.mxu0 %v1564
        %1977 = vmatpush1.bf16.msra.mxu0 %v1563
        %1978 = vmatprep.subr.bf16.mxu0 %v1568
        %1979 = vmatpush1.bf16.msra.mxu0 %v1567
        %1980 = vmatprep.subr.bf16.mxu0 %v1572
        %1981 = vmatpush1.bf16.msra.mxu0 %v1571
        %1982 = vmatprep.subr.bf16.mxu0 %v1576
        %1983 = vmatpush1.bf16.msra.mxu0 %v1575
        %1984 = vmatprep.subr.bf16.mxu0 %v1580
        %1985 = vmatpush1.bf16.msra.mxu0 %v1579
        %1986 = vmatprep.subr.bf16.mxu0 %v1584
        %1987 = vmatpush1.bf16.msra.mxu0 %v1583
        %1988 = vmatprep.subr.bf16.mxu0 %v1588
        %1989 = vmatpush1.bf16.msra.mxu0 %v1587
        %1990 = vmatprep.subr.bf16.mxu0 %v1592
        %1991 = vmatpush1.bf16.msra.mxu0 %v1591
        %1992 = vmatprep.subr.bf16.mxu0 %v1596
        %1993 = vmatpush1.bf16.msra.mxu0 %v1595
        %1994 = vmatprep.subr.bf16.mxu0 %v1600
        %1995 = vmatpush1.bf16.msra.mxu0 %v1599
        %1996 = vmatprep.subr.bf16.mxu0 %v1604
        %1997 = vmatpush1.bf16.msra.mxu0 %v1603
        %1998 = vmatprep.subr.bf16.mxu0 %v1608
        %1999 = vmatpush1.bf16.msra.mxu0 %v1607
        %2000 = vmatprep.subr.bf16.mxu0 %v1612
        %2001 = vmatpush1.bf16.msra.mxu0 %v1611
        %2002 = vmatprep.subr.bf16.mxu0 %v1616
        %2003 = vmatpush1.bf16.msra.mxu0 %v1615
        %2004 = vmatprep.mubr.bf16.mxu0 %v864
        %2005 = vmatmul.mubr.bf16.gmra.mrb[0].mxu0 %v863
        %v2006 = vpop.f32.mrb[0].mxu0
        %v2007 = vadd.f32 %v670, %v2006
        %v2008 = vpop.f32.mrb[0].mxu0
        %v2009 = vadd.f32 %v674, %v2008
        %v2010 = vpop.f32.mrb[0].mxu0
        %v2011 = vadd.f32 %v670, %v2010
        %v2012 = vpop.f32.mrb[0].mxu0
        %v2013 = vadd.f32 %v674, %v2012
        %2014 = vmatprep.mubr.bf16.mxu0 %v871
        %2015 = vmatmul.mubr.bf16.gmra.mrb[0].mxu0 %v870
        %v2016 = vpop.f32.mrb[0].mxu0
        %v2017 = vadd.f32 %v670, %v2016
        %v2018 = vpop.f32.mrb[0].mxu0
        %v2019 = vadd.f32 %v674, %v2018
        %v2020 = vpop.f32.mrb[0].mxu0
        %v2021 = vadd.f32 %v670, %v2020
        %v2022 = vpop.f32.mrb[0].mxu0
        %v2023 = vadd.f32 %v674, %v2022
        %2024 = vmatprep.mubr.bf16.mxu0 %v878
        %2025 = vmatmul.mubr.bf16.gmra.mrb[0].mxu0 %v877
        %v2026 = vpop.f32.mrb[0].mxu0
        %v2027 = vadd.f32 %v670, %v2026
        %v2028 = vpop.f32.mrb[0].mxu0
        %v2029 = vadd.f32 %v674, %v2028
        %v2030 = vpop.f32.mrb[0].mxu0
        %v2031 = vadd.f32 %v670, %v2030
        %v2032 = vpop.f32.mrb[0].mxu0
        %v2033 = vadd.f32 %v674, %v2032
        %2034 = vmatprep.mubr.bf16.mxu0 %v885
        %2035 = vmatmul.mubr.bf16.gmra.mrb[0].mxu0 %v884
        %v2036 = vpop.f32.mrb[0].mxu0
        %v2037 = vadd.f32 %v670, %v2036
        %v2038 = vpop.f32.mrb[0].mxu0
        %v2039 = vadd.f32 %v674, %v2038
        %v2040 = vpop.f32.mrb[0].mxu0
        %v2041 = vadd.f32 %v670, %v2040
        %v2042 = vpop.f32.mrb[0].mxu0
        %v2043 = vadd.f32 %v674, %v2042
        %2044 = vmatprep.mubr.bf16.mxu0 %v892
        %2045 = vmatmul.mubr.bf16.gmra.mrb[0].mxu0 %v891
        %v2046 = vpop.f32.mrb[0].mxu0
        %v2047 = vadd.f32 %v670, %v2046
        %v2048 = vpop.f32.mrb[0].mxu0
        %v2049 = vadd.f32 %v674, %v2048
        %v2050 = vpop.f32.mrb[0].mxu0
        %v2051 = vadd.f32 %v670, %v2050
        %v2052 = vpop.f32.mrb[0].mxu0
        %v2053 = vadd.f32 %v674, %v2052
        %2054 = vmatprep.mubr.bf16.mxu0 %v899
        %2055 = vmatmul.mubr.bf16.gmra.mrb[0].mxu0 %v898
        %v2056 = vpop.f32.mrb[0].mxu0
        %v2057 = vadd.f32 %v670, %v2056
        %v2058 = vpop.f32.mrb[0].mxu0
        %v2059 = vadd.f32 %v674, %v2058
        %v2060 = vpop.f32.mrb[0].mxu0
        %v2061 = vadd.f32 %v670, %v2060
        %v2062 = vpop.f32.mrb[0].mxu0
        %v2063 = vadd.f32 %v674, %v2062
        %2064 = vmatprep.mubr.bf16.mxu0 %v906
        %2065 = vmatmul.mubr.bf16.gmra.mrb[0].mxu0 %v905
        %v2066 = vpop.f32.mrb[0].mxu0
        %v2067 = vadd.f32 %v670, %v2066
        %v2068 = vpop.f32.mrb[0].mxu0
        %v2069 = vadd.f32 %v674, %v2068
        %v2070 = vpop.f32.mrb[0].mxu0
        %v2071 = vadd.f32 %v670, %v2070
        %v2072 = vpop.f32.mrb[0].mxu0
        %v2073 = vadd.f32 %v674, %v2072
        %2074 = vmatprep.mubr.bf16.mxu0 %v913
        %2075 = vmatmul.mubr.bf16.gmra.mrb[0].mxu0 %v912
        %v2076 = vpop.f32.mrb[0].mxu0
        %v2077 = vadd.f32 %v670, %v2076
        %v2078 = vpop.f32.mrb[0].mxu0
        %v2079 = vadd.f32 %v674, %v2078
        %v2080 = vpop.f32.mrb[0].mxu0
        %v2081 = vadd.f32 %v670, %v2080
        %v2082 = vpop.f32.mrb[0].mxu0
        %v2083 = vadd.f32 %v674, %v2082
        %2084 = vdwg.mxu0
        %2085 = vmatprep.subr.bf16.mxu0 %v1620
        %2086 = vmatpush1.bf16.msra.mxu0 %v1619
        %2087 = vmatprep.subr.bf16.mxu0 %v1624
        %2088 = vmatpush1.bf16.msra.mxu0 %v1623
        %2089 = vmatprep.subr.bf16.mxu0 %v1628
        %2090 = vmatpush1.bf16.msra.mxu0 %v1627
        %2091 = vmatprep.subr.bf16.mxu0 %v1632
        %2092 = vmatpush1.bf16.msra.mxu0 %v1631
        %2093 = vmatprep.subr.bf16.mxu0 %v1636
        %2094 = vmatpush1.bf16.msra.mxu0 %v1635
        %2095 = vmatprep.subr.bf16.mxu0 %v1640
        %2096 = vmatpush1.bf16.msra.mxu0 %v1639
        %2097 = vmatprep.subr.bf16.mxu0 %v1644
        %2098 = vmatpush1.bf16.msra.mxu0 %v1643
        %2099 = vmatprep.subr.bf16.mxu0 %v1648
        %2100 = vmatpush1.bf16.msra.mxu0 %v1647
        %2101 = vmatprep.subr.bf16.mxu0 %v1652
        %2102 = vmatpush1.bf16.msra.mxu0 %v1651
        %2103 = vmatprep.subr.bf16.mxu0 %v1656
        %2104 = vmatpush1.bf16.msra.mxu0 %v1655
        %2105 = vmatprep.subr.bf16.mxu0 %v1660
        %2106 = vmatpush1.bf16.msra.mxu0 %v1659
        %2107 = vmatprep.subr.bf16.mxu0 %v1664
        %2108 = vmatpush1.bf16.msra.mxu0 %v1663
        %2109 = vmatprep.subr.bf16.mxu0 %v1668
        %2110 = vmatpush1.bf16.msra.mxu0 %v1667
        %2111 = vmatprep.subr.bf16.mxu0 %v1672
        %2112 = vmatpush1.bf16.msra.mxu0 %v1671
        %2113 = vmatprep.subr.bf16.mxu0 %v1676
        %2114 = vmatpush1.bf16.msra.mxu0 %v1675
        %2115 = vmatprep.subr.bf16.mxu0 %v1680
        %2116 = vmatpush1.bf16.msra.mxu0 %v1679
        %2117 = vmatprep.mubr.bf16.mxu0 %v866
        %2118 = vmatmul.mubr.bf16.gmra.mrb[0].mxu0 %v865
        %v2119 = vpop.f32.mrb[0].mxu0
        %v2120 = vadd.f32 %v2007, %v2119
        %v2121 = vpop.f32.mrb[0].mxu0
        %v2122 = vadd.f32 %v2009, %v2121
        %v2123 = vpop.f32.mrb[0].mxu0
        %v2124 = vadd.f32 %v2011, %v2123
        %v2125 = vpop.f32.mrb[0].mxu0
        %v2126 = vadd.f32 %v2013, %v2125
        %2127 = vmatprep.mubr.bf16.mxu0 %v873
        %2128 = vmatmul.mubr.bf16.gmra.mrb[0].mxu0 %v872
        %v2129 = vpop.f32.mrb[0].mxu0
        %v2130 = vadd.f32 %v2017, %v2129
        %v2131 = vpop.f32.mrb[0].mxu0
        %v2132 = vadd.f32 %v2019, %v2131
        %v2133 = vpop.f32.mrb[0].mxu0
        %v2134 = vadd.f32 %v2021, %v2133
        %v2135 = vpop.f32.mrb[0].mxu0
        %v2136 = vadd.f32 %v2023, %v2135
        %2137 = vmatprep.mubr.bf16.mxu0 %v880
        %2138 = vmatmul.mubr.bf16.gmra.mrb[0].mxu0 %v879
        %v2139 = vpop.f32.mrb[0].mxu0
        %v2140 = vadd.f32 %v2027, %v2139
        %v2141 = vpop.f32.mrb[0].mxu0
        %v2142 = vadd.f32 %v2029, %v2141
        %v2143 = vpop.f32.mrb[0].mxu0
        %v2144 = vadd.f32 %v2031, %v2143
        %v2145 = vpop.f32.mrb[0].mxu0
        %v2146 = vadd.f32 %v2033, %v2145
        %2147 = vmatprep.mubr.bf16.mxu0 %v887
        %2148 = vmatmul.mubr.bf16.gmra.mrb[0].mxu0 %v886
        %v2149 = vpop.f32.mrb[0].mxu0
        %v2150 = vadd.f32 %v2037, %v2149
        %v2151 = vpop.f32.mrb[0].mxu0
        %v2152 = vadd.f32 %v2039, %v2151
        %v2153 = vpop.f32.mrb[0].mxu0
        %v2154 = vadd.f32 %v2041, %v2153
        %v2155 = vpop.f32.mrb[0].mxu0
        %v2156 = vadd.f32 %v2043, %v2155
        %2157 = vmatprep.mubr.bf16.mxu0 %v894
        %2158 = vmatmul.mubr.bf16.gmra.mrb[0].mxu0 %v893
        %v2159 = vpop.f32.mrb[0].mxu0
        %v2160 = vadd.f32 %v2047, %v2159
        %v2161 = vpop.f32.mrb[0].mxu0
        %v2162 = vadd.f32 %v2049, %v2161
        %v2163 = vpop.f32.mrb[0].mxu0
        %v2164 = vadd.f32 %v2051, %v2163
        %v2165 = vpop.f32.mrb[0].mxu0
        %v2166 = vadd.f32 %v2053, %v2165
        %2167 = vmatprep.mubr.bf16.mxu0 %v901
        %2168 = vmatmul.mubr.bf16.gmra.mrb[0].mxu0 %v900
        %v2169 = vpop.f32.mrb[0].mxu0
        %v2170 = vadd.f32 %v2057, %v2169
        %v2171 = vpop.f32.mrb[0].mxu0
        %v2172 = vadd.f32 %v2059, %v2171
        %v2173 = vpop.f32.mrb[0].mxu0
        %v2174 = vadd.f32 %v2061, %v2173
        %v2175 = vpop.f32.mrb[0].mxu0
        %v2176 = vadd.f32 %v2063, %v2175
        %2177 = vmatprep.mubr.bf16.mxu0 %v908
        %2178 = vmatmul.mubr.bf16.gmra.mrb[0].mxu0 %v907
        %v2179 = vpop.f32.mrb[0].mxu0
        %v2180 = vadd.f32 %v2067, %v2179
        %v2181 = vpop.f32.mrb[0].mxu0
        %v2182 = vadd.f32 %v2069, %v2181
        %v2183 = vpop.f32.mrb[0].mxu0
        %v2184 = vadd.f32 %v2071, %v2183
        %v2185 = vpop.f32.mrb[0].mxu0
        %v2186 = vadd.f32 %v2073, %v2185
        %2187 = vmatprep.mubr.bf16.mxu0 %v915
        %2188 = vmatmul.mubr.bf16.gmra.mrb[0].mxu0 %v914
        %v2189 = vpop.f32.mrb[0].mxu0
        %v2190 = vadd.f32 %v2077, %v2189
        %v2191 = vpop.f32.mrb[0].mxu0
        %v2192 = vadd.f32 %v2079, %v2191
        %v2193 = vpop.f32.mrb[0].mxu0
        %v2194 = vadd.f32 %v2081, %v2193
        %v2195 = vpop.f32.mrb[0].mxu0
        %v2196 = vadd.f32 %v2083, %v2195
        %2197 = vdwg.mxu0
        %2198 = vmatprep.subr.bf16.mxu0 %v1684
        %2199 = vmatpush1.bf16.msra.mxu0 %v1683
        %2200 = vmatprep.subr.bf16.mxu0 %v1688
        %2201 = vmatpush1.bf16.msra.mxu0 %v1687
        %2202 = vmatprep.subr.bf16.mxu0 %v1692
        %2203 = vmatpush1.bf16.msra.mxu0 %v1691
        %2204 = vmatprep.subr.bf16.mxu0 %v1696
        %2205 = vmatpush1.bf16.msra.mxu0 %v1695
        %2206 = vmatprep.subr.bf16.mxu0 %v1700
        %2207 = vmatpush1.bf16.msra.mxu0 %v1699
        %2208 = vmatprep.subr.bf16.mxu0 %v1704
        %2209 = vmatpush1.bf16.msra.mxu0 %v1703
        %2210 = vmatprep.subr.bf16.mxu0 %v1708
        %2211 = vmatpush1.bf16.msra.mxu0 %v1707
        %2212 = vmatprep.subr.bf16.mxu0 %v1712
        %2213 = vmatpush1.bf16.msra.mxu0 %v1711
        %2214 = vmatprep.subr.bf16.mxu0 %v1716
        %2215 = vmatpush1.bf16.msra.mxu0 %v1715
        %2216 = vmatprep.subr.bf16.mxu0 %v1720
        %2217 = vmatpush1.bf16.msra.mxu0 %v1719
        %2218 = vmatprep.subr.bf16.mxu0 %v1724
        %2219 = vmatpush1.bf16.msra.mxu0 %v1723
        %2220 = vmatprep.subr.bf16.mxu0 %v1728
        %2221 = vmatpush1.bf16.msra.mxu0 %v1727
        %2222 = vmatprep.subr.bf16.mxu0 %v1732
        %2223 = vmatpush1.bf16.msra.mxu0 %v1731
        %2224 = vmatprep.subr.bf16.mxu0 %v1736
        %2225 = vmatpush1.bf16.msra.mxu0 %v1735
        %2226 = vmatprep.subr.bf16.mxu0 %v1740
        %2227 = vmatpush1.bf16.msra.mxu0 %v1739
        %2228 = vmatprep.subr.bf16.mxu0 %v1744
        %2229 = vmatpush1.bf16.msra.mxu0 %v1743
        %2230 = vmatprep.mubr.bf16.mxu0 %v868
        %2231 = vmatmul.mubr.bf16.gmra.mrb[0].mxu0 %v867
        %v2232 = vpop.f32.mrb[0].mxu0
        %v2233 = vadd.f32 %v2120, %v2232
        %v2234 = vpop.f32.mrb[0].mxu0
        %v2235 = vadd.f32 %v2122, %v2234
        %v2236 = vpop.f32.mrb[0].mxu0
        %v2237 = vadd.f32 %v2124, %v2236
        %v2238 = vpop.f32.mrb[0].mxu0
        %v2239 = vadd.f32 %v2126, %v2238
        %2240 = vmatprep.mubr.bf16.mxu0 %v875
        %2241 = vmatmul.mubr.bf16.gmra.mrb[0].mxu0 %v874
        %v2242 = vpop.f32.mrb[0].mxu0
        %v2243 = vadd.f32 %v2130, %v2242
        %v2244 = vpop.f32.mrb[0].mxu0
        %v2245 = vadd.f32 %v2132, %v2244
        %v2246 = vpop.f32.mrb[0].mxu0
        %v2247 = vadd.f32 %v2134, %v2246
        %v2248 = vpop.f32.mrb[0].mxu0
        %v2249 = vadd.f32 %v2136, %v2248
        %2250 = vmatprep.mubr.bf16.mxu0 %v882
        %2251 = vmatmul.mubr.bf16.gmra.mrb[0].mxu0 %v881
        %v2252 = vpop.f32.mrb[0].mxu0
        %v2253 = vadd.f32 %v2140, %v2252
        %v2254 = vpop.f32.mrb[0].mxu0
        %v2255 = vadd.f32 %v2142, %v2254
        %v2256 = vpop.f32.mrb[0].mxu0
        %v2257 = vadd.f32 %v2144, %v2256
        %v2258 = vpop.f32.mrb[0].mxu0
        %v2259 = vadd.f32 %v2146, %v2258
        %2260 = vmatprep.mubr.bf16.mxu0 %v889
        %2261 = vmatmul.mubr.bf16.gmra.mrb[0].mxu0 %v888
        %v2262 = vpop.f32.mrb[0].mxu0
        %v2263 = vadd.f32 %v2150, %v2262
        %v2264 = vpop.f32.mrb[0].mxu0
        %v2265 = vadd.f32 %v2152, %v2264
        %v2266 = vpop.f32.mrb[0].mxu0
        %v2267 = vadd.f32 %v2154, %v2266
        %v2268 = vpop.f32.mrb[0].mxu0
        %v2269 = vadd.f32 %v2156, %v2268
        %2270 = vmatprep.mubr.bf16.mxu0 %v896
        %2271 = vmatmul.mubr.bf16.gmra.mrb[0].mxu0 %v895
        %v2272 = vpop.f32.mrb[0].mxu0
        %v2273 = vadd.f32 %v2160, %v2272
        %v2274 = vpop.f32.mrb[0].mxu0
        %v2275 = vadd.f32 %v2162, %v2274
        %v2276 = vpop.f32.mrb[0].mxu0
        %v2277 = vadd.f32 %v2164, %v2276
        %v2278 = vpop.f32.mrb[0].mxu0
        %v2279 = vadd.f32 %v2166, %v2278
        %2280 = vmatprep.mubr.bf16.mxu0 %v903
        %2281 = vmatmul.mubr.bf16.gmra.mrb[0].mxu0 %v902
        %v2282 = vpop.f32.mrb[0].mxu0
        %v2283 = vadd.f32 %v2170, %v2282
        %v2284 = vpop.f32.mrb[0].mxu0
        %v2285 = vadd.f32 %v2172, %v2284
        %v2286 = vpop.f32.mrb[0].mxu0
        %v2287 = vadd.f32 %v2174, %v2286
        %v2288 = vpop.f32.mrb[0].mxu0
        %v2289 = vadd.f32 %v2176, %v2288
        %2290 = vmatprep.mubr.bf16.mxu0 %v910
        %2291 = vmatmul.mubr.bf16.gmra.mrb[0].mxu0 %v909
        %v2292 = vpop.f32.mrb[0].mxu0
        %v2293 = vadd.f32 %v2180, %v2292
        %v2294 = vpop.f32.mrb[0].mxu0
        %v2295 = vadd.f32 %v2182, %v2294
        %v2296 = vpop.f32.mrb[0].mxu0
        %v2297 = vadd.f32 %v2184, %v2296
        %v2298 = vpop.f32.mrb[0].mxu0
        %v2299 = vadd.f32 %v2186, %v2298
        %2300 = vmatprep.mubr.bf16.mxu0 %v917
        %2301 = vmatmul.mubr.bf16.gmra.mrb[0].mxu0 %v916
        %v2302 = vpop.f32.mrb[0].mxu0
        %v2303 = vadd.f32 %v2190, %v2302
        %v2304 = vpop.f32.mrb[0].mxu0
        %v2305 = vadd.f32 %v2192, %v2304
        %v2306 = vpop.f32.mrb[0].mxu0
        %v2307 = vadd.f32 %v2194, %v2306
        %v2308 = vpop.f32.mrb[0].mxu0
        %v2309 = vadd.f32 %v2196, %v2308
        %2310 = vdwg.mxu0
        %2311 = vmatprep.subr.bf16.mxu0 %v1748
        %2312 = vmatpush1.bf16.msra.mxu0 %v1747
        %2313 = vmatprep.subr.bf16.mxu0 0
        %2314 = vmatpush1.bf16.msra.mxu0 0
        %2315 = vmatprep.subr.bf16.mxu0 0
        %2316 = vmatpush1.bf16.msra.mxu0 0
        %2317 = vmatprep.subr.bf16.mxu0 0
        %2318 = vmatpush1.bf16.msra.mxu0 0
        %2319 = vmatprep.subr.bf16.mxu0 0
        %2320 = vmatpush1.bf16.msra.mxu0 0
        %2321 = vmatprep.subr.bf16.mxu0 0
        %2322 = vmatpush1.bf16.msra.mxu0 0
        %2323 = vmatprep.subr.bf16.mxu0 0
        %2324 = vmatpush1.bf16.msra.mxu0 0
        %2325 = vmatprep.subr.bf16.mxu0 0
        %2326 = vmatpush1.bf16.msra.mxu0 0
        %2327 = vmatprep.subr.bf16.mxu0 0
        %2328 = vmatpush1.bf16.msra.mxu0 0
        %2329 = vmatprep.subr.bf16.mxu0 0
        %2330 = vmatpush1.bf16.msra.mxu0 0
        %2331 = vmatprep.subr.bf16.mxu0 0
        %2332 = vmatpush1.bf16.msra.mxu0 0
        %2333 = vmatprep.subr.bf16.mxu0 0
        %2334 = vmatpush1.bf16.msra.mxu0 0
        %2335 = vmatprep.subr.bf16.mxu0 0
        %2336 = vmatpush1.bf16.msra.mxu0 0
        %2337 = vmatprep.subr.bf16.mxu0 0
        %2338 = vmatpush1.bf16.msra.mxu0 0
        %2339 = vmatprep.subr.bf16.mxu0 0
        %2340 = vmatpush1.bf16.msra.mxu0 0
        %2341 = vmatprep.subr.bf16.mxu0 0
        %2342 = vmatpush1.bf16.msra.mxu0 0
        %2343 = vmatprep.mubr.bf16.mxu0 0
        %2344 = vmatmul.mubr.bf16.gmra.mrb[0].mxu0 %v1949
        %v2345 = vpop.f32.mrb[0].mxu0
        %v2346 = vadd.f32 %v2233, %v2345
        %v2347 = vpop.f32.mrb[0].mxu0
        %v2348 = vadd.f32 %v2235, %v2347
        %v2349 = vpop.f32.mrb[0].mxu0
        %v2350 = vadd.f32 %v2237, %v2349
        %v2351 = vpop.f32.mrb[0].mxu0
        %v2352 = vadd.f32 %v2239, %v2351
        %2353 = vmatprep.mubr.bf16.mxu0 0
        %2354 = vmatmul.mubr.bf16.gmra.mrb[0].mxu0 %v1952
        %v2355 = vpop.f32.mrb[0].mxu0
        %v2356 = vadd.f32 %v2243, %v2355
        %v2357 = vpop.f32.mrb[0].mxu0
        %v2358 = vadd.f32 %v2245, %v2357
        %v2359 = vpop.f32.mrb[0].mxu0
        %v2360 = vadd.f32 %v2247, %v2359
        %v2361 = vpop.f32.mrb[0].mxu0
        %v2362 = vadd.f32 %v2249, %v2361
        %2363 = vmatprep.mubr.bf16.mxu0 0
        %2364 = vmatmul.mubr.bf16.gmra.mrb[0].mxu0 %v1955
        %v2365 = vpop.f32.mrb[0].mxu0
        %v2366 = vadd.f32 %v2253, %v2365
        %v2367 = vpop.f32.mrb[0].mxu0
        %v2368 = vadd.f32 %v2255, %v2367
        %v2369 = vpop.f32.mrb[0].mxu0
        %v2370 = vadd.f32 %v2257, %v2369
        %v2371 = vpop.f32.mrb[0].mxu0
        %v2372 = vadd.f32 %v2259, %v2371
        %2373 = vmatprep.mubr.bf16.mxu0 0
        %2374 = vmatmul.mubr.bf16.gmra.mrb[0].mxu0 %v1958
        %v2375 = vpop.f32.mrb[0].mxu0
        %v2376 = vadd.f32 %v2263, %v2375
        %v2377 = vpop.f32.mrb[0].mxu0
        %v2378 = vadd.f32 %v2265, %v2377
        %v2379 = vpop.f32.mrb[0].mxu0
        %v2380 = vadd.f32 %v2267, %v2379
        %v2381 = vpop.f32.mrb[0].mxu0
        %v2382 = vadd.f32 %v2269, %v2381
        %2383 = vmatprep.mubr.bf16.mxu0 0
        %2384 = vmatmul.mubr.bf16.gmra.mrb[0].mxu0 %v1961
        %v2385 = vpop.f32.mrb[0].mxu0
        %v2386 = vadd.f32 %v2273, %v2385
        %v2387 = vpop.f32.mrb[0].mxu0
        %v2388 = vadd.f32 %v2275, %v2387
        %v2389 = vpop.f32.mrb[0].mxu0
        %v2390 = vadd.f32 %v2277, %v2389
        %v2391 = vpop.f32.mrb[0].mxu0
        %v2392 = vadd.f32 %v2279, %v2391
        %2393 = vmatprep.mubr.bf16.mxu0 0
        %2394 = vmatmul.mubr.bf16.gmra.mrb[0].mxu0 %v1964
        %v2395 = vpop.f32.mrb[0].mxu0
        %v2396 = vadd.f32 %v2283, %v2395
        %v2397 = vpop.f32.mrb[0].mxu0
        %v2398 = vadd.f32 %v2285, %v2397
        %v2399 = vpop.f32.mrb[0].mxu0
        %v2400 = vadd.f32 %v2287, %v2399
        %v2401 = vpop.f32.mrb[0].mxu0
        %v2402 = vadd.f32 %v2289, %v2401
        %2403 = vmatprep.mubr.bf16.mxu0 0
        %2404 = vmatmul.mubr.bf16.gmra.mrb[0].mxu0 %v1967
        %v2405 = vpop.f32.mrb[0].mxu0
        %v2406 = vadd.f32 %v2293, %v2405
        %v2407 = vpop.f32.mrb[0].mxu0
        %v2408 = vadd.f32 %v2295, %v2407
        %v2409 = vpop.f32.mrb[0].mxu0
        %v2410 = vadd.f32 %v2297, %v2409
        %v2411 = vpop.f32.mrb[0].mxu0
        %v2412 = vadd.f32 %v2299, %v2411
        %2413 = vmatprep.mubr.bf16.mxu0 0
        %2414 = vmatmul.mubr.bf16.gmra.mrb[0].mxu0 %v1970
        %v2415 = vpop.f32.mrb[0].mxu0
        %v2416 = vadd.f32 %v2303, %v2415
        %v2417 = vpop.f32.mrb[0].mxu0
        %v2418 = vadd.f32 %v2305, %v2417
        %v2419 = vpop.f32.mrb[0].mxu0
        %v2420 = vadd.f32 %v2307, %v2419
        %v2421 = vpop.f32.mrb[0].mxu0
        %v2422 = vadd.f32 %v2309, %v2421
        %2423 = vdwg.mxu0
        %2424 = vmatprep.subr.bf16.mxu0 %v1558
        %2425 = vmatpush1.bf16.msra.mxu0 %v1557
        %2426 = vmatprep.subr.bf16.mxu0 %v1562
        %2427 = vmatpush1.bf16.msra.mxu0 %v1561
        %2428 = vmatprep.subr.bf16.mxu0 %v1566
        %2429 = vmatpush1.bf16.msra.mxu0 %v1565
        %2430 = vmatprep.subr.bf16.mxu0 %v1570
        %2431 = vmatpush1.bf16.msra.mxu0 %v1569
        %2432 = vmatprep.subr.bf16.mxu0 %v1574
        %2433 = vmatpush1.bf16.msra.mxu0 %v1573
        %2434 = vmatprep.subr.bf16.mxu0 %v1578
        %2435 = vmatpush1.bf16.msra.mxu0 %v1577
        %2436 = vmatprep.subr.bf16.mxu0 %v1582
        %2437 = vmatpush1.bf16.msra.mxu0 %v1581
        %2438 = vmatprep.subr.bf16.mxu0 %v1586
        %2439 = vmatpush1.bf16.msra.mxu0 %v1585
        %2440 = vmatprep.subr.bf16.mxu0 %v1590
        %2441 = vmatpush1.bf16.msra.mxu0 %v1589
        %2442 = vmatprep.subr.bf16.mxu0 %v1594
        %2443 = vmatpush1.bf16.msra.mxu0 %v1593
        %2444 = vmatprep.subr.bf16.mxu0 %v1598
        %2445 = vmatpush1.bf16.msra.mxu0 %v1597
        %2446 = vmatprep.subr.bf16.mxu0 %v1602
        %2447 = vmatpush1.bf16.msra.mxu0 %v1601
        %2448 = vmatprep.subr.bf16.mxu0 %v1606
        %2449 = vmatpush1.bf16.msra.mxu0 %v1605
        %2450 = vmatprep.subr.bf16.mxu0 %v1610
        %2451 = vmatpush1.bf16.msra.mxu0 %v1609
        %2452 = vmatprep.subr.bf16.mxu0 %v1614
        %2453 = vmatpush1.bf16.msra.mxu0 %v1613
        %2454 = vmatprep.subr.bf16.mxu0 %v1618
        %2455 = vmatpush1.bf16.msra.mxu0 %v1617
        %2456 = vmatprep.mubr.bf16.mxu0 %v864
        %2457 = vmatmul.mubr.bf16.gmra.mrb[0].mxu0 %v863
        %v2458 = vpop.f32.mrb[0].mxu0
        %v2459 = vadd.f32 %v678, %v2458
        %v2460 = vpop.f32.mrb[0].mxu0
        %v2461 = vadd.f32 %v682, %v2460
        %v2462 = vpop.f32.mrb[0].mxu0
        %v2463 = vadd.f32 %v678, %v2462
        %v2464 = vpop.f32.mrb[0].mxu0
        %v2465 = vadd.f32 %v682, %v2464
        %2466 = vmatprep.mubr.bf16.mxu0 %v871
        %2467 = vmatmul.mubr.bf16.gmra.mrb[0].mxu0 %v870
        %v2468 = vpop.f32.mrb[0].mxu0
        %v2469 = vadd.f32 %v678, %v2468
        %v2470 = vpop.f32.mrb[0].mxu0
        %v2471 = vadd.f32 %v682, %v2470
        %v2472 = vpop.f32.mrb[0].mxu0
        %v2473 = vadd.f32 %v678, %v2472
        %v2474 = vpop.f32.mrb[0].mxu0
        %v2475 = vadd.f32 %v682, %v2474
        %2476 = vmatprep.mubr.bf16.mxu0 %v878
        %2477 = vmatmul.mubr.bf16.gmra.mrb[0].mxu0 %v877
        %v2478 = vpop.f32.mrb[0].mxu0
        %v2479 = vadd.f32 %v678, %v2478
        %v2480 = vpop.f32.mrb[0].mxu0
        %v2481 = vadd.f32 %v682, %v2480
        %v2482 = vpop.f32.mrb[0].mxu0
        %v2483 = vadd.f32 %v678, %v2482
        %v2484 = vpop.f32.mrb[0].mxu0
        %v2485 = vadd.f32 %v682, %v2484
        %2486 = vmatprep.mubr.bf16.mxu0 %v885
        %2487 = vmatmul.mubr.bf16.gmra.mrb[0].mxu0 %v884
        %v2488 = vpop.f32.mrb[0].mxu0
        %v2489 = vadd.f32 %v678, %v2488
        %v2490 = vpop.f32.mrb[0].mxu0
        %v2491 = vadd.f32 %v682, %v2490
        %v2492 = vpop.f32.mrb[0].mxu0
        %v2493 = vadd.f32 %v678, %v2492
        %v2494 = vpop.f32.mrb[0].mxu0
        %v2495 = vadd.f32 %v682, %v2494
        %2496 = vmatprep.mubr.bf16.mxu0 %v892
        %2497 = vmatmul.mubr.bf16.gmra.mrb[0].mxu0 %v891
        %v2498 = vpop.f32.mrb[0].mxu0
        %v2499 = vadd.f32 %v678, %v2498
        %v2500 = vpop.f32.mrb[0].mxu0
        %v2501 = vadd.f32 %v682, %v2500
        %v2502 = vpop.f32.mrb[0].mxu0
        %v2503 = vadd.f32 %v678, %v2502
        %v2504 = vpop.f32.mrb[0].mxu0
        %v2505 = vadd.f32 %v682, %v2504
        %2506 = vmatprep.mubr.bf16.mxu0 %v899
        %2507 = vmatmul.mubr.bf16.gmra.mrb[0].mxu0 %v898
        %v2508 = vpop.f32.mrb[0].mxu0
        %v2509 = vadd.f32 %v678, %v2508
        %v2510 = vpop.f32.mrb[0].mxu0
        %v2511 = vadd.f32 %v682, %v2510
        %v2512 = vpop.f32.mrb[0].mxu0
        %v2513 = vadd.f32 %v678, %v2512
        %v2514 = vpop.f32.mrb[0].mxu0
        %v2515 = vadd.f32 %v682, %v2514
        %2516 = vmatprep.mubr.bf16.mxu0 %v906
        %2517 = vmatmul.mubr.bf16.gmra.mrb[0].mxu0 %v905
        %v2518 = vpop.f32.mrb[0].mxu0
        %v2519 = vadd.f32 %v678, %v2518
        %v2520 = vpop.f32.mrb[0].mxu0
        %v2521 = vadd.f32 %v682, %v2520
        %v2522 = vpop.f32.mrb[0].mxu0
        %v2523 = vadd.f32 %v678, %v2522
        %v2524 = vpop.f32.mrb[0].mxu0
        %v2525 = vadd.f32 %v682, %v2524
        %2526 = vmatprep.mubr.bf16.mxu0 %v913
        %2527 = vmatmul.mubr.bf16.gmra.mrb[0].mxu0 %v912
        %v2528 = vpop.f32.mrb[0].mxu0
        %v2529 = vadd.f32 %v678, %v2528
        %v2530 = vpop.f32.mrb[0].mxu0
        %v2531 = vadd.f32 %v682, %v2530
        %v2532 = vpop.f32.mrb[0].mxu0
        %v2533 = vadd.f32 %v678, %v2532
        %v2534 = vpop.f32.mrb[0].mxu0
        %v2535 = vadd.f32 %v682, %v2534
        %2536 = vdwg.mxu0
        %2537 = vmatprep.subr.bf16.mxu0 %v1622
        %2538 = vmatpush1.bf16.msra.mxu0 %v1621
        %2539 = vmatprep.subr.bf16.mxu0 %v1626
        %2540 = vmatpush1.bf16.msra.mxu0 %v1625
        %2541 = vmatprep.subr.bf16.mxu0 %v1630
        %2542 = vmatpush1.bf16.msra.mxu0 %v1629
        %2543 = vmatprep.subr.bf16.mxu0 %v1634
        %2544 = vmatpush1.bf16.msra.mxu0 %v1633
        %2545 = vmatprep.subr.bf16.mxu0 %v1638
        %2546 = vmatpush1.bf16.msra.mxu0 %v1637
        %2547 = vmatprep.subr.bf16.mxu0 %v1642
        %2548 = vmatpush1.bf16.msra.mxu0 %v1641
        %2549 = vmatprep.subr.bf16.mxu0 %v1646
        %2550 = vmatpush1.bf16.msra.mxu0 %v1645
        %2551 = vmatprep.subr.bf16.mxu0 %v1650
        %2552 = vmatpush1.bf16.msra.mxu0 %v1649
        %2553 = vmatprep.subr.bf16.mxu0 %v1654
        %2554 = vmatpush1.bf16.msra.mxu0 %v1653
        %2555 = vmatprep.subr.bf16.mxu0 %v1658
        %2556 = vmatpush1.bf16.msra.mxu0 %v1657
        %2557 = vmatprep.subr.bf16.mxu0 %v1662
        %2558 = vmatpush1.bf16.msra.mxu0 %v1661
        %2559 = vmatprep.subr.bf16.mxu0 %v1666
        %2560 = vmatpush1.bf16.msra.mxu0 %v1665
        %2561 = vmatprep.subr.bf16.mxu0 %v1670
        %2562 = vmatpush1.bf16.msra.mxu0 %v1669
        %2563 = vmatprep.subr.bf16.mxu0 %v1674
        %2564 = vmatpush1.bf16.msra.mxu0 %v1673
        %2565 = vmatprep.subr.bf16.mxu0 %v1678
        %2566 = vmatpush1.bf16.msra.mxu0 %v1677
        %2567 = vmatprep.subr.bf16.mxu0 %v1682
        %2568 = vmatpush1.bf16.msra.mxu0 %v1681
        %2569 = vmatprep.mubr.bf16.mxu0 %v866
        %2570 = vmatmul.mubr.bf16.gmra.mrb[0].mxu0 %v865
        %v2571 = vpop.f32.mrb[0].mxu0
        %v2572 = vadd.f32 %v2459, %v2571
        %v2573 = vpop.f32.mrb[0].mxu0
        %v2574 = vadd.f32 %v2461, %v2573
        %v2575 = vpop.f32.mrb[0].mxu0
        %v2576 = vadd.f32 %v2463, %v2575
        %v2577 = vpop.f32.mrb[0].mxu0
        %v2578 = vadd.f32 %v2465, %v2577
        %2579 = vmatprep.mubr.bf16.mxu0 %v873
        %2580 = vmatmul.mubr.bf16.gmra.mrb[0].mxu0 %v872
        %v2581 = vpop.f32.mrb[0].mxu0
        %v2582 = vadd.f32 %v2469, %v2581
        %v2583 = vpop.f32.mrb[0].mxu0
        %v2584 = vadd.f32 %v2471, %v2583
        %v2585 = vpop.f32.mrb[0].mxu0
        %v2586 = vadd.f32 %v2473, %v2585
        %v2587 = vpop.f32.mrb[0].mxu0
        %v2588 = vadd.f32 %v2475, %v2587
        %2589 = vmatprep.mubr.bf16.mxu0 %v880
        %2590 = vmatmul.mubr.bf16.gmra.mrb[0].mxu0 %v879
        %v2591 = vpop.f32.mrb[0].mxu0
        %v2592 = vadd.f32 %v2479, %v2591
        %v2593 = vpop.f32.mrb[0].mxu0
        %v2594 = vadd.f32 %v2481, %v2593
        %v2595 = vpop.f32.mrb[0].mxu0
        %v2596 = vadd.f32 %v2483, %v2595
        %v2597 = vpop.f32.mrb[0].mxu0
        %v2598 = vadd.f32 %v2485, %v2597
        %2599 = vmatprep.mubr.bf16.mxu0 %v887
        %2600 = vmatmul.mubr.bf16.gmra.mrb[0].mxu0 %v886
        %v2601 = vpop.f32.mrb[0].mxu0
        %v2602 = vadd.f32 %v2489, %v2601
        %v2603 = vpop.f32.mrb[0].mxu0
        %v2604 = vadd.f32 %v2491, %v2603
        %v2605 = vpop.f32.mrb[0].mxu0
        %v2606 = vadd.f32 %v2493, %v2605
        %v2607 = vpop.f32.mrb[0].mxu0
        %v2608 = vadd.f32 %v2495, %v2607
        %2609 = vmatprep.mubr.bf16.mxu0 %v894
        %2610 = vmatmul.mubr.bf16.gmra.mrb[0].mxu0 %v893
        %v2611 = vpop.f32.mrb[0].mxu0
        %v2612 = vadd.f32 %v2499, %v2611
        %v2613 = vpop.f32.mrb[0].mxu0
        %v2614 = vadd.f32 %v2501, %v2613
        %v2615 = vpop.f32.mrb[0].mxu0
        %v2616 = vadd.f32 %v2503, %v2615
        %v2617 = vpop.f32.mrb[0].mxu0
        %v2618 = vadd.f32 %v2505, %v2617
        %2619 = vmatprep.mubr.bf16.mxu0 %v901
        %2620 = vmatmul.mubr.bf16.gmra.mrb[0].mxu0 %v900
        %v2621 = vpop.f32.mrb[0].mxu0
        %v2622 = vadd.f32 %v2509, %v2621
        %v2623 = vpop.f32.mrb[0].mxu0
        %v2624 = vadd.f32 %v2511, %v2623
        %v2625 = vpop.f32.mrb[0].mxu0
        %v2626 = vadd.f32 %v2513, %v2625
        %v2627 = vpop.f32.mrb[0].mxu0
        %v2628 = vadd.f32 %v2515, %v2627
        %2629 = vmatprep.mubr.bf16.mxu0 %v908
        %2630 = vmatmul.mubr.bf16.gmra.mrb[0].mxu0 %v907
        %v2631 = vpop.f32.mrb[0].mxu0
        %v2632 = vadd.f32 %v2519, %v2631
        %v2633 = vpop.f32.mrb[0].mxu0
        %v2634 = vadd.f32 %v2521, %v2633
        %v2635 = vpop.f32.mrb[0].mxu0
        %v2636 = vadd.f32 %v2523, %v2635
        %v2637 = vpop.f32.mrb[0].mxu0
        %v2638 = vadd.f32 %v2525, %v2637
        %2639 = vmatprep.mubr.bf16.mxu0 %v915
        %2640 = vmatmul.mubr.bf16.gmra.mrb[0].mxu0 %v914
        %v2641 = vpop.f32.mrb[0].mxu0
        %v2642 = vadd.f32 %v2529, %v2641
        %v2643 = vpop.f32.mrb[0].mxu0
        %v2644 = vadd.f32 %v2531, %v2643
        %v2645 = vpop.f32.mrb[0].mxu0
        %v2646 = vadd.f32 %v2533, %v2645
        %v2647 = vpop.f32.mrb[0].mxu0
        %v2648 = vadd.f32 %v2535, %v2647
        %2649 = vdwg.mxu0
        %2650 = vmatprep.subr.bf16.mxu0 %v1686
        %2651 = vmatpush1.bf16.msra.mxu0 %v1685
        %2652 = vmatprep.subr.bf16.mxu0 %v1690
        %2653 = vmatpush1.bf16.msra.mxu0 %v1689
        %2654 = vmatprep.subr.bf16.mxu0 %v1694
        %2655 = vmatpush1.bf16.msra.mxu0 %v1693
        %2656 = vmatprep.subr.bf16.mxu0 %v1698
        %2657 = vmatpush1.bf16.msra.mxu0 %v1697
        %2658 = vmatprep.subr.bf16.mxu0 %v1702
        %2659 = vmatpush1.bf16.msra.mxu0 %v1701
        %2660 = vmatprep.subr.bf16.mxu0 %v1706
        %2661 = vmatpush1.bf16.msra.mxu0 %v1705
        %2662 = vmatprep.subr.bf16.mxu0 %v1710
        %2663 = vmatpush1.bf16.msra.mxu0 %v1709
        %2664 = vmatprep.subr.bf16.mxu0 %v1714
        %2665 = vmatpush1.bf16.msra.mxu0 %v1713
        %2666 = vmatprep.subr.bf16.mxu0 %v1718
        %2667 = vmatpush1.bf16.msra.mxu0 %v1717
        %2668 = vmatprep.subr.bf16.mxu0 %v1722
        %2669 = vmatpush1.bf16.msra.mxu0 %v1721
        %2670 = vmatprep.subr.bf16.mxu0 %v1726
        %2671 = vmatpush1.bf16.msra.mxu0 %v1725
        %2672 = vmatprep.subr.bf16.mxu0 %v1730
        %2673 = vmatpush1.bf16.msra.mxu0 %v1729
        %2674 = vmatprep.subr.bf16.mxu0 %v1734
        %2675 = vmatpush1.bf16.msra.mxu0 %v1733
        %2676 = vmatprep.subr.bf16.mxu0 %v1738
        %2677 = vmatpush1.bf16.msra.mxu0 %v1737
        %2678 = vmatprep.subr.bf16.mxu0 %v1742
        %2679 = vmatpush1.bf16.msra.mxu0 %v1741
        %2680 = vmatprep.subr.bf16.mxu0 %v1746
        %2681 = vmatpush1.bf16.msra.mxu0 %v1745
        %2682 = vmatprep.mubr.bf16.mxu0 %v868
        %2683 = vmatmul.mubr.bf16.gmra.mrb[0].mxu0 %v867
        %v2684 = vpop.f32.mrb[0].mxu0
        %v2685 = vadd.f32 %v2572, %v2684
        %v2686 = vpop.f32.mrb[0].mxu0
        %v2687 = vadd.f32 %v2574, %v2686
        %v2688 = vpop.f32.mrb[0].mxu0
        %v2689 = vadd.f32 %v2576, %v2688
        %v2690 = vpop.f32.mrb[0].mxu0
        %v2691 = vadd.f32 %v2578, %v2690
        %2692 = vmatprep.mubr.bf16.mxu0 %v875
        %2693 = vmatmul.mubr.bf16.gmra.mrb[0].mxu0 %v874
        %v2694 = vpop.f32.mrb[0].mxu0
        %v2695 = vadd.f32 %v2582, %v2694
        %v2696 = vpop.f32.mrb[0].mxu0
        %v2697 = vadd.f32 %v2584, %v2696
        %v2698 = vpop.f32.mrb[0].mxu0
        %v2699 = vadd.f32 %v2586, %v2698
        %v2700 = vpop.f32.mrb[0].mxu0
        %v2701 = vadd.f32 %v2588, %v2700
        %2702 = vmatprep.mubr.bf16.mxu0 %v882
        %2703 = vmatmul.mubr.bf16.gmra.mrb[0].mxu0 %v881
        %v2704 = vpop.f32.mrb[0].mxu0
        %v2705 = vadd.f32 %v2592, %v2704
        %v2706 = vpop.f32.mrb[0].mxu0
        %v2707 = vadd.f32 %v2594, %v2706
        %v2708 = vpop.f32.mrb[0].mxu0
        %v2709 = vadd.f32 %v2596, %v2708
        %v2710 = vpop.f32.mrb[0].mxu0
        %v2711 = vadd.f32 %v2598, %v2710
        %2712 = vmatprep.mubr.bf16.mxu0 %v889
        %2713 = vmatmul.mubr.bf16.gmra.mrb[0].mxu0 %v888
        %v2714 = vpop.f32.mrb[0].mxu0
        %v2715 = vadd.f32 %v2602, %v2714
        %v2716 = vpop.f32.mrb[0].mxu0
        %v2717 = vadd.f32 %v2604, %v2716
        %v2718 = vpop.f32.mrb[0].mxu0
        %v2719 = vadd.f32 %v2606, %v2718
        %v2720 = vpop.f32.mrb[0].mxu0
        %v2721 = vadd.f32 %v2608, %v2720
        %2722 = vmatprep.mubr.bf16.mxu0 %v896
        %2723 = vmatmul.mubr.bf16.gmra.mrb[0].mxu0 %v895
        %v2724 = vpop.f32.mrb[0].mxu0
        %v2725 = vadd.f32 %v2612, %v2724
        %v2726 = vpop.f32.mrb[0].mxu0
        %v2727 = vadd.f32 %v2614, %v2726
        %v2728 = vpop.f32.mrb[0].mxu0
        %v2729 = vadd.f32 %v2616, %v2728
        %v2730 = vpop.f32.mrb[0].mxu0
        %v2731 = vadd.f32 %v2618, %v2730
        %2732 = vmatprep.mubr.bf16.mxu0 %v903
        %2733 = vmatmul.mubr.bf16.gmra.mrb[0].mxu0 %v902
        %v2734 = vpop.f32.mrb[0].mxu0
        %v2735 = vadd.f32 %v2622, %v2734
        %v2736 = vpop.f32.mrb[0].mxu0
        %v2737 = vadd.f32 %v2624, %v2736
        %v2738 = vpop.f32.mrb[0].mxu0
        %v2739 = vadd.f32 %v2626, %v2738
        %v2740 = vpop.f32.mrb[0].mxu0
        %v2741 = vadd.f32 %v2628, %v2740
        %2742 = vmatprep.mubr.bf16.mxu0 %v910
        %2743 = vmatmul.mubr.bf16.gmra.mrb[0].mxu0 %v909
        %v2744 = vpop.f32.mrb[0].mxu0
        %v2745 = vadd.f32 %v2632, %v2744
        %v2746 = vpop.f32.mrb[0].mxu0
        %v2747 = vadd.f32 %v2634, %v2746
        %v2748 = vpop.f32.mrb[0].mxu0
        %v2749 = vadd.f32 %v2636, %v2748
        %v2750 = vpop.f32.mrb[0].mxu0
        %v2751 = vadd.f32 %v2638, %v2750
        %2752 = vmatprep.mubr.bf16.mxu0 %v917
        %2753 = vmatmul.mubr.bf16.gmra.mrb[0].mxu0 %v916
        %v2754 = vpop.f32.mrb[0].mxu0
        %v2755 = vadd.f32 %v2642, %v2754
        %v2756 = vpop.f32.mrb[0].mxu0
        %v2757 = vadd.f32 %v2644, %v2756
        %v2758 = vpop.f32.mrb[0].mxu0
        %v2759 = vadd.f32 %v2646, %v2758
        %v2760 = vpop.f32.mrb[0].mxu0
        %v2761 = vadd.f32 %v2648, %v2760
        %2762 = vdwg.mxu0
        %2763 = vmatprep.subr.bf16.mxu0 %v1750
        %2764 = vmatpush1.bf16.msra.mxu0 %v1749
        %2765 = vmatprep.subr.bf16.mxu0 0
        %2766 = vmatpush1.bf16.msra.mxu0 0
        %2767 = vmatprep.subr.bf16.mxu0 0
        %2768 = vmatpush1.bf16.msra.mxu0 0
        %2769 = vmatprep.subr.bf16.mxu0 0
        %2770 = vmatpush1.bf16.msra.mxu0 0
        %2771 = vmatprep.subr.bf16.mxu0 0
        %2772 = vmatpush1.bf16.msra.mxu0 0
        %2773 = vmatprep.subr.bf16.mxu0 0
        %2774 = vmatpush1.bf16.msra.mxu0 0
        %2775 = vmatprep.subr.bf16.mxu0 0
        %2776 = vmatpush1.bf16.msra.mxu0 0
        %2777 = vmatprep.subr.bf16.mxu0 0
        %2778 = vmatpush1.bf16.msra.mxu0 0
        %2779 = vmatprep.subr.bf16.mxu0 0
        %2780 = vmatpush1.bf16.msra.mxu0 0
        %2781 = vmatprep.subr.bf16.mxu0 0
        %2782 = vmatpush1.bf16.msra.mxu0 0
        %2783 = vmatprep.subr.bf16.mxu0 0
        %2784 = vmatpush1.bf16.msra.mxu0 0
        %2785 = vmatprep.subr.bf16.mxu0 0
        %2786 = vmatpush1.bf16.msra.mxu0 0
        %2787 = vmatprep.subr.bf16.mxu0 0
        %2788 = vmatpush1.bf16.msra.mxu0 0
        %2789 = vmatprep.subr.bf16.mxu0 0
        %2790 = vmatpush1.bf16.msra.mxu0 0
        %2791 = vmatprep.subr.bf16.mxu0 0
        %2792 = vmatpush1.bf16.msra.mxu0 0
        %2793 = vmatprep.subr.bf16.mxu0 0
        %2794 = vmatpush1.bf16.msra.mxu0 0
        %2795 = vmatprep.mubr.bf16.mxu0 0
        %2796 = vmatmul.mubr.bf16.gmra.mrb[0].mxu0 %v1949
        %v2797 = vpop.f32.mrb[0].mxu0
        %v2798 = vadd.f32 %v2685, %v2797
        %v2799 = vpop.f32.mrb[0].mxu0
        %v2800 = vadd.f32 %v2687, %v2799
        %v2801 = vpop.f32.mrb[0].mxu0
        %v2802 = vadd.f32 %v2689, %v2801
        %v2803 = vpop.f32.mrb[0].mxu0
        %v2804 = vadd.f32 %v2691, %v2803
        %2805 = vmatprep.mubr.bf16.mxu0 0
        %2806 = vmatmul.mubr.bf16.gmra.mrb[0].mxu0 %v1952
        %v2807 = vpop.f32.mrb[0].mxu0
        %v2808 = vadd.f32 %v2695, %v2807
        %v2809 = vpop.f32.mrb[0].mxu0
        %v2810 = vadd.f32 %v2697, %v2809
        %v2811 = vpop.f32.mrb[0].mxu0
        %v2812 = vadd.f32 %v2699, %v2811
        %v2813 = vpop.f32.mrb[0].mxu0
        %v2814 = vadd.f32 %v2701, %v2813
        %2815 = vmatprep.mubr.bf16.mxu0 0
        %2816 = vmatmul.mubr.bf16.gmra.mrb[0].mxu0 %v1955
        %v2817 = vpop.f32.mrb[0].mxu0
        %v2818 = vadd.f32 %v2705, %v2817
        %v2819 = vpop.f32.mrb[0].mxu0
        %v2820 = vadd.f32 %v2707, %v2819
        %v2821 = vpop.f32.mrb[0].mxu0
        %v2822 = vadd.f32 %v2709, %v2821
        %v2823 = vpop.f32.mrb[0].mxu0
        %v2824 = vadd.f32 %v2711, %v2823
        %2825 = vmatprep.mubr.bf16.mxu0 0
        %2826 = vmatmul.mubr.bf16.gmra.mrb[0].mxu0 %v1958
        %v2827 = vpop.f32.mrb[0].mxu0
        %v2828 = vadd.f32 %v2715, %v2827
        %v2829 = vpop.f32.mrb[0].mxu0
        %v2830 = vadd.f32 %v2717, %v2829
        %v2831 = vpop.f32.mrb[0].mxu0
        %v2832 = vadd.f32 %v2719, %v2831
        %v2833 = vpop.f32.mrb[0].mxu0
        %v2834 = vadd.f32 %v2721, %v2833
        %2835 = vmatprep.mubr.bf16.mxu0 0
        %2836 = vmatmul.mubr.bf16.gmra.mrb[0].mxu0 %v1961
        %v2837 = vpop.f32.mrb[0].mxu0
        %v2838 = vadd.f32 %v2725, %v2837
        %v2839 = vpop.f32.mrb[0].mxu0
        %v2840 = vadd.f32 %v2727, %v2839
        %v2841 = vpop.f32.mrb[0].mxu0
        %v2842 = vadd.f32 %v2729, %v2841
        %v2843 = vpop.f32.mrb[0].mxu0
        %v2844 = vadd.f32 %v2731, %v2843
        %2845 = vmatprep.mubr.bf16.mxu0 0
        %2846 = vmatmul.mubr.bf16.gmra.mrb[0].mxu0 %v1964
        %v2847 = vpop.f32.mrb[0].mxu0
        %v2848 = vadd.f32 %v2735, %v2847
        %v2849 = vpop.f32.mrb[0].mxu0
        %v2850 = vadd.f32 %v2737, %v2849
        %v2851 = vpop.f32.mrb[0].mxu0
        %v2852 = vadd.f32 %v2739, %v2851
        %v2853 = vpop.f32.mrb[0].mxu0
        %v2854 = vadd.f32 %v2741, %v2853
        %2855 = vmatprep.mubr.bf16.mxu0 0
        %2856 = vmatmul.mubr.bf16.gmra.mrb[0].mxu0 %v1967
        %v2857 = vpop.f32.mrb[0].mxu0
        %v2858 = vadd.f32 %v2745, %v2857
        %v2859 = vpop.f32.mrb[0].mxu0
        %v2860 = vadd.f32 %v2747, %v2859
        %v2861 = vpop.f32.mrb[0].mxu0
        %v2862 = vadd.f32 %v2749, %v2861
        %v2863 = vpop.f32.mrb[0].mxu0
        %v2864 = vadd.f32 %v2751, %v2863
        %2865 = vmatprep.mubr.bf16.mxu0 0
        %2866 = vmatmul.mubr.bf16.gmra.mrb[0].mxu0 %v1970
        %v2867 = vpop.f32.mrb[0].mxu0
        %v2868 = vadd.f32 %v2755, %v2867
        %v2869 = vpop.f32.mrb[0].mxu0
        %v2870 = vadd.f32 %v2757, %v2869
        %v2871 = vpop.f32.mrb[0].mxu0
        %v2872 = vadd.f32 %v2759, %v2871
        %v2873 = vpop.f32.mrb[0].mxu0
        %v2874 = vadd.f32 %v2761, %v2873
        %2875 = vdwg.mxu0
        %v2876 = vmax.f32 %v2346, 0.0
        %v2877 = vmax.f32 %v2348, 0.0
        %v2878 = vmax.f32 %v2798, 0.0
        %v2879 = vmax.f32 %v2800, 0.0
        %v2880 = vmax.f32 %v2350, 0.0
        %v2881 = vmax.f32 %v2352, 0.0
        %v2882 = vmax.f32 %v2802, 0.0
        %v2883 = vmax.f32 %v2804, 0.0
        %v2884 = vmax.f32 %v2356, 0.0
        %v2885 = vmax.f32 %v2358, 0.0
        %v2886 = vmax.f32 %v2808, 0.0
        %v2887 = vmax.f32 %v2810, 0.0
        %v2888 = vmax.f32 %v2360, 0.0
        %v2889 = vmax.f32 %v2362, 0.0
        %v2890 = vmax.f32 %v2812, 0.0
        %v2891 = vmax.f32 %v2814, 0.0
        %v2892 = vmax.f32 %v2366, 0.0
        %v2893 = vmax.f32 %v2368, 0.0
        %v2894 = vmax.f32 %v2818, 0.0
        %v2895 = vmax.f32 %v2820, 0.0
        %v2896 = vmax.f32 %v2370, 0.0
        %v2897 = vmax.f32 %v2372, 0.0
        %v2898 = vmax.f32 %v2822, 0.0
        %v2899 = vmax.f32 %v2824, 0.0
        %v2900 = vmax.f32 %v2376, 0.0
        %v2901 = vmax.f32 %v2378, 0.0
        %v2902 = vmax.f32 %v2828, 0.0
        %v2903 = vmax.f32 %v2830, 0.0
        %v2904 = vmax.f32 %v2380, 0.0
        %v2905 = vmax.f32 %v2382, 0.0
        %v2906 = vmax.f32 %v2832, 0.0
        %v2907 = vmax.f32 %v2834, 0.0
        %v2908 = vmax.f32 %v2386, 0.0
        %v2909 = vmax.f32 %v2388, 0.0
        %v2910 = vmax.f32 %v2838, 0.0
        %v2911 = vmax.f32 %v2840, 0.0
        %v2912 = vmax.f32 %v2390, 0.0
        %v2913 = vmax.f32 %v2392, 0.0
        %v2914 = vmax.f32 %v2842, 0.0
        %v2915 = vmax.f32 %v2844, 0.0
        %v2916 = vmax.f32 %v2396, 0.0
        %v2917 = vmax.f32 %v2398, 0.0
        %v2918 = vmax.f32 %v2848, 0.0
        %v2919 = vmax.f32 %v2850, 0.0
        %v2920 = vmax.f32 %v2400, 0.0
        %v2921 = vmax.f32 %v2402, 0.0
        %v2922 = vmax.f32 %v2852, 0.0
        %v2923 = vmax.f32 %v2854, 0.0
        %v2924 = vmax.f32 %v2406, 0.0
        %v2925 = vmax.f32 %v2408, 0.0
        %v2926 = vmax.f32 %v2858, 0.0
        %v2927 = vmax.f32 %v2860, 0.0
        %v2928 = vmax.f32 %v2410, 0.0
        %v2929 = vmax.f32 %v2412, 0.0
        %v2930 = vmax.f32 %v2862, 0.0
        %v2931 = vmax.f32 %v2864, 0.0
        %v2932 = vmax.f32 %v2416, 0.0
        %v2933 = vmax.f32 %v2418, 0.0
        %v2934 = vmax.f32 %v2868, 0.0
        %v2935 = vmax.f32 %v2870, 0.0
        %v2936 = vmax.f32 %v2420, 0.0
        %v2937 = vmax.f32 %v2422, 0.0
        %v2938 = vmax.f32 %v2872, 0.0
        %v2939 = vmax.f32 %v2874, 0.0
        %v2940 = vpack.c.bf16 %v2880, %v2876
        %v2941 = vpack.c.bf16 %v2881, %v2877
        %v2942 = vpack.c.bf16 %v2882, %v2878
        %v2943 = vpack.c.bf16 %v2883, %v2879
        %v2944 = vpack.c.bf16 %v2888, %v2884
        %v2945 = vpack.c.bf16 %v2889, %v2885
        %v2946 = vpack.c.bf16 %v2890, %v2886
        %v2947 = vpack.c.bf16 %v2891, %v2887
        %v2948 = vpack.c.bf16 %v2896, %v2892
        %v2949 = vpack.c.bf16 %v2897, %v2893
        %v2950 = vpack.c.bf16 %v2898, %v2894
        %v2951 = vpack.c.bf16 %v2899, %v2895
        %v2952 = vpack.c.bf16 %v2904, %v2900
        %v2953 = vpack.c.bf16 %v2905, %v2901
        %v2954 = vpack.c.bf16 %v2906, %v2902
        %v2955 = vpack.c.bf16 %v2907, %v2903
        %v2956 = vpack.c.bf16 %v2912, %v2908
        %v2957 = vpack.c.bf16 %v2913, %v2909
        %v2958 = vpack.c.bf16 %v2914, %v2910
        %v2959 = vpack.c.bf16 %v2915, %v2911
        %v2960 = vpack.c.bf16 %v2920, %v2916
        %v2961 = vpack.c.bf16 %v2921, %v2917
        %v2962 = vpack.c.bf16 %v2922, %v2918
        %v2963 = vpack.c.bf16 %v2923, %v2919
        %v2964 = vpack.c.bf16 %v2928, %v2924
        %v2965 = vpack.c.bf16 %v2929, %v2925
        %v2966 = vpack.c.bf16 %v2930, %v2926
        %v2967 = vpack.c.bf16 %v2931, %v2927
        %v2968 = vpack.c.bf16 %v2936, %v2932
        %v2969 = vpack.c.bf16 %v2937, %v2933
        %v2970 = vpack.c.bf16 %v2938, %v2934
        %v2971 = vpack.c.bf16 %v2939, %v2935
        %v2972 = vld [vmem:[#allocation5] sm:$0xff]
        %v2973 = vld [vmem:[#allocation5 + $0x8] sm:$0xff]
        %v2974 = vld [vmem:[#allocation5 + $0x10] sm:$0xff]
        %v2975 = vld [vmem:[#allocation5 + $0x18] sm:$0xff]
        %v2976 = vld [vmem:[#allocation5 + $0x20] sm:$0xff]
        %v2977 = vld [vmem:[#allocation5 + $0x28] sm:$0xff]
        %v2978 = vld [vmem:[#allocation5 + $0x30] sm:$0xff]
        %v2979 = vld [vmem:[#allocation5 + $0x38] sm:$0xff]
        %v2980 = vld [vmem:[#allocation5 + $0x40] sm:$0xff]
        %v2981 = vld [vmem:[#allocation5 + $0x48] sm:$0xff]
        %v2982 = vld [vmem:[#allocation5 + $0x50] sm:$0xff]
        %v2983 = vld [vmem:[#allocation5 + $0x58] sm:$0xff]
        %v2984 = vld [vmem:[#allocation5 + $0x60] sm:$0xff]
        %v2985 = vld [vmem:[#allocation5 + $0x68] sm:$0xff]
        %v2986 = vld [vmem:[#allocation5 + $0x70] sm:$0xff]
        %v2987 = vld [vmem:[#allocation5 + $0x78] sm:$0xff]
        %v2988 = vld [vmem:[#allocation5 + $0x80] sm:$0xff]
        %v2989 = vld [vmem:[#allocation5 + $0x88] sm:$0xff]
        %v2990 = vld [vmem:[#allocation5 + $0x90] sm:$0xff]
        %v2991 = vld [vmem:[#allocation5 + $0x98] sm:$0xff]
        %v2992 = vld [vmem:[#allocation5 + $0xa0] sm:$0xff]
        %v2993 = vld [vmem:[#allocation5 + $0xa8] sm:$0xff]
        %v2994 = vld [vmem:[#allocation5 + $0xb0] sm:$0xff]
        %v2995 = vld [vmem:[#allocation5 + $0xb8] sm:$0xff]
        %v2996 = vld [vmem:[#allocation5 + $0xc0] sm:$0xff]
        %v2997 = vld [vmem:[#allocation5 + $0xc8] sm:$0xff]
        %v2998 = vld [vmem:[#allocation5 + $0xd0] sm:$0xff]
        %v2999 = vld [vmem:[#allocation5 + $0xd8] sm:$0xff]
        %v3000 = vld [vmem:[#allocation5 + $0xe0] sm:$0xff]
        %v3001 = vld [vmem:[#allocation5 + $0xe8] sm:$0xff]
        %v3002 = vld [vmem:[#allocation5 + $0xf0] sm:$0xff]
        %v3003 = vld [vmem:[#allocation5 + $0xf8] sm:$0xff]
        %v3004 = vld [vmem:[#allocation5 + $0x100] sm:$0xff]
        %v3005 = vld [vmem:[#allocation5 + $0x108] sm:$0xff]
        %v3006 = vld [vmem:[#allocation5 + $0x110] sm:$0xff]
        %v3007 = vld [vmem:[#allocation5 + $0x118] sm:$0xff]
        %v3008 = vld [vmem:[#allocation5 + $0x120] sm:$0xff]
        %v3009 = vld [vmem:[#allocation5 + $0x128] sm:$0xff]
        %v3010 = vld [vmem:[#allocation5 + $0x130] sm:$0xff]
        %v3011 = vld [vmem:[#allocation5 + $0x138] sm:$0xff]
        %v3012 = vld [vmem:[#allocation5 + $0x140] sm:$0xff]
        %v3013 = vld [vmem:[#allocation5 + $0x148] sm:$0xff]
        %v3014 = vld [vmem:[#allocation5 + $0x150] sm:$0xff]
        %v3015 = vld [vmem:[#allocation5 + $0x158] sm:$0xff]
        %v3016 = vld [vmem:[#allocation5 + $0x160] sm:$0xff]
        %v3017 = vld [vmem:[#allocation5 + $0x168] sm:$0xff]
        %v3018 = vld [vmem:[#allocation5 + $0x170] sm:$0xff]
        %v3019 = vld [vmem:[#allocation5 + $0x178] sm:$0xff]
        %v3020 = vld [vmem:[#allocation5 + $0x180] sm:$0xff]
        %v3021 = vld [vmem:[#allocation5 + $0x188] sm:$0xff]
        %v3022 = vld [vmem:[#allocation5 + $0x190] sm:$0xff]
        %v3023 = vld [vmem:[#allocation5 + $0x198] sm:$0xff]
        %v3024 = vld [vmem:[#allocation5 + $0x1a0] sm:$0xff]
        %v3025 = vld [vmem:[#allocation5 + $0x1a8] sm:$0xff]
        %v3026 = vld [vmem:[#allocation5 + $0x1b0] sm:$0xff]
        %v3027 = vld [vmem:[#allocation5 + $0x1b8] sm:$0xff]
        %v3028 = vld [vmem:[#allocation5 + $0x1c0] sm:$0xff]
        %v3029 = vld [vmem:[#allocation5 + $0x1c8] sm:$0xff]
        %v3030 = vld [vmem:[#allocation5 + $0x1d0] sm:$0xff]
        %v3031 = vld [vmem:[#allocation5 + $0x1d8] sm:$0xff]
        %v3032 = vld [vmem:[#allocation5 + $0x1e0] sm:$0xff]
        %v3033 = vld [vmem:[#allocation5 + $0x1e8] sm:$0xff]
        %v3034 = vld [vmem:[#allocation5 + $0x1f0] sm:$0xff]
        %v3035 = vld [vmem:[#allocation5 + $0x1f8] sm:$0xff]
        %v3036 = vld [vmem:[%s4] sm:$0x3]
        %v3038 = vlaneseq
        %v3039 = vshrl.u32 %v3038, 7
        %v3040 = vsub.s32 0, %v3039
        %v3041 = vrot.slane %v3036, %v3040
        %v3042 = vlaneseq
        %v3043 = vshrl.u32 %v3042, 7
        %v3044 = vsub.s32 1, %v3043
        %v3045 = vrot.slane %v3036, %v3044
        %v3112 = vunpack.c.l.b16 %v2972
        %v3113 = vunpack.c.h.b16 %v2972
        %v3114 = vunpack.c.l.b16 %v2973
        %v3115 = vunpack.c.h.b16 %v2973
        %v3116 = vunpack.c.l.b16 %v2974
        %v3117 = vunpack.c.h.b16 %v2974
        %v3118 = vunpack.c.l.b16 %v2975
        %v3119 = vunpack.c.h.b16 %v2975
        %v3120 = vunpack.c.l.b16 %v2976
        %v3121 = vunpack.c.h.b16 %v2976
        %v3122 = vunpack.c.l.b16 %v2977
        %v3123 = vunpack.c.h.b16 %v2977
        %v3124 = vunpack.c.l.b16 %v2978
        %v3125 = vunpack.c.h.b16 %v2978
        %v3126 = vunpack.c.l.b16 %v2979
        %v3127 = vunpack.c.h.b16 %v2979
        %v3128 = vunpack.c.l.b16 %v2980
        %v3129 = vunpack.c.h.b16 %v2980
        %v3130 = vunpack.c.l.b16 %v2981
        %v3131 = vunpack.c.h.b16 %v2981
        %v3132 = vunpack.c.l.b16 %v2982
        %v3133 = vunpack.c.h.b16 %v2982
        %v3134 = vunpack.c.l.b16 %v2983
        %v3135 = vunpack.c.h.b16 %v2983
        %v3136 = vunpack.c.l.b16 %v2984
        %v3137 = vunpack.c.h.b16 %v2984
        %v3138 = vunpack.c.l.b16 %v2985
        %v3139 = vunpack.c.h.b16 %v2985
        %v3140 = vunpack.c.l.b16 %v2986
        %v3141 = vunpack.c.h.b16 %v2986
        %v3142 = vunpack.c.l.b16 %v2987
        %v3143 = vunpack.c.h.b16 %v2987
        %v3144 = vunpack.c.l.b16 %v2988
        %v3145 = vunpack.c.h.b16 %v2988
        %v3146 = vunpack.c.l.b16 %v2989
        %v3147 = vunpack.c.h.b16 %v2989
        %v3148 = vunpack.c.l.b16 %v2990
        %v3149 = vunpack.c.h.b16 %v2990
        %v3150 = vunpack.c.l.b16 %v2991
        %v3151 = vunpack.c.h.b16 %v2991
        %v3152 = vunpack.c.l.b16 %v2992
        %v3153 = vunpack.c.h.b16 %v2992
        %v3154 = vunpack.c.l.b16 %v2993
        %v3155 = vunpack.c.h.b16 %v2993
        %v3156 = vunpack.c.l.b16 %v2994
        %v3157 = vunpack.c.h.b16 %v2994
        %v3158 = vunpack.c.l.b16 %v2995
        %v3159 = vunpack.c.h.b16 %v2995
        %v3160 = vunpack.c.l.b16 %v2996
        %v3161 = vunpack.c.h.b16 %v2996
        %v3162 = vunpack.c.l.b16 %v2997
        %v3163 = vunpack.c.h.b16 %v2997
        %v3164 = vunpack.c.l.b16 %v2998
        %v3165 = vunpack.c.h.b16 %v2998
        %v3166 = vunpack.c.l.b16 %v2999
        %v3167 = vunpack.c.h.b16 %v2999
        %v3168 = vunpack.c.l.b16 %v3000
        %v3169 = vunpack.c.h.b16 %v3000
        %v3170 = vunpack.c.l.b16 %v3001
        %v3171 = vunpack.c.h.b16 %v3001
        %v3172 = vunpack.c.l.b16 %v3002
        %v3173 = vunpack.c.h.b16 %v3002
        %v3174 = vunpack.c.l.b16 %v3003
        %v3175 = vunpack.c.h.b16 %v3003
        %v3176 = vunpack.c.l.b16 %v3004
        %v3177 = vunpack.c.h.b16 %v3004
        %v3178 = vunpack.c.l.b16 %v3005
        %v3179 = vunpack.c.h.b16 %v3005
        %v3180 = vunpack.c.l.b16 %v3006
        %v3181 = vunpack.c.h.b16 %v3006
        %v3182 = vunpack.c.l.b16 %v3007
        %v3183 = vunpack.c.h.b16 %v3007
        %v3184 = vunpack.c.l.b16 %v3008
        %v3185 = vunpack.c.h.b16 %v3008
        %v3186 = vunpack.c.l.b16 %v3009
        %v3187 = vunpack.c.h.b16 %v3009
        %v3188 = vunpack.c.l.b16 %v3010
        %v3189 = vunpack.c.h.b16 %v3010
        %v3190 = vunpack.c.l.b16 %v3011
        %v3191 = vunpack.c.h.b16 %v3011
        %v3192 = vunpack.c.l.b16 %v3012
        %v3193 = vunpack.c.h.b16 %v3012
        %v3194 = vunpack.c.l.b16 %v3013
        %v3195 = vunpack.c.h.b16 %v3013
        %v3196 = vunpack.c.l.b16 %v3014
        %v3197 = vunpack.c.h.b16 %v3014
        %v3198 = vunpack.c.l.b16 %v3015
        %v3199 = vunpack.c.h.b16 %v3015
        %v3200 = vunpack.c.l.b16 %v3016
        %v3201 = vunpack.c.h.b16 %v3016
        %v3202 = vunpack.c.l.b16 %v3017
        %v3203 = vunpack.c.h.b16 %v3017
        %v3204 = vunpack.c.l.b16 %v3018
        %v3205 = vunpack.c.h.b16 %v3018
        %v3206 = vunpack.c.l.b16 %v3019
        %v3207 = vunpack.c.h.b16 %v3019
        %v3208 = vunpack.c.l.b16 %v3020
        %v3209 = vunpack.c.h.b16 %v3020
        %v3210 = vunpack.c.l.b16 %v3021
        %v3211 = vunpack.c.h.b16 %v3021
        %v3212 = vunpack.c.l.b16 %v3022
        %v3213 = vunpack.c.h.b16 %v3022
        %v3214 = vunpack.c.l.b16 %v3023
        %v3215 = vunpack.c.h.b16 %v3023
        %v3216 = vunpack.c.l.b16 %v3024
        %v3217 = vunpack.c.h.b16 %v3024
        %v3218 = vunpack.c.l.b16 %v3025
        %v3219 = vunpack.c.h.b16 %v3025
        %v3220 = vunpack.c.l.b16 %v3026
        %v3221 = vunpack.c.h.b16 %v3026
        %v3222 = vunpack.c.l.b16 %v3027
        %v3223 = vunpack.c.h.b16 %v3027
        %v3224 = vunpack.c.l.b16 %v3028
        %v3225 = vunpack.c.h.b16 %v3028
        %v3226 = vunpack.c.l.b16 %v3029
        %v3227 = vunpack.c.h.b16 %v3029
        %v3228 = vunpack.c.l.b16 %v3030
        %v3229 = vunpack.c.h.b16 %v3030
        %v3230 = vunpack.c.l.b16 %v3031
        %v3231 = vunpack.c.h.b16 %v3031
        %v3232 = vunpack.c.l.b16 %v3032
        %v3233 = vunpack.c.h.b16 %v3032
        %v3234 = vunpack.c.l.b16 %v3033
        %v3235 = vunpack.c.h.b16 %v3033
        %v3236 = vunpack.c.l.b16 %v3034
        %v3237 = vunpack.c.h.b16 %v3034
        %v3238 = vunpack.c.l.b16 %v3035
        %v3239 = vunpack.c.h.b16 %v3035
        %v3240 = vpack.c.b16 %v3114, %v3112
        %v3241 = vpack.c.b16 %v3115, %v3113
        %v3242 = vpack.c.b16 %v3118, %v3116
        %v3243 = vpack.c.b16 %v3119, %v3117
        %v3244 = vpack.c.b16 %v3122, %v3120
        %v3245 = vpack.c.b16 %v3123, %v3121
        %v3246 = vpack.c.b16 %v3126, %v3124
        %v3247 = vpack.c.b16 %v3127, %v3125
        %v3248 = vpack.c.b16 %v3130, %v3128
        %v3249 = vpack.c.b16 %v3131, %v3129
        %v3250 = vpack.c.b16 %v3134, %v3132
        %v3251 = vpack.c.b16 %v3135, %v3133
        %v3252 = vpack.c.b16 %v3138, %v3136
        %v3253 = vpack.c.b16 %v3139, %v3137
        %v3254 = vpack.c.b16 %v3142, %v3140
        %v3255 = vpack.c.b16 %v3143, %v3141
        %v3256 = vpack.c.b16 %v3146, %v3144
        %v3257 = vpack.c.b16 %v3147, %v3145
        %v3258 = vpack.c.b16 %v3150, %v3148
        %v3259 = vpack.c.b16 %v3151, %v3149
        %v3260 = vpack.c.b16 %v3154, %v3152
        %v3261 = vpack.c.b16 %v3155, %v3153
        %v3262 = vpack.c.b16 %v3158, %v3156
        %v3263 = vpack.c.b16 %v3159, %v3157
        %v3264 = vpack.c.b16 %v3162, %v3160
        %v3265 = vpack.c.b16 %v3163, %v3161
        %v3266 = vpack.c.b16 %v3166, %v3164
        %v3267 = vpack.c.b16 %v3167, %v3165
        %v3268 = vpack.c.b16 %v3170, %v3168
        %v3269 = vpack.c.b16 %v3171, %v3169
        %v3270 = vpack.c.b16 %v3174, %v3172
        %v3271 = vpack.c.b16 %v3175, %v3173
        %v3272 = vpack.c.b16 %v3178, %v3176
        %v3273 = vpack.c.b16 %v3179, %v3177
        %v3274 = vpack.c.b16 %v3182, %v3180
        %v3275 = vpack.c.b16 %v3183, %v3181
        %v3276 = vpack.c.b16 %v3186, %v3184
        %v3277 = vpack.c.b16 %v3187, %v3185
        %v3278 = vpack.c.b16 %v3190, %v3188
        %v3279 = vpack.c.b16 %v3191, %v3189
        %v3280 = vpack.c.b16 %v3194, %v3192
        %v3281 = vpack.c.b16 %v3195, %v3193
        %v3282 = vpack.c.b16 %v3198, %v3196
        %v3283 = vpack.c.b16 %v3199, %v3197
        %v3284 = vpack.c.b16 %v3202, %v3200
        %v3285 = vpack.c.b16 %v3203, %v3201
        %v3286 = vpack.c.b16 %v3206, %v3204
        %v3287 = vpack.c.b16 %v3207, %v3205
        %v3288 = vpack.c.b16 %v3210, %v3208
        %v3289 = vpack.c.b16 %v3211, %v3209
        %v3290 = vpack.c.b16 %v3214, %v3212
        %v3291 = vpack.c.b16 %v3215, %v3213
        %v3292 = vpack.c.b16 %v3218, %v3216
        %v3293 = vpack.c.b16 %v3219, %v3217
        %v3294 = vpack.c.b16 %v3222, %v3220
        %v3295 = vpack.c.b16 %v3223, %v3221
        %v3296 = vpack.c.b16 %v3226, %v3224
        %v3297 = vpack.c.b16 %v3227, %v3225
        %v3298 = vpack.c.b16 %v3230, %v3228
        %v3299 = vpack.c.b16 %v3231, %v3229
        %v3300 = vpack.c.b16 %v3234, %v3232
        %v3301 = vpack.c.b16 %v3235, %v3233
        %v3302 = vpack.c.b16 %v3238, %v3236
        %v3303 = vpack.c.b16 %v3239, %v3237
        %3368 = vmatprep.subr.bf16.mxu0 %v3241
        %3369 = vmatpush1.bf16.msra.mxu0 %v3240
        %3370 = vmatprep.subr.bf16.mxu0 %v3243
        %3371 = vmatpush1.bf16.msra.mxu0 %v3242
        %3372 = vmatprep.subr.bf16.mxu0 %v3245
        %3373 = vmatpush1.bf16.msra.mxu0 %v3244
        %3374 = vmatprep.subr.bf16.mxu0 %v3247
        %3375 = vmatpush1.bf16.msra.mxu0 %v3246
        %3376 = vmatprep.subr.bf16.mxu0 %v3249
        %3377 = vmatpush1.bf16.msra.mxu0 %v3248
        %3378 = vmatprep.subr.bf16.mxu0 %v3251
        %3379 = vmatpush1.bf16.msra.mxu0 %v3250
        %3380 = vmatprep.subr.bf16.mxu0 %v3253
        %3381 = vmatpush1.bf16.msra.mxu0 %v3252
        %3382 = vmatprep.subr.bf16.mxu0 %v3255
        %3383 = vmatpush1.bf16.msra.mxu0 %v3254
        %3384 = vmatprep.subr.bf16.mxu0 %v3257
        %3385 = vmatpush1.bf16.msra.mxu0 %v3256
        %3386 = vmatprep.subr.bf16.mxu0 %v3259
        %3387 = vmatpush1.bf16.msra.mxu0 %v3258
        %3388 = vmatprep.subr.bf16.mxu0 %v3261
        %3389 = vmatpush1.bf16.msra.mxu0 %v3260
        %3390 = vmatprep.subr.bf16.mxu0 %v3263
        %3391 = vmatpush1.bf16.msra.mxu0 %v3262
        %3392 = vmatprep.subr.bf16.mxu0 %v3265
        %3393 = vmatpush1.bf16.msra.mxu0 %v3264
        %3394 = vmatprep.subr.bf16.mxu0 %v3267
        %3395 = vmatpush1.bf16.msra.mxu0 %v3266
        %3396 = vmatprep.subr.bf16.mxu0 %v3269
        %3397 = vmatpush1.bf16.msra.mxu0 %v3268
        %3398 = vmatprep.subr.bf16.mxu0 %v3271
        %3399 = vmatpush1.bf16.msra.mxu0 %v3270
        %3400 = vmatprep.mubr.bf16.mxu0 %v2941
        %3401 = vmatmul.mubr.bf16.gmra.mrb[0].mxu0 %v2940
        %v3402 = vpop.f32.mrb[0].mxu0
        %v3403 = vadd.f32 %v3041, %v3402
        %v3404 = vpop.f32.mrb[0].mxu0
        %v3405 = vadd.f32 %v3045, %v3404
        %v3406 = vpop.f32.mrb[0].mxu0
        %v3407 = vadd.f32 %v3041, %v3406
        %v3408 = vpop.f32.mrb[0].mxu0
        %v3409 = vadd.f32 %v3045, %v3408
        %3410 = vmatprep.mubr.bf16.mxu0 %v2945
        %3411 = vmatmul.mubr.bf16.gmra.mrb[0].mxu0 %v2944
        %v3412 = vpop.f32.mrb[0].mxu0
        %v3413 = vadd.f32 %v3041, %v3412
        %v3414 = vpop.f32.mrb[0].mxu0
        %v3415 = vadd.f32 %v3045, %v3414
        %v3416 = vpop.f32.mrb[0].mxu0
        %v3417 = vadd.f32 %v3041, %v3416
        %v3418 = vpop.f32.mrb[0].mxu0
        %v3419 = vadd.f32 %v3045, %v3418
        %3420 = vmatprep.mubr.bf16.mxu0 %v2949
        %3421 = vmatmul.mubr.bf16.gmra.mrb[0].mxu0 %v2948
        %v3422 = vpop.f32.mrb[0].mxu0
        %v3423 = vadd.f32 %v3041, %v3422
        %v3424 = vpop.f32.mrb[0].mxu0
        %v3425 = vadd.f32 %v3045, %v3424
        %v3426 = vpop.f32.mrb[0].mxu0
        %v3427 = vadd.f32 %v3041, %v3426
        %v3428 = vpop.f32.mrb[0].mxu0
        %v3429 = vadd.f32 %v3045, %v3428
        %3430 = vmatprep.mubr.bf16.mxu0 %v2953
        %3431 = vmatmul.mubr.bf16.gmra.mrb[0].mxu0 %v2952
        %v3432 = vpop.f32.mrb[0].mxu0
        %v3433 = vadd.f32 %v3041, %v3432
        %v3434 = vpop.f32.mrb[0].mxu0
        %v3435 = vadd.f32 %v3045, %v3434
        %v3436 = vpop.f32.mrb[0].mxu0
        %v3437 = vadd.f32 %v3041, %v3436
        %v3438 = vpop.f32.mrb[0].mxu0
        %v3439 = vadd.f32 %v3045, %v3438
        %3440 = vmatprep.mubr.bf16.mxu0 %v2957
        %3441 = vmatmul.mubr.bf16.gmra.mrb[0].mxu0 %v2956
        %v3442 = vpop.f32.mrb[0].mxu0
        %v3443 = vadd.f32 %v3041, %v3442
        %v3444 = vpop.f32.mrb[0].mxu0
        %v3445 = vadd.f32 %v3045, %v3444
        %v3446 = vpop.f32.mrb[0].mxu0
        %v3447 = vadd.f32 %v3041, %v3446
        %v3448 = vpop.f32.mrb[0].mxu0
        %v3449 = vadd.f32 %v3045, %v3448
        %3450 = vmatprep.mubr.bf16.mxu0 %v2961
        %3451 = vmatmul.mubr.bf16.gmra.mrb[0].mxu0 %v2960
        %v3452 = vpop.f32.mrb[0].mxu0
        %v3453 = vadd.f32 %v3041, %v3452
        %v3454 = vpop.f32.mrb[0].mxu0
        %v3455 = vadd.f32 %v3045, %v3454
        %v3456 = vpop.f32.mrb[0].mxu0
        %v3457 = vadd.f32 %v3041, %v3456
        %v3458 = vpop.f32.mrb[0].mxu0
        %v3459 = vadd.f32 %v3045, %v3458
        %3460 = vmatprep.mubr.bf16.mxu0 %v2965
        %3461 = vmatmul.mubr.bf16.gmra.mrb[0].mxu0 %v2964
        %v3462 = vpop.f32.mrb[0].mxu0
        %v3463 = vadd.f32 %v3041, %v3462
        %v3464 = vpop.f32.mrb[0].mxu0
        %v3465 = vadd.f32 %v3045, %v3464
        %v3466 = vpop.f32.mrb[0].mxu0
        %v3467 = vadd.f32 %v3041, %v3466
        %v3468 = vpop.f32.mrb[0].mxu0
        %v3469 = vadd.f32 %v3045, %v3468
        %3470 = vmatprep.mubr.bf16.mxu0 %v2969
        %3471 = vmatmul.mubr.bf16.gmra.mrb[0].mxu0 %v2968
        %v3472 = vpop.f32.mrb[0].mxu0
        %v3473 = vadd.f32 %v3041, %v3472
        %v3474 = vpop.f32.mrb[0].mxu0
        %v3475 = vadd.f32 %v3045, %v3474
        %v3476 = vpop.f32.mrb[0].mxu0
        %v3477 = vadd.f32 %v3041, %v3476
        %v3478 = vpop.f32.mrb[0].mxu0
        %v3479 = vadd.f32 %v3045, %v3478
        %3480 = vdwg.mxu0
        %3481 = vmatprep.subr.bf16.mxu0 %v3273
        %3482 = vmatpush1.bf16.msra.mxu0 %v3272
        %3483 = vmatprep.subr.bf16.mxu0 %v3275
        %3484 = vmatpush1.bf16.msra.mxu0 %v3274
        %3485 = vmatprep.subr.bf16.mxu0 %v3277
        %3486 = vmatpush1.bf16.msra.mxu0 %v3276
        %3487 = vmatprep.subr.bf16.mxu0 %v3279
        %3488 = vmatpush1.bf16.msra.mxu0 %v3278
        %3489 = vmatprep.subr.bf16.mxu0 %v3281
        %3490 = vmatpush1.bf16.msra.mxu0 %v3280
        %3491 = vmatprep.subr.bf16.mxu0 %v3283
        %3492 = vmatpush1.bf16.msra.mxu0 %v3282
        %3493 = vmatprep.subr.bf16.mxu0 %v3285
        %3494 = vmatpush1.bf16.msra.mxu0 %v3284
        %3495 = vmatprep.subr.bf16.mxu0 %v3287
        %3496 = vmatpush1.bf16.msra.mxu0 %v3286
        %3497 = vmatprep.subr.bf16.mxu0 %v3289
        %3498 = vmatpush1.bf16.msra.mxu0 %v3288
        %3499 = vmatprep.subr.bf16.mxu0 %v3291
        %3500 = vmatpush1.bf16.msra.mxu0 %v3290
        %3501 = vmatprep.subr.bf16.mxu0 %v3293
        %3502 = vmatpush1.bf16.msra.mxu0 %v3292
        %3503 = vmatprep.subr.bf16.mxu0 %v3295
        %3504 = vmatpush1.bf16.msra.mxu0 %v3294
        %3505 = vmatprep.subr.bf16.mxu0 %v3297
        %3506 = vmatpush1.bf16.msra.mxu0 %v3296
        %3507 = vmatprep.subr.bf16.mxu0 %v3299
        %3508 = vmatpush1.bf16.msra.mxu0 %v3298
        %3509 = vmatprep.subr.bf16.mxu0 %v3301
        %3510 = vmatpush1.bf16.msra.mxu0 %v3300
        %3511 = vmatprep.subr.bf16.mxu0 %v3303
        %3512 = vmatpush1.bf16.msra.mxu0 %v3302
        %3513 = vmatprep.mubr.bf16.mxu0 %v2943
        %3514 = vmatmul.mubr.bf16.gmra.mrb[0].mxu0 %v2942
        %v3515 = vpop.f32.mrb[0].mxu0
        %v3516 = vadd.f32 %v3403, %v3515
        %v3517 = vpop.f32.mrb[0].mxu0
        %v3518 = vadd.f32 %v3405, %v3517
        %v3519 = vpop.f32.mrb[0].mxu0
        %v3520 = vadd.f32 %v3407, %v3519
        %v3521 = vpop.f32.mrb[0].mxu0
        %v3522 = vadd.f32 %v3409, %v3521
        %3523 = vmatprep.mubr.bf16.mxu0 %v2947
        %3524 = vmatmul.mubr.bf16.gmra.mrb[0].mxu0 %v2946
        %v3525 = vpop.f32.mrb[0].mxu0
        %v3526 = vadd.f32 %v3413, %v3525
        %v3527 = vpop.f32.mrb[0].mxu0
        %v3528 = vadd.f32 %v3415, %v3527
        %v3529 = vpop.f32.mrb[0].mxu0
        %v3530 = vadd.f32 %v3417, %v3529
        %v3531 = vpop.f32.mrb[0].mxu0
        %v3532 = vadd.f32 %v3419, %v3531
        %3533 = vmatprep.mubr.bf16.mxu0 %v2951
        %3534 = vmatmul.mubr.bf16.gmra.mrb[0].mxu0 %v2950
        %v3535 = vpop.f32.mrb[0].mxu0
        %v3536 = vadd.f32 %v3423, %v3535
        %v3537 = vpop.f32.mrb[0].mxu0
        %v3538 = vadd.f32 %v3425, %v3537
        %v3539 = vpop.f32.mrb[0].mxu0
        %v3540 = vadd.f32 %v3427, %v3539
        %v3541 = vpop.f32.mrb[0].mxu0
        %v3542 = vadd.f32 %v3429, %v3541
        %3543 = vmatprep.mubr.bf16.mxu0 %v2955
        %3544 = vmatmul.mubr.bf16.gmra.mrb[0].mxu0 %v2954
        %v3545 = vpop.f32.mrb[0].mxu0
        %v3546 = vadd.f32 %v3433, %v3545
        %v3547 = vpop.f32.mrb[0].mxu0
        %v3548 = vadd.f32 %v3435, %v3547
        %v3549 = vpop.f32.mrb[0].mxu0
        %v3550 = vadd.f32 %v3437, %v3549
        %v3551 = vpop.f32.mrb[0].mxu0
        %v3552 = vadd.f32 %v3439, %v3551
        %3553 = vmatprep.mubr.bf16.mxu0 %v2959
        %3554 = vmatmul.mubr.bf16.gmra.mrb[0].mxu0 %v2958
        %v3555 = vpop.f32.mrb[0].mxu0
        %v3556 = vadd.f32 %v3443, %v3555
        %v3557 = vpop.f32.mrb[0].mxu0
        %v3558 = vadd.f32 %v3445, %v3557
        %v3559 = vpop.f32.mrb[0].mxu0
        %v3560 = vadd.f32 %v3447, %v3559
        %v3561 = vpop.f32.mrb[0].mxu0
        %v3562 = vadd.f32 %v3449, %v3561
        %3563 = vmatprep.mubr.bf16.mxu0 %v2963
        %3564 = vmatmul.mubr.bf16.gmra.mrb[0].mxu0 %v2962
        %v3565 = vpop.f32.mrb[0].mxu0
        %v3566 = vadd.f32 %v3453, %v3565
        %v3567 = vpop.f32.mrb[0].mxu0
        %v3568 = vadd.f32 %v3455, %v3567
        %v3569 = vpop.f32.mrb[0].mxu0
        %v3570 = vadd.f32 %v3457, %v3569
        %v3571 = vpop.f32.mrb[0].mxu0
        %v3572 = vadd.f32 %v3459, %v3571
        %3573 = vmatprep.mubr.bf16.mxu0 %v2967
        %3574 = vmatmul.mubr.bf16.gmra.mrb[0].mxu0 %v2966
        %v3575 = vpop.f32.mrb[0].mxu0
        %v3576 = vadd.f32 %v3463, %v3575
        %v3577 = vpop.f32.mrb[0].mxu0
        %v3578 = vadd.f32 %v3465, %v3577
        %v3579 = vpop.f32.mrb[0].mxu0
        %v3580 = vadd.f32 %v3467, %v3579
        %v3581 = vpop.f32.mrb[0].mxu0
        %v3582 = vadd.f32 %v3469, %v3581
        %3583 = vmatprep.mubr.bf16.mxu0 %v2971
        %3584 = vmatmul.mubr.bf16.gmra.mrb[0].mxu0 %v2970
        %v3585 = vpop.f32.mrb[0].mxu0
        %v3586 = vadd.f32 %v3473, %v3585
        %v3587 = vpop.f32.mrb[0].mxu0
        %v3588 = vadd.f32 %v3475, %v3587
        %v3589 = vpop.f32.mrb[0].mxu0
        %v3590 = vadd.f32 %v3477, %v3589
        %v3591 = vpop.f32.mrb[0].mxu0
        %v3592 = vadd.f32 %v3479, %v3591
        %3593 = vdwg.mxu0
        %v3594 = vmax.f32 %v3516, 0.0
        %v3595 = vmax.f32 %v3518, 0.0
        %v3596 = vmax.f32 %v3520, 0.0
        %v3597 = vmax.f32 %v3522, 0.0
        %v3598 = vmax.f32 %v3526, 0.0
        %v3599 = vmax.f32 %v3528, 0.0
        %v3600 = vmax.f32 %v3530, 0.0
        %v3601 = vmax.f32 %v3532, 0.0
        %v3602 = vmax.f32 %v3536, 0.0
        %v3603 = vmax.f32 %v3538, 0.0
        %v3604 = vmax.f32 %v3540, 0.0
        %v3605 = vmax.f32 %v3542, 0.0
        %v3606 = vmax.f32 %v3546, 0.0
        %v3607 = vmax.f32 %v3548, 0.0
        %v3608 = vmax.f32 %v3550, 0.0
        %v3609 = vmax.f32 %v3552, 0.0
        %v3610 = vmax.f32 %v3556, 0.0
        %v3611 = vmax.f32 %v3558, 0.0
        %v3612 = vmax.f32 %v3560, 0.0
        %v3613 = vmax.f32 %v3562, 0.0
        %v3614 = vmax.f32 %v3566, 0.0
        %v3615 = vmax.f32 %v3568, 0.0
        %v3616 = vmax.f32 %v3570, 0.0
        %v3617 = vmax.f32 %v3572, 0.0
        %v3618 = vmax.f32 %v3576, 0.0
        %v3619 = vmax.f32 %v3578, 0.0
        %v3620 = vmax.f32 %v3580, 0.0
        %v3621 = vmax.f32 %v3582, 0.0
        %v3622 = vmax.f32 %v3586, 0.0
        %v3623 = vmax.f32 %v3588, 0.0
        %v3624 = vmax.f32 %v3590, 0.0
        %v3625 = vmax.f32 %v3592, 0.0
        %v3626 = vpack.c.bf16 %v3596, %v3594
        %v3627 = vpack.c.bf16 %v3597, %v3595
        %v3628 = vpack.c.bf16 %v3600, %v3598
        %v3629 = vpack.c.bf16 %v3601, %v3599
        %v3630 = vpack.c.bf16 %v3604, %v3602
        %v3631 = vpack.c.bf16 %v3605, %v3603
        %v3632 = vpack.c.bf16 %v3608, %v3606
        %v3633 = vpack.c.bf16 %v3609, %v3607
        %v3634 = vpack.c.bf16 %v3612, %v3610
        %v3635 = vpack.c.bf16 %v3613, %v3611
        %v3636 = vpack.c.bf16 %v3616, %v3614
        %v3637 = vpack.c.bf16 %v3617, %v3615
        %v3638 = vpack.c.bf16 %v3620, %v3618
        %v3639 = vpack.c.bf16 %v3621, %v3619
        %v3640 = vpack.c.bf16 %v3624, %v3622
        %v3641 = vpack.c.bf16 %v3625, %v3623
        %v3642 = vld [vmem:[%s5] sm:$0xf]
        %v3643 = vld [vmem:[%s5 + $0x4] sm:$0xf]
        %v3644 = vld [vmem:[%s5 + $0x8] sm:$0xf]
        %v3645 = vld [vmem:[%s5 + $0xc] sm:$0xf]
        %v3646 = vld [vmem:[%s5 + $0x10] sm:$0xf]
        %v3647 = vld [vmem:[%s5 + $0x14] sm:$0xf]
        %v3648 = vld [vmem:[%s5 + $0x18] sm:$0xf]
        %v3649 = vld [vmem:[%s5 + $0x1c] sm:$0xf]
        %v3650 = vld [vmem:[%s5 + $0x20] sm:$0xf]
        %v3651 = vld [vmem:[%s5 + $0x24] sm:$0xf]
        %v3652 = vld [vmem:[%s5 + $0x28] sm:$0xf]
        %v3653 = vld [vmem:[%s5 + $0x2c] sm:$0xf]
        %v3654 = vld [vmem:[%s5 + $0x30] sm:$0xf]
        %v3655 = vld [vmem:[%s5 + $0x34] sm:$0xf]
        %v3656 = vld [vmem:[%s5 + $0x38] sm:$0xf]
        %v3657 = vld [vmem:[%s5 + $0x3c] sm:$0xf]
        %v3658 = vld [vmem:[%s5 + $0x40] sm:$0xf]
        %v3659 = vld [vmem:[%s5 + $0x44] sm:$0xf]
        %v3660 = vld [vmem:[%s5 + $0x48] sm:$0xf]
        %v3661 = vld [vmem:[%s5 + $0x4c] sm:$0xf]
        %v3662 = vld [vmem:[%s5 + $0x50] sm:$0xf]
        %v3663 = vld [vmem:[%s5 + $0x54] sm:$0xf]
        %v3664 = vld [vmem:[%s5 + $0x58] sm:$0xf]
        %v3665 = vld [vmem:[%s5 + $0x5c] sm:$0xf]
        %v3666 = vld [vmem:[%s5 + $0x60] sm:$0xf]
        %v3667 = vld [vmem:[%s5 + $0x64] sm:$0xf]
        %v3668 = vld [vmem:[%s5 + $0x68] sm:$0xf]
        %v3669 = vld [vmem:[%s5 + $0x6c] sm:$0xf]
        %v3670 = vld [vmem:[%s5 + $0x70] sm:$0xf]
        %v3671 = vld [vmem:[%s5 + $0x74] sm:$0xf]
        %v3672 = vld [vmem:[%s5 + $0x78] sm:$0xf]
        %v3673 = vld [vmem:[%s5 + $0x7c] sm:$0xf]
        %v3674 = vld [vmem:[#allocation7] sm:$0x1]
        %v3676 = vlaneseq
        %v3677 = vshrl.u32 %v3676, 7
        %v3678 = vsub.s32 0, %v3677
        %v3679 = vrot.slane %v3674, %v3678
        %v3713 = vunpack.c.l.b16 %v3642
        %v3714 = vunpack.c.l.b16 %v3643
        %v3715 = vunpack.c.l.b16 %v3644
        %v3716 = vunpack.c.l.b16 %v3645
        %v3717 = vunpack.c.l.b16 %v3646
        %v3718 = vunpack.c.l.b16 %v3647
        %v3719 = vunpack.c.l.b16 %v3648
        %v3720 = vunpack.c.l.b16 %v3649
        %v3721 = vunpack.c.l.b16 %v3650
        %v3722 = vunpack.c.l.b16 %v3651
        %v3723 = vunpack.c.l.b16 %v3652
        %v3724 = vunpack.c.l.b16 %v3653
        %v3725 = vunpack.c.l.b16 %v3654
        %v3726 = vunpack.c.l.b16 %v3655
        %v3727 = vunpack.c.l.b16 %v3656
        %v3728 = vunpack.c.l.b16 %v3657
        %v3729 = vunpack.c.l.b16 %v3658
        %v3730 = vunpack.c.l.b16 %v3659
        %v3731 = vunpack.c.l.b16 %v3660
        %v3732 = vunpack.c.l.b16 %v3661
        %v3733 = vunpack.c.l.b16 %v3662
        %v3734 = vunpack.c.l.b16 %v3663
        %v3735 = vunpack.c.l.b16 %v3664
        %v3736 = vunpack.c.l.b16 %v3665
        %v3737 = vunpack.c.l.b16 %v3666
        %v3738 = vunpack.c.l.b16 %v3667
        %v3739 = vunpack.c.l.b16 %v3668
        %v3740 = vunpack.c.l.b16 %v3669
        %v3741 = vunpack.c.l.b16 %v3670
        %v3742 = vunpack.c.l.b16 %v3671
        %v3743 = vunpack.c.l.b16 %v3672
        %v3744 = vunpack.c.l.b16 %v3673
        %v3745 = vpack.c.b16 %v3714, %v3713
        %v3746 = vpack.c.b16 %v3716, %v3715
        %v3747 = vpack.c.b16 %v3718, %v3717
        %v3748 = vpack.c.b16 %v3720, %v3719
        %v3749 = vpack.c.b16 %v3722, %v3721
        %v3750 = vpack.c.b16 %v3724, %v3723
        %v3751 = vpack.c.b16 %v3726, %v3725
        %v3752 = vpack.c.b16 %v3728, %v3727
        %v3753 = vpack.c.b16 %v3730, %v3729
        %v3754 = vpack.c.b16 %v3732, %v3731
        %v3755 = vpack.c.b16 %v3734, %v3733
        %v3756 = vpack.c.b16 %v3736, %v3735
        %v3757 = vpack.c.b16 %v3738, %v3737
        %v3758 = vpack.c.b16 %v3740, %v3739
        %v3759 = vpack.c.b16 %v3742, %v3741
        %v3760 = vpack.c.b16 %v3744, %v3743
        %3777 = vmatprep.subr.bf16.mxu0 0
        %3778 = vmatpush1.bf16.msra.mxu0 %v3745
        %3779 = vmatprep.subr.bf16.mxu0 0
        %3780 = vmatpush1.bf16.msra.mxu0 %v3746
        %3781 = vmatprep.subr.bf16.mxu0 0
        %3782 = vmatpush1.bf16.msra.mxu0 %v3747
        %3783 = vmatprep.subr.bf16.mxu0 0
        %3784 = vmatpush1.bf16.msra.mxu0 %v3748
        %3785 = vmatprep.subr.bf16.mxu0 0
        %3786 = vmatpush1.bf16.msra.mxu0 %v3749
        %3787 = vmatprep.subr.bf16.mxu0 0
        %3788 = vmatpush1.bf16.msra.mxu0 %v3750
        %3789 = vmatprep.subr.bf16.mxu0 0
        %3790 = vmatpush1.bf16.msra.mxu0 %v3751
        %3791 = vmatprep.subr.bf16.mxu0 0
        %3792 = vmatpush1.bf16.msra.mxu0 %v3752
        %3793 = vmatprep.subr.bf16.mxu0 0
        %3794 = vmatpush1.bf16.msra.mxu0 %v3753
        %3795 = vmatprep.subr.bf16.mxu0 0
        %3796 = vmatpush1.bf16.msra.mxu0 %v3754
        %3797 = vmatprep.subr.bf16.mxu0 0
        %3798 = vmatpush1.bf16.msra.mxu0 %v3755
        %3799 = vmatprep.subr.bf16.mxu0 0
        %3800 = vmatpush1.bf16.msra.mxu0 %v3756
        %3801 = vmatprep.subr.bf16.mxu0 0
        %3802 = vmatpush1.bf16.msra.mxu0 %v3757
        %3803 = vmatprep.subr.bf16.mxu0 0
        %3804 = vmatpush1.bf16.msra.mxu0 %v3758
        %3805 = vmatprep.subr.bf16.mxu0 0
        %3806 = vmatpush1.bf16.msra.mxu0 %v3759
        %3807 = vmatprep.subr.bf16.mxu0 0
        %3808 = vmatpush1.bf16.msra.mxu0 %v3760
        %3809 = vmatprep.mubr.bf16.mxu0 %v3627
        %3810 = vmatmul.mubr.bf16.gmra.mrb[0].mxu0 %v3626
        %v3811 = vpop.f32.mrb[0].mxu0
        %v3812 = vadd.f32 %v3679, %v3811
        %v3813 = vpop.f32.mrb[0].mxu0
        %v3814 = vpop.f32.mrb[0].mxu0
        %v3815 = vadd.f32 %v3679, %v3814
        %v3816 = vpop.f32.mrb[0].mxu0
        %3817 = vmatprep.mubr.bf16.mxu0 %v3629
        %3818 = vmatmul.mubr.bf16.gmra.mrb[0].mxu0 %v3628
        %v3819 = vpop.f32.mrb[0].mxu0
        %v3820 = vadd.f32 %v3679, %v3819
        %v3821 = vpop.f32.mrb[0].mxu0
        %v3822 = vpop.f32.mrb[0].mxu0
        %v3823 = vadd.f32 %v3679, %v3822
        %v3824 = vpop.f32.mrb[0].mxu0
        %3825 = vmatprep.mubr.bf16.mxu0 %v3631
        %3826 = vmatmul.mubr.bf16.gmra.mrb[0].mxu0 %v3630
        %v3827 = vpop.f32.mrb[0].mxu0
        %v3828 = vadd.f32 %v3679, %v3827
        %v3829 = vpop.f32.mrb[0].mxu0
        %v3830 = vpop.f32.mrb[0].mxu0
        %v3831 = vadd.f32 %v3679, %v3830
        %v3832 = vpop.f32.mrb[0].mxu0
        %3833 = vmatprep.mubr.bf16.mxu0 %v3633
        %3834 = vmatmul.mubr.bf16.gmra.mrb[0].mxu0 %v3632
        %v3835 = vpop.f32.mrb[0].mxu0
        %v3836 = vadd.f32 %v3679, %v3835
        %v3837 = vpop.f32.mrb[0].mxu0
        %v3838 = vpop.f32.mrb[0].mxu0
        %v3839 = vadd.f32 %v3679, %v3838
        %v3840 = vpop.f32.mrb[0].mxu0
        %3841 = vmatprep.mubr.bf16.mxu0 %v3635
        %3842 = vmatmul.mubr.bf16.gmra.mrb[0].mxu0 %v3634
        %v3843 = vpop.f32.mrb[0].mxu0
        %v3844 = vadd.f32 %v3679, %v3843
        %v3845 = vpop.f32.mrb[0].mxu0
        %v3846 = vpop.f32.mrb[0].mxu0
        %v3847 = vadd.f32 %v3679, %v3846
        %v3848 = vpop.f32.mrb[0].mxu0
        %3849 = vmatprep.mubr.bf16.mxu0 %v3637
        %3850 = vmatmul.mubr.bf16.gmra.mrb[0].mxu0 %v3636
        %v3851 = vpop.f32.mrb[0].mxu0
        %v3852 = vadd.f32 %v3679, %v3851
        %v3853 = vpop.f32.mrb[0].mxu0
        %v3854 = vpop.f32.mrb[0].mxu0
        %v3855 = vadd.f32 %v3679, %v3854
        %v3856 = vpop.f32.mrb[0].mxu0
        %3857 = vmatprep.mubr.bf16.mxu0 %v3639
        %3858 = vmatmul.mubr.bf16.gmra.mrb[0].mxu0 %v3638
        %v3859 = vpop.f32.mrb[0].mxu0
        %v3860 = vadd.f32 %v3679, %v3859
        %v3861 = vpop.f32.mrb[0].mxu0
        %v3862 = vpop.f32.mrb[0].mxu0
        %v3863 = vadd.f32 %v3679, %v3862
        %v3864 = vpop.f32.mrb[0].mxu0
        %3865 = vmatprep.mubr.bf16.mxu0 %v3641
        %3866 = vmatmul.mubr.bf16.gmra.mrb[0].mxu0 %v3640
        %v3867 = vpop.f32.mrb[0].mxu0
        %v3868 = vadd.f32 %v3679, %v3867
        %v3869 = vpop.f32.mrb[0].mxu0
        %v3870 = vpop.f32.mrb[0].mxu0
        %v3871 = vadd.f32 %v3679, %v3870
        %v3872 = vpop.f32.mrb[0].mxu0
        %3873 = vdwg.mxu0
        %v3874 = vmax.f32 %v3812, 0.0
        %v3875 = vmax.f32 %v3815, 0.0
        %v3876 = vmax.f32 %v3820, 0.0
        %v3877 = vmax.f32 %v3823, 0.0
        %v3878 = vmax.f32 %v3828, 0.0
        %v3879 = vmax.f32 %v3831, 0.0
        %v3880 = vmax.f32 %v3836, 0.0
        %v3881 = vmax.f32 %v3839, 0.0
        %v3882 = vmax.f32 %v3844, 0.0
        %v3883 = vmax.f32 %v3847, 0.0
        %v3884 = vmax.f32 %v3852, 0.0
        %v3885 = vmax.f32 %v3855, 0.0
        %v3886 = vmax.f32 %v3860, 0.0
        %v3887 = vmax.f32 %v3863, 0.0
        %v3888 = vmax.f32 %v3868, 0.0
        %v3889 = vmax.f32 %v3871, 0.0
        %v3890 = vpack.c.bf16 %v3875, %v3874
        %v3891 = vpack.c.bf16 %v3877, %v3876
        %v3892 = vpack.c.bf16 %v3879, %v3878
        %v3893 = vpack.c.bf16 %v3881, %v3880
        %v3894 = vpack.c.bf16 %v3883, %v3882
        %v3895 = vpack.c.bf16 %v3885, %v3884
        %v3896 = vpack.c.bf16 %v3887, %v3886
        %v3897 = vpack.c.bf16 %v3889, %v3888
        %v3898 = vld [vmem:[#allocation8] sm:$0xf]
        %v3899 = vld [vmem:[#allocation8 + $0x4] sm:$0xf]
        %v3900 = vld [vmem:[#allocation8 + $0x8] sm:$0xf]
        %v3901 = vld [vmem:[#allocation8 + $0xc] sm:$0xf]
        %v3902 = vld [vmem:[#allocation8 + $0x10] sm:$0xf]
        %v3903 = vld [vmem:[#allocation8 + $0x14] sm:$0xf]
        %v3904 = vld [vmem:[#allocation8 + $0x18] sm:$0xf]
        %v3905 = vld [vmem:[#allocation8 + $0x1c] sm:$0xf]
        %v3906 = vld [vmem:[#allocation8 + $0x20] sm:$0xf]
        %v3907 = vld [vmem:[#allocation8 + $0x24] sm:$0xf]
        %v3908 = vld [vmem:[#allocation8 + $0x28] sm:$0xf]
        %v3909 = vld [vmem:[#allocation8 + $0x2c] sm:$0xf]
        %v3910 = vld [vmem:[#allocation8 + $0x30] sm:$0xf]
        %v3911 = vld [vmem:[#allocation8 + $0x34] sm:$0xf]
        %v3912 = vld [vmem:[#allocation8 + $0x38] sm:$0xf]
        %v3913 = vld [vmem:[#allocation8 + $0x3c] sm:$0xf]
        %v3914 = vld [vmem:[#allocation10] sm:$0x1]
        %v3916 = vlaneseq
        %v3917 = vshrl.u32 %v3916, 7
        %v3918 = vsub.s32 0, %v3917
        %v3919 = vrot.slane %v3914, %v3918
        %v3937 = vunpack.c.l.b16 %v3898
        %v3938 = vunpack.c.l.b16 %v3899
        %v3939 = vunpack.c.l.b16 %v3900
        %v3940 = vunpack.c.l.b16 %v3901
        %v3941 = vunpack.c.l.b16 %v3902
        %v3942 = vunpack.c.l.b16 %v3903
        %v3943 = vunpack.c.l.b16 %v3904
        %v3944 = vunpack.c.l.b16 %v3905
        %v3945 = vunpack.c.l.b16 %v3906
        %v3946 = vunpack.c.l.b16 %v3907
        %v3947 = vunpack.c.l.b16 %v3908
        %v3948 = vunpack.c.l.b16 %v3909
        %v3949 = vunpack.c.l.b16 %v3910
        %v3950 = vunpack.c.l.b16 %v3911
        %v3951 = vunpack.c.l.b16 %v3912
        %v3952 = vunpack.c.l.b16 %v3913
        %v3953 = vpack.c.b16 %v3938, %v3937
        %v3954 = vpack.c.b16 %v3940, %v3939
        %v3955 = vpack.c.b16 %v3942, %v3941
        %v3956 = vpack.c.b16 %v3944, %v3943
        %v3957 = vpack.c.b16 %v3946, %v3945
        %v3958 = vpack.c.b16 %v3948, %v3947
        %v3959 = vpack.c.b16 %v3950, %v3949
        %v3960 = vpack.c.b16 %v3952, %v3951
        %3969 = vmatprep.subr.bf16.mxu0 0
        %3970 = vmatpush1.bf16.msra.mxu0 %v3953
        %3971 = vmatprep.subr.bf16.mxu0 0
        %3972 = vmatpush1.bf16.msra.mxu0 %v3954
        %3973 = vmatprep.subr.bf16.mxu0 0
        %3974 = vmatpush1.bf16.msra.mxu0 %v3955
        %3975 = vmatprep.subr.bf16.mxu0 0
        %3976 = vmatpush1.bf16.msra.mxu0 %v3956
        %3977 = vmatprep.subr.bf16.mxu0 0
        %3978 = vmatpush1.bf16.msra.mxu0 %v3957
        %3979 = vmatprep.subr.bf16.mxu0 0
        %3980 = vmatpush1.bf16.msra.mxu0 %v3958
        %3981 = vmatprep.subr.bf16.mxu0 0
        %3982 = vmatpush1.bf16.msra.mxu0 %v3959
        %3983 = vmatprep.subr.bf16.mxu0 0
        %3984 = vmatpush1.bf16.msra.mxu0 %v3960
        %3985 = vmatprep.subr.bf16.mxu0 0
        %3986 = vmatpush1.bf16.msra.mxu0 0
        %3987 = vmatprep.subr.bf16.mxu0 0
        %3988 = vmatpush1.bf16.msra.mxu0 0
        %3989 = vmatprep.subr.bf16.mxu0 0
        %3990 = vmatpush1.bf16.msra.mxu0 0
        %3991 = vmatprep.subr.bf16.mxu0 0
        %3992 = vmatpush1.bf16.msra.mxu0 0
        %3993 = vmatprep.subr.bf16.mxu0 0
        %3994 = vmatpush1.bf16.msra.mxu0 0
        %3995 = vmatprep.subr.bf16.mxu0 0
        %3996 = vmatpush1.bf16.msra.mxu0 0
        %3997 = vmatprep.subr.bf16.mxu0 0
        %3998 = vmatpush1.bf16.msra.mxu0 0
        %3999 = vmatprep.subr.bf16.mxu0 0
        %4000 = vmatpush1.bf16.msra.mxu0 0
        %4001 = vmatprep.mubr.bf16.mxu0 0
        %4002 = vmatmul.mubr.bf16.gmra.mrb[0].mxu0 %v3890
        %v4003 = vpop.f32.mrb[0].mxu0
        %v4004 = vadd.f32 %v3919, %v4003
        %v4005 = vpop.f32.mrb[0].mxu0
        %v4006 = vpop.f32.mrb[0].mxu0
        %v4007 = vadd.f32 %v3919, %v4006
        %v4008 = vpop.f32.mrb[0].mxu0
        %4009 = vmatprep.mubr.bf16.mxu0 0
        %4010 = vmatmul.mubr.bf16.gmra.mrb[0].mxu0 %v3891
        %v4011 = vpop.f32.mrb[0].mxu0
        %v4012 = vadd.f32 %v3919, %v4011
        %v4013 = vpop.f32.mrb[0].mxu0
        %v4014 = vpop.f32.mrb[0].mxu0
        %v4015 = vadd.f32 %v3919, %v4014
        %v4016 = vpop.f32.mrb[0].mxu0
        %4017 = vmatprep.mubr.bf16.mxu0 0
        %4018 = vmatmul.mubr.bf16.gmra.mrb[0].mxu0 %v3892
        %v4019 = vpop.f32.mrb[0].mxu0
        %v4020 = vadd.f32 %v3919, %v4019
        %v4021 = vpop.f32.mrb[0].mxu0
        %v4022 = vpop.f32.mrb[0].mxu0
        %v4023 = vadd.f32 %v3919, %v4022
        %v4024 = vpop.f32.mrb[0].mxu0
        %4025 = vmatprep.mubr.bf16.mxu0 0
        %4026 = vmatmul.mubr.bf16.gmra.mrb[0].mxu0 %v3893
        %v4027 = vpop.f32.mrb[0].mxu0
        %v4028 = vadd.f32 %v3919, %v4027
        %v4029 = vpop.f32.mrb[0].mxu0
        %v4030 = vpop.f32.mrb[0].mxu0
        %v4031 = vadd.f32 %v3919, %v4030
        %v4032 = vpop.f32.mrb[0].mxu0
        %4033 = vmatprep.mubr.bf16.mxu0 0
        %4034 = vmatmul.mubr.bf16.gmra.mrb[0].mxu0 %v3894
        %v4035 = vpop.f32.mrb[0].mxu0
        %v4036 = vadd.f32 %v3919, %v4035
        %v4037 = vpop.f32.mrb[0].mxu0
        %v4038 = vpop.f32.mrb[0].mxu0
        %v4039 = vadd.f32 %v3919, %v4038
        %v4040 = vpop.f32.mrb[0].mxu0
        %4041 = vmatprep.mubr.bf16.mxu0 0
        %4042 = vmatmul.mubr.bf16.gmra.mrb[0].mxu0 %v3895
        %v4043 = vpop.f32.mrb[0].mxu0
        %v4044 = vadd.f32 %v3919, %v4043
        %v4045 = vpop.f32.mrb[0].mxu0
        %v4046 = vpop.f32.mrb[0].mxu0
        %v4047 = vadd.f32 %v3919, %v4046
        %v4048 = vpop.f32.mrb[0].mxu0
        %4049 = vmatprep.mubr.bf16.mxu0 0
        %4050 = vmatmul.mubr.bf16.gmra.mrb[0].mxu0 %v3896
        %v4051 = vpop.f32.mrb[0].mxu0
        %v4052 = vadd.f32 %v3919, %v4051
        %v4053 = vpop.f32.mrb[0].mxu0
        %v4054 = vpop.f32.mrb[0].mxu0
        %v4055 = vadd.f32 %v3919, %v4054
        %v4056 = vpop.f32.mrb[0].mxu0
        %4057 = vmatprep.mubr.bf16.mxu0 0
        %4058 = vmatmul.mubr.bf16.gmra.mrb[0].mxu0 %v3897
        %v4059 = vpop.f32.mrb[0].mxu0
        %v4060 = vadd.f32 %v3919, %v4059
        %v4061 = vpop.f32.mrb[0].mxu0
        %v4062 = vpop.f32.mrb[0].mxu0
        %v4063 = vadd.f32 %v3919, %v4062
        %v4064 = vpop.f32.mrb[0].mxu0
        %4065 = vdwg.mxu0
        %4066 = vst [vmem:[%s395] sm:$0xff] %v4004
        %4067 = vst [vmem:[%s395 + $0x8] sm:$0xff] %v4007
        %4068 = vst [vmem:[%s395 + $0x10] sm:$0xff] %v4012
        %4069 = vst [vmem:[%s395 + $0x18] sm:$0xff] %v4015
        %4070 = vst [vmem:[%s395 + $0x20] sm:$0xff] %v4020
        %4071 = vst [vmem:[%s395 + $0x28] sm:$0xff] %v4023
        %4072 = vst [vmem:[%s395 + $0x30] sm:$0xff] %v4028
        %4073 = vst [vmem:[%s395 + $0x38] sm:$0xff] %v4031
        %4074 = vst [vmem:[%s395 + $0x40] sm:$0xff] %v4036
        %4075 = vst [vmem:[%s395 + $0x48] sm:$0xff] %v4039
        %4076 = vst [vmem:[%s395 + $0x50] sm:$0xff] %v4044
        %4077 = vst [vmem:[%s395 + $0x58] sm:$0xff] %v4047
        %4078 = vst [vmem:[%s395 + $0x60] sm:$0xff] %v4052
        %4079 = vst [vmem:[%s395 + $0x68] sm:$0xff] %v4055
        %4080 = vst [vmem:[%s395 + $0x70] sm:$0xff] %v4060
        %4081 = vst [vmem:[%s395 + $0x78] sm:$0xff] %v4063
        %s4082 = sand.u32 %s228, 1
        %s4083 = scalar_lea.sflag [#allocation4], %s4082
        %s4084 = sand.u32 %s228, 1
        %s4085 = smul.addr %s4084, 128
        %s4086 = scalar_lea.vmem [#allocation11], %s4085
        // Predicated region
        $region77: #{tpu_custom_call.1} parent=55 // pred_check
          %p4087 = pneg %p238
        $region78: #{tpu_custom_call.1} parent=55 // pred_check_branch
          %4089 = sbr.rel (%p4087) target = $region80
        $region79: #{tpu_custom_call.1} parent=55 // pred_region
          %s4090 = smul.u32 16, %s26
          %s4092 = ssub.s32 2048, 2048
          %4093 = vsyncadd %s4083, %s4092
          %s4094 = smul.addr %s4090, 128
          %s4095 = scalar_lea.hbm %s9, %s4094
          %s4096 = sshll.u32 %s4086, 4
          %s4097 = int_to_ptr.vmem [resolvable:$true] %s4096
          %4102 = dma.vmem_to_hbm [thread:$0]  %s4097, 2048, %s4095, %s4083, 128, 128, 8
        $region80: #{tpu_custom_call.1} parent=55 // pred_fallthru
          _
      $region56: #{tpu_custom_call.1} parent=5 // pred_fallthru
        _
      %p4103 = scmp.le.s32.totalorder 2, %s21
      // Predicated region
      $region81: #{tpu_custom_call.1} parent=5 // pred_check
        %p4104 = pneg %p4103
      $region82: #{tpu_custom_call.1} parent=5 // pred_check_branch
        %4106 = sbr.rel (%p4104) target = $region84
      $region83: #{tpu_custom_call.1} parent=5 // pred_region
        %s4107 = ssub.s32 %s21, 2
        // Predicated region
        $region85: #{tpu_custom_call.1} parent=83 // pred_check
          %p4108 = pneg %p244
        $region86: #{tpu_custom_call.1} parent=83 // pred_check_branch
          %4110 = sbr.rel (%p4108) target = $region88
        $region87: #{tpu_custom_call.1} parent=83 // pred_region
          %s4111 = sand.u32 %s229, 1
          %s4112 = scalar_lea.sflag [#allocation4], %s4111
          %s4113 = sand.u32 %s229, 1
          %s4114 = smul.addr %s4113, 128
          %s4115 = scalar_lea.vmem [#allocation11], %s4114
          %4116 = dma.done %s4112, 2048
        $region88: #{tpu_custom_call.1} parent=83 // pred_fallthru
          _
      $region84: #{tpu_custom_call.1} parent=5 // pred_fallthru
        _
    $region6: #{tpu_custom_call.1} parent=1 // loop_footer
      %s25 = sadd.s32 1, %s21
    $region7: #{tpu_custom_call.1} parent=1 // loop_footer_branch
      %20 = sbr.rel target = $region3
    $region8: #{tpu_custom_call.1} parent=1 // loop_exit
      _
    %4117 = vsyncpa [#allocation3], 1
    %s4118 = scalar_lea.sflag [#allocation3], 1
    %4119 = vsyncpa %s4118, 1
    %4120 = vsyncpa [#allocation6], 1
    %4121 = vsyncpa [#allocation9], 1
    %4122 = vsyncpa [#allocation4], 1
    %s4123 = scalar_lea.sflag [#allocation4], 1
    %4124 = vsyncpa %s4123, 1

</llo_original>
